<compile_context>
chip_gen: v6e
topology: v6e:2x2x1
jax: 0.10.0
libtpu: 0.0.40
codegen_flags: <defaults>
</compile_context>

<pallas_src>
import functools

import jax
import jax.numpy as jnp
from jax.experimental import pallas as pl
from jax.experimental.pallas import tpu as pltpu


def _layernorm(x, gamma, beta, eps=1e-5):
    # Fused single-sweep LN: one pass computes sum(x) and sum(x*x);
    # var = E[x^2] - mean^2 (one fewer full-tile elementwise pass).
    d = x.shape[-1]
    s = jnp.sum(x, axis=-1, keepdims=True)
    s2 = jnp.sum(x * x, axis=-1, keepdims=True)
    mean = s * (1.0 / d)
    var = jnp.maximum(s2 * (1.0 / d) - mean * mean, 0.0)
    inv = jax.lax.rsqrt(var + eps)
    return (x - mean) * inv * gamma + beta


def _gelu(x, approx):
    if approx:
        # tanh approximation -> transcendental goes to the EUP slot (v6e/v7x).
        c = 0.7978845608028654  # sqrt(2/pi)
        return 0.5 * x * (1.0 + jnp.tanh(c * (x + 0.044715 * x * x * x)))
    # PyTorch nn.GELU() default: exact erf-based GELU (f32).
    return 0.5 * x * (1.0 + jax.lax.erf(x * 0.7071067811865476))


def mixer_block_kernel(
    x_ref,                      # (NB, S, D) bf16 (or f32)
    ln1_g_ref, ln1_b_ref,       # (1, D) f32
    wt1_ref, bt1_ref,           # (T, S) bf16, (T, 1) f32   token-mix Linear 1 (out,in)
    wt2_ref, bt2_ref,           # (S, T) bf16, (S, 1) f32   token-mix Linear 2 (out,in)
    ln2_g_ref, ln2_b_ref,       # (1, D) f32
    wc1_ref, bc1_ref,           # (D, C) bf16, (1, C) f32   channel-mix Linear 1 (in,out)
    wc2_ref, bc2_ref,           # (C, D) bf16, (1, D) f32   channel-mix Linear 2 (in,out)
    out_ref,                    # (NB, S, D)
    tmp_ref,                    # VMEM scratch (NB*S, D) f32  (residual-1 result)
    *, approx_gelu,
):
    nb_blk, S, D = x_ref.shape
    f32, bf16 = jnp.float32, jnp.bfloat16

    ln1_g = ln1_g_ref[...]
    ln1_b = ln1_b_ref[...]

    # ---- token mixing (per batch element; contracts over S / T; no transposes) ----
    for nb in range(nb_blk):  # static unroll, NB is small
        xb = x_ref[nb].astype(f32)                              # (S, D) f32
        y = _layernorm(xb, ln1_g, ln1_b)                        # (S, D) f32
        # hT[t, d] = sum_s W1[t, s] * y[s, d]
        hT = jnp.dot(wt1_ref[...], y.astype(bf16),
                     preferred_element_type=f32)                # (T, D) f32
        hT = _gelu(hT + bt1_ref[...], approx_gelu)              # bias (T,1) over D
        # tok[s, d] = sum_t W2[s, t] * hT[t, d]
        tok = jnp.dot(wt2_ref[...], hT.astype(bf16),
                      preferred_element_type=f32)               # (S, D) f32
        tmp_ref[pl.ds(nb * S, S), :] = xb + tok + bt2_ref[...]  # residual 1

    # ---- channel mixing (all NB*S rows fused into one matmul) ----
    # Note: tmp is NOT kept live across the matmuls; the residual re-reads the
    # VMEM scratch below (cheap vld, frees vregs for the matmul/GELU pipeline).
    u = _layernorm(tmp_ref[...], ln2_g_ref[...], ln2_b_ref[...])      # (NB*S, D)
    h2 = jnp.dot(u.astype(bf16), wc1_ref[...],
                 preferred_element_type=f32) + bc1_ref[...]           # (NB*S, C)
    h2 = _gelu(h2, approx_gelu)
    v = jnp.dot(h2.astype(bf16), wc2_ref[...],
                preferred_element_type=f32) + bc2_ref[...]            # (NB*S, D)
    out = (tmp_ref[...] + v).reshape(nb_blk, S, D)                    # residual 2
    out_ref[...] = out.astype(out_ref.dtype)


def _vmem_limit_bytes():
    """~80% of physical VMEM (compiler headroom), capped at 100 MiB.

    v7x (64 MiB)  -> ~51 MiB;  v5e/v6e (128 MiB) -> 100 MiB.
    """
    try:
        cap = pltpu.get_tpu_info().vmem_capacity_bytes
    except Exception:
        cap = 64 * 1024 * 1024  # conservative: safe on every generation
    return min(int(cap * 0.8), 100 * 1024 * 1024)


def _pick_batch_block(B):
    """Largest NB dividing B that keeps >= 8 grid steps (>=4/core on v7x),
    with an even step count so the 2 TensorCores split evenly."""
    best = 1
    for nb in range(1, B + 1):
        steps = B // nb
        if B % nb == 0 and steps >= 8 and steps % 2 == 0:
            best = nb
    return best


def mixer_block(x, params, *, batch_block=None, approx_gelu=False,
                single_buffer_weights=True):
    """x: (B, S, D) bf16 (or f32). params: dict of weights (see init_params)."""
    B, S, D = x.shape
    T = params["wt1"].shape[0]
    C = params["wc1"].shape[1]

    NB = batch_block if batch_block is not None else _pick_batch_block(B)
    if B % NB != 0:
        # TODO(synk): pad B instead of silently dropping to NB=1.
        NB = 1

    kernel = functools.partial(mixer_block_kernel, approx_gelu=approx_gelu)

    def invariant_spec(shape, single):
        nd = len(shape)
        idx = lambda b, _nd=nd: (0,) * _nd
        if single:
            # Grid-invariant operand: keep a single VMEM buffer (no double-buffer).
            return pl.BlockSpec(shape, idx, pipeline_mode=pl.Buffered(1))
        return pl.BlockSpec(shape, idx)

    def run(single):
        in_specs = [
            pl.BlockSpec((NB, S, D), lambda b: (b, 0, 0)),           # x (pipelined)
            invariant_spec((1, D), single), invariant_spec((1, D), single),  # ln1 g/b
            invariant_spec((T, S), single), invariant_spec((T, 1), single),  # token W1/b1
            invariant_spec((S, T), single), invariant_spec((S, 1), single),  # token W2/b2
            invariant_spec((1, D), single), invariant_spec((1, D), single),  # ln2 g/b
            invariant_spec((D, C), single), invariant_spec((1, C), single),  # chan W1/b1
            invariant_spec((C, D), single), invariant_spec((1, D), single),  # chan W2/b2
        ]
        return pl.pallas_call(
            kernel,
            out_shape=jax.ShapeDtypeStruct((B, S, D), x.dtype),
            grid_spec=pltpu.PrefetchScalarGridSpec(
                num_scalar_prefetch=0,
                grid=(B // NB,),
                in_specs=in_specs,
                out_specs=pl.BlockSpec((NB, S, D), lambda b: (b, 0, 0)),
                scratch_shapes=[pltpu.VMEM((NB * S, D), jnp.float32)],
            ),
            compiler_params=pltpu.CompilerParams(
                dimension_semantics=("parallel",),
                vmem_limit_bytes=_vmem_limit_bytes(),
            ),
        )(
            x,
            params["ln1_g"], params["ln1_b"],
            params["wt1"], params["bt1"],
            params["wt2"], params["bt2"],
            params["ln2_g"], params["ln2_b"],
            params["wc1"], params["bc1"],
            params["wc2"], params["bc2"],
        )

    if single_buffer_weights:
        try:
            # block so lowering/runtime failures of the Buffered(1) path are
            # caught here and we can fall back cleanly.
            return jax.block_until_ready(run(True))
        except Exception:
            pass  # jax version without single-buffer pipeline_mode support
    return run(False)


def init_params(key, dim, num_patch, tokens_mlp_dim, channels_mlp_dim):
    """Matmul weights stored in bf16 (MXU input dtype) once at init; LN params
    and biases stay f32 (added after f32 accumulation)."""
    ks = jax.random.split(key, 8)
    scale = 0.02
    f32, bf16 = jnp.float32, jnp.bfloat16
    return {
        "ln1_g": jnp.ones((1, dim), f32),
        "ln1_b": jnp.zeros((1, dim), f32),
        # Token-mix MLP (acts on the patch axis), stored (out, in) like
        # nn.Linear(num_patch, T).weight, so the kernel does W @ act (no .T).
        "wt1": (scale * jax.random.normal(ks[0], (tokens_mlp_dim, num_patch), f32)).astype(bf16),
        "bt1": scale * jax.random.normal(ks[1], (tokens_mlp_dim, 1), f32),
        "wt2": (scale * jax.random.normal(ks[2], (num_patch, tokens_mlp_dim), f32)).astype(bf16),
        "bt2": scale * jax.random.normal(ks[3], (num_patch, 1), f32),
        "ln2_g": jnp.ones((1, dim), f32),
        "ln2_b": jnp.zeros((1, dim), f32),
        # Channel-mix MLP stored (in, out): act @ W.
        "wc1": (scale * jax.random.normal(ks[4], (dim, channels_mlp_dim), f32)).astype(bf16),
        "bc1": scale * jax.random.normal(ks[5], (1, channels_mlp_dim), f32),
        "wc2": (scale * jax.random.normal(ks[6], (channels_mlp_dim, dim), f32)).astype(bf16),
        "bc2": scale * jax.random.normal(ks[7], (1, dim), f32),
    }


def mixer_block_ref(x, p):
    """Pure-JAX f32 reference matching the PyTorch forward (dropout p=0.0)."""
    f32 = jnp.float32
    x = x.astype(f32)

    def ln(v, g, b):
        m = jnp.mean(v, -1, keepdims=True)
        var = jnp.mean((v - m) ** 2, -1, keepdims=True)
        return (v - m) * jax.lax.rsqrt(var + 1e-5) * g + b

    gelu = lambda t: jax.nn.gelu(t, approximate=False)
    wt1, wt2 = p["wt1"].astype(f32), p["wt2"].astype(f32)
    wc1, wc2 = p["wc1"].astype(f32), p["wc2"].astype(f32)

    y = ln(x, p["ln1_g"], p["ln1_b"])                                 # (B,S,D)
    h = gelu(jnp.einsum("ts,bsd->btd", wt1, y) + p["bt1"])            # (B,T,D)
    tok = jnp.einsum("st,btd->bsd", wt2, h) + p["bt2"]                # (B,S,D)
    tmp = x + tok
    u = ln(tmp, p["ln2_g"], p["ln2_b"])
    v = gelu(u @ wc1 + p["bc1"]) @ wc2 + p["bc2"]
    return tmp + v


if __name__ == "__main__":
    # Small but lane/sublane-aligned shapes (last dims multiples of 128).
    B, S, D = 8, 128, 128        # batch, num_patch, dim
    T, C = 128, 256              # tokens_mlp_dim, channels_mlp_dim

    key = jax.random.PRNGKey(0)
    kx, kp = jax.random.split(key)
    # Activations streamed in bf16 (one-time cast here; a real model would
    # already hold bf16 activations).
    x = jax.random.normal(kx, (B, S, D), jnp.float32).astype(jnp.bfloat16)
    params = init_params(kp, D, S, T, C)

    out = mixer_block(x, params)          # NB auto-picked -> grid of 8 steps
    out = jax.block_until_ready(out)

    ref = mixer_block_ref(x, params)
    assert out.shape == (B, S, D)
    out_f32 = out.astype(jnp.float32)
    max_err = float(jnp.max(jnp.abs(out_f32 - ref)))
    # bf16 activations/weights (f32 accumulate) => loosened tolerance vs f32 ref.
    assert jnp.allclose(out_f32, ref, atol=3e-2, rtol=3e-2), max_err
    print("KERNEL_OK")
</pallas_src>

<mosaic_0001>
module attributes {stable_mosaic.version = 11 : i64} {
  func.func @mixer_block_kernel(%arg0: i32, %arg1: memref<1x128x128xbf16, #tpu.memory_space<vmem>>, %arg2: memref<1x128xf32, #tpu.memory_space<vmem>>, %arg3: memref<1x128xf32, #tpu.memory_space<vmem>>, %arg4: memref<128x128xbf16, #tpu.memory_space<vmem>>, %arg5: memref<128x1xf32, #tpu.memory_space<vmem>>, %arg6: memref<128x128xbf16, #tpu.memory_space<vmem>>, %arg7: memref<128x1xf32, #tpu.memory_space<vmem>>, %arg8: memref<1x128xf32, #tpu.memory_space<vmem>>, %arg9: memref<1x128xf32, #tpu.memory_space<vmem>>, %arg10: memref<128x256xbf16, #tpu.memory_space<vmem>>, %arg11: memref<1x256xf32, #tpu.memory_space<vmem>>, %arg12: memref<256x128xbf16, #tpu.memory_space<vmem>>, %arg13: memref<1x128xf32, #tpu.memory_space<vmem>>, %arg14: memref<1x128x128xbf16, #tpu.memory_space<vmem>>, %arg15: memref<128x128xf32, #tpu.memory_space<vmem>>) attributes {dimension_semantics = [#tpu.dimension_semantics<parallel>], iteration_bounds = array<i64: 8>, scalar_prefetch = 0 : i64, scratch_operands = 1 : i64, tpu.core_type = #tpu.core_type<tc>, window_params = [{transform_indices = @transform_0, window_bounds = array<i64: 1, 128, 128>}, {pipeline_mode = #tpu.pipeline_mode<synchronous>, transform_indices = @transform_1, window_bounds = array<i64: 1, 128>}, {pipeline_mode = #tpu.pipeline_mode<synchronous>, transform_indices = @transform_2, window_bounds = array<i64: 1, 128>}, {pipeline_mode = #tpu.pipeline_mode<synchronous>, transform_indices = @transform_3, window_bounds = array<i64: 128, 128>}, {pipeline_mode = #tpu.pipeline_mode<synchronous>, transform_indices = @transform_4, window_bounds = array<i64: 128, 1>}, {pipeline_mode = #tpu.pipeline_mode<synchronous>, transform_indices = @transform_5, window_bounds = array<i64: 128, 128>}, {pipeline_mode = #tpu.pipeline_mode<synchronous>, transform_indices = @transform_6, window_bounds = array<i64: 128, 1>}, {pipeline_mode = #tpu.pipeline_mode<synchronous>, transform_indices = @transform_7, window_bounds = array<i64: 1, 128>}, {pipeline_mode = #tpu.pipeline_mode<synchronous>, transform_indices = @transform_8, window_bounds = array<i64: 1, 128>}, {pipeline_mode = #tpu.pipeline_mode<synchronous>, transform_indices = @transform_9, window_bounds = array<i64: 128, 256>}, {pipeline_mode = #tpu.pipeline_mode<synchronous>, transform_indices = @transform_10, window_bounds = array<i64: 1, 256>}, {pipeline_mode = #tpu.pipeline_mode<synchronous>, transform_indices = @transform_11, window_bounds = array<i64: 256, 128>}, {pipeline_mode = #tpu.pipeline_mode<synchronous>, transform_indices = @transform_12, window_bounds = array<i64: 1, 128>}, {transform_indices = @transform_13, window_bounds = array<i64: 1, 128, 128>}]} {
    %c0 = arith.constant 0 : index
    %c0_0 = arith.constant 0 : index
    %0 = vector.load %arg2[%c0, %c0_0] : memref<1x128xf32, #tpu.memory_space<vmem>>, vector<1x128xf32>
    %c0_1 = arith.constant 0 : index
    %c0_2 = arith.constant 0 : index
    %1 = vector.load %arg3[%c0_1, %c0_2] : memref<1x128xf32, #tpu.memory_space<vmem>>, vector<1x128xf32>
    %c0_3 = arith.constant 0 : index
    %c0_4 = arith.constant 0 : index
    %c0_5 = arith.constant 0 : index
    %2 = vector.load %arg1[%c0_3, %c0_4, %c0_5] : memref<1x128x128xbf16, #tpu.memory_space<vmem>>, vector<1x128x128xbf16>
    %3 = vector.shape_cast %2 : vector<1x128x128xbf16> to vector<128x128xbf16>
    %4 = arith.extf %3 : vector<128x128xbf16> to vector<128x128xf32>
    %cst = arith.constant dense<0.000000e+00> : vector<128xf32>
    %5 = vector.multi_reduction <add>, %4, %cst [1] : vector<128x128xf32> to vector<128xf32>
    %6 = vector.shape_cast %5 : vector<128xf32> to vector<128x1xf32>
    %7 = arith.mulf %4, %4 : vector<128x128xf32>
    %cst_6 = arith.constant dense<0.000000e+00> : vector<128xf32>
    %8 = vector.multi_reduction <add>, %7, %cst_6 [1] : vector<128x128xf32> to vector<128xf32>
    %9 = vector.shape_cast %8 : vector<128xf32> to vector<128x1xf32>
    %cst_7 = arith.constant 7.812500e-03 : f32
    %10 = vector.broadcast %cst_7 : f32 to vector<128x1xf32>
    %11 = arith.mulf %6, %10 : vector<128x1xf32>
    %cst_8 = arith.constant 7.812500e-03 : f32
    %12 = vector.broadcast %cst_8 : f32 to vector<128x1xf32>
    %13 = arith.mulf %9, %12 : vector<128x1xf32>
    %14 = arith.mulf %11, %11 : vector<128x1xf32>
    %15 = arith.subf %13, %14 : vector<128x1xf32>
    %cst_9 = arith.constant 0.000000e+00 : f32
    %16 = vector.broadcast %cst_9 : f32 to vector<128x1xf32>
    %17 = arith.maximumf %15, %16 : vector<128x1xf32>
    %cst_10 = arith.constant 9.99999974E-6 : f32
    %18 = vector.broadcast %cst_10 : f32 to vector<128x1xf32>
    %19 = arith.addf %17, %18 : vector<128x1xf32>
    %20 = math.rsqrt %19 : vector<128x1xf32>
    %21 = vector.broadcast %11 : vector<128x1xf32> to vector<128x128xf32>
    %22 = arith.subf %4, %21 : vector<128x128xf32>
    %23 = vector.broadcast %20 : vector<128x1xf32> to vector<128x128xf32>
    %24 = arith.mulf %22, %23 : vector<128x128xf32>
    %25 = vector.broadcast %0 : vector<1x128xf32> to vector<128x128xf32>
    %26 = arith.mulf %24, %25 : vector<128x128xf32>
    %27 = vector.broadcast %1 : vector<1x128xf32> to vector<128x128xf32>
    %28 = arith.addf %26, %27 : vector<128x128xf32>
    %c0_11 = arith.constant 0 : index
    %c0_12 = arith.constant 0 : index
    %29 = vector.load %arg4[%c0_11, %c0_12] : memref<128x128xbf16, #tpu.memory_space<vmem>>, vector<128x128xbf16>
    %30 = arith.truncf %28 : vector<128x128xf32> to vector<128x128xbf16>
    %cst_13 = arith.constant dense<0.000000e+00> : vector<128x128xf32>
    %31 = tpu.matmul %29, %30, %cst_13 {dimension_numbers = #tpu.dot_dimension_numbers<[1], [0], [0], [1], [0, 0, 1, 1], [], []>} : vector<128x128xbf16>, vector<128x128xbf16>, vector<128x128xf32> -> vector<128x128xf32>
    %c0_14 = arith.constant 0 : index
    %c0_15 = arith.constant 0 : index
    %32 = vector.load %arg5[%c0_14, %c0_15] : memref<128x1xf32, #tpu.memory_space<vmem>>, vector<128x1xf32>
    %33 = vector.broadcast %32 : vector<128x1xf32> to vector<128x128xf32>
    %34 = arith.addf %31, %33 : vector<128x128xf32>
    %cst_16 = arith.constant 5.000000e-01 : f32
    %35 = vector.broadcast %cst_16 : f32 to vector<128x128xf32>
    %36 = arith.mulf %35, %34 : vector<128x128xf32>
    %cst_17 = arith.constant 0.707106769 : f32
    %37 = vector.broadcast %cst_17 : f32 to vector<128x128xf32>
    %38 = arith.mulf %34, %37 : vector<128x128xf32>
    %39 = math.erf %38 : vector<128x128xf32>
    %cst_18 = arith.constant 1.000000e+00 : f32
    %40 = vector.broadcast %cst_18 : f32 to vector<128x128xf32>
    %41 = arith.addf %40, %39 : vector<128x128xf32>
    %42 = arith.mulf %36, %41 : vector<128x128xf32>
    %c0_19 = arith.constant 0 : index
    %c0_20 = arith.constant 0 : index
    %43 = vector.load %arg6[%c0_19, %c0_20] : memref<128x128xbf16, #tpu.memory_space<vmem>>, vector<128x128xbf16>
    %44 = arith.truncf %42 : vector<128x128xf32> to vector<128x128xbf16>
    %cst_21 = arith.constant dense<0.000000e+00> : vector<128x128xf32>
    %45 = tpu.matmul %43, %44, %cst_21 {dimension_numbers = #tpu.dot_dimension_numbers<[1], [0], [0], [1], [0, 0, 1, 1], [], []>} : vector<128x128xbf16>, vector<128x128xbf16>, vector<128x128xf32> -> vector<128x128xf32>
    %46 = arith.addf %4, %45 : vector<128x128xf32>
    %c0_22 = arith.constant 0 : index
    %c0_23 = arith.constant 0 : index
    %47 = vector.load %arg7[%c0_22, %c0_23] : memref<128x1xf32, #tpu.memory_space<vmem>>, vector<128x1xf32>
    %48 = vector.broadcast %47 : vector<128x1xf32> to vector<128x128xf32>
    %49 = arith.addf %46, %48 : vector<128x128xf32>
    %c0_24 = arith.constant 0 : index
    %c0_25 = arith.constant 0 : index
    %50 = vector.load %arg15[%c0_24, %c0_25] : memref<128x128xf32, #tpu.memory_space<vmem>>, vector<128x128xf32>
    tpu.vector_store %arg15[%c0_24, %c0_25], %49 {strides = array<i32>} : memref<128x128xf32, #tpu.memory_space<vmem>>, vector<128x128xf32>,
    %c0_26 = arith.constant 0 : index
    %c0_27 = arith.constant 0 : index
    %51 = vector.load %arg15[%c0_26, %c0_27] : memref<128x128xf32, #tpu.memory_space<vmem>>, vector<128x128xf32>
    %c0_28 = arith.constant 0 : index
    %c0_29 = arith.constant 0 : index
    %52 = vector.load %arg8[%c0_28, %c0_29] : memref<1x128xf32, #tpu.memory_space<vmem>>, vector<1x128xf32>
    %c0_30 = arith.constant 0 : index
    %c0_31 = arith.constant 0 : index
    %53 = vector.load %arg9[%c0_30, %c0_31] : memref<1x128xf32, #tpu.memory_space<vmem>>, vector<1x128xf32>
    %cst_32 = arith.constant dense<0.000000e+00> : vector<128xf32>
    %54 = vector.multi_reduction <add>, %51, %cst_32 [1] : vector<128x128xf32> to vector<128xf32>
    %55 = vector.shape_cast %54 : vector<128xf32> to vector<128x1xf32>
    %56 = arith.mulf %51, %51 : vector<128x128xf32>
    %cst_33 = arith.constant dense<0.000000e+00> : vector<128xf32>
    %57 = vector.multi_reduction <add>, %56, %cst_33 [1] : vector<128x128xf32> to vector<128xf32>
    %58 = vector.shape_cast %57 : vector<128xf32> to vector<128x1xf32>
    %cst_34 = arith.constant 7.812500e-03 : f32
    %59 = vector.broadcast %cst_34 : f32 to vector<128x1xf32>
    %60 = arith.mulf %55, %59 : vector<128x1xf32>
    %cst_35 = arith.constant 7.812500e-03 : f32
    %61 = vector.broadcast %cst_35 : f32 to vector<128x1xf32>
    %62 = arith.mulf %58, %61 : vector<128x1xf32>
    %63 = arith.mulf %60, %60 : vector<128x1xf32>
    %64 = arith.subf %62, %63 : vector<128x1xf32>
    %cst_36 = arith.constant 0.000000e+00 : f32
    %65 = vector.broadcast %cst_36 : f32 to vector<128x1xf32>
    %66 = arith.maximumf %64, %65 : vector<128x1xf32>
    %cst_37 = arith.constant 9.99999974E-6 : f32
    %67 = vector.broadcast %cst_37 : f32 to vector<128x1xf32>
    %68 = arith.addf %66, %67 : vector<128x1xf32>
    %69 = math.rsqrt %68 : vector<128x1xf32>
    %70 = vector.broadcast %60 : vector<128x1xf32> to vector<128x128xf32>
    %71 = arith.subf %51, %70 : vector<128x128xf32>
    %72 = vector.broadcast %69 : vector<128x1xf32> to vector<128x128xf32>
    %73 = arith.mulf %71, %72 : vector<128x128xf32>
    %74 = vector.broadcast %52 : vector<1x128xf32> to vector<128x128xf32>
    %75 = arith.mulf %73, %74 : vector<128x128xf32>
    %76 = vector.broadcast %53 : vector<1x128xf32> to vector<128x128xf32>
    %77 = arith.addf %75, %76 : vector<128x128xf32>
    %78 = arith.truncf %77 : vector<128x128xf32> to vector<128x128xbf16>
    %c0_38 = arith.constant 0 : index
    %c0_39 = arith.constant 0 : index
    %79 = vector.load %arg10[%c0_38, %c0_39] : memref<128x256xbf16, #tpu.memory_space<vmem>>, vector<128x256xbf16>
    %cst_40 = arith.constant dense<0.000000e+00> : vector<128x256xf32>
    %80 = tpu.matmul %78, %79, %cst_40 {dimension_numbers = #tpu.dot_dimension_numbers<[1], [0], [0], [1], [0, 0, 1, 1], [], []>} : vector<128x128xbf16>, vector<128x256xbf16>, vector<128x256xf32> -> vector<128x256xf32>
    %c0_41 = arith.constant 0 : index
    %c0_42 = arith.constant 0 : index
    %81 = vector.load %arg11[%c0_41, %c0_42] : memref<1x256xf32, #tpu.memory_space<vmem>>, vector<1x256xf32>
    %82 = vector.broadcast %81 : vector<1x256xf32> to vector<128x256xf32>
    %83 = arith.addf %80, %82 : vector<128x256xf32>
    %cst_43 = arith.constant 5.000000e-01 : f32
    %84 = vector.broadcast %cst_43 : f32 to vector<128x256xf32>
    %85 = arith.mulf %84, %83 : vector<128x256xf32>
    %cst_44 = arith.constant 0.707106769 : f32
    %86 = vector.broadcast %cst_44 : f32 to vector<128x256xf32>
    %87 = arith.mulf %83, %86 : vector<128x256xf32>
    %88 = math.erf %87 : vector<128x256xf32>
    %cst_45 = arith.constant 1.000000e+00 : f32
    %89 = vector.broadcast %cst_45 : f32 to vector<128x256xf32>
    %90 = arith.addf %89, %88 : vector<128x256xf32>
    %91 = arith.mulf %85, %90 : vector<128x256xf32>
    %92 = arith.truncf %91 : vector<128x256xf32> to vector<128x256xbf16>
    %c0_46 = arith.constant 0 : index
    %c0_47 = arith.constant 0 : index
    %93 = vector.load %arg12[%c0_46, %c0_47] : memref<256x128xbf16, #tpu.memory_space<vmem>>, vector<256x128xbf16>
    %cst_48 = arith.constant dense<0.000000e+00> : vector<128x128xf32>
    %94 = tpu.matmul %92, %93, %cst_48 {dimension_numbers = #tpu.dot_dimension_numbers<[1], [0], [0], [1], [0, 0, 1, 1], [], []>} : vector<128x256xbf16>, vector<256x128xbf16>, vector<128x128xf32> -> vector<128x128xf32>
    %c0_49 = arith.constant 0 : index
    %c0_50 = arith.constant 0 : index
    %95 = vector.load %arg13[%c0_49, %c0_50] : memref<1x128xf32, #tpu.memory_space<vmem>>, vector<1x128xf32>
    %96 = vector.broadcast %95 : vector<1x128xf32> to vector<128x128xf32>
    %97 = arith.addf %94, %96 : vector<128x128xf32>
    %c0_51 = arith.constant 0 : index
    %c0_52 = arith.constant 0 : index
    %98 = vector.load %arg15[%c0_51, %c0_52] : memref<128x128xf32, #tpu.memory_space<vmem>>, vector<128x128xf32>
    %99 = arith.addf %98, %97 : vector<128x128xf32>
    %100 = vector.shape_cast %99 : vector<128x128xf32> to vector<1x128x128xf32>
    %101 = arith.truncf %100 : vector<1x128x128xf32> to vector<1x128x128xbf16>
    %c0_53 = arith.constant 0 : index
    %c0_54 = arith.constant 0 : index
    %c0_55 = arith.constant 0 : index
    %102 = vector.load %arg14[%c0_53, %c0_54, %c0_55] : memref<1x128x128xbf16, #tpu.memory_space<vmem>>, vector<1x128x128xbf16>
    tpu.vector_store %arg14[%c0_53, %c0_54, %c0_55], %101 {strides = array<i32>} : memref<1x128x128xbf16, #tpu.memory_space<vmem>>, vector<1x128x128xbf16>,
    return
  }
  func.func @transform_0(%arg0: i32) -> (i32, i32, i32) {
    %c0_i32 = arith.constant 0 : i32
    %c0_i32_0 = arith.constant 0 : i32
    %c0_i32_1 = arith.constant 0 : i32
    return %arg0, %c0_i32, %c0_i32_0 : i32, i32, i32
  }
  func.func @transform_1(%arg0: i32) -> (i32, i32) {
    %c0_i32 = arith.constant 0 : i32
    %c0_i32_0 = arith.constant 0 : i32
    %c0_i32_1 = arith.constant 0 : i32
    return %c0_i32, %c0_i32_0 : i32, i32
  }
  func.func @transform_2(%arg0: i32) -> (i32, i32) {
    %c0_i32 = arith.constant 0 : i32
    %c0_i32_0 = arith.constant 0 : i32
    %c0_i32_1 = arith.constant 0 : i32
    return %c0_i32, %c0_i32_0 : i32, i32
  }
  func.func @transform_3(%arg0: i32) -> (i32, i32) {
    %c0_i32 = arith.constant 0 : i32
    %c0_i32_0 = arith.constant 0 : i32
    %c0_i32_1 = arith.constant 0 : i32
    return %c0_i32, %c0_i32_0 : i32, i32
  }
  func.func @transform_4(%arg0: i32) -> (i32, i32) {
    %c0_i32 = arith.constant 0 : i32
    %c0_i32_0 = arith.constant 0 : i32
    %c0_i32_1 = arith.constant 0 : i32
    return %c0_i32, %c0_i32_0 : i32, i32
  }
  func.func @transform_5(%arg0: i32) -> (i32, i32) {
    %c0_i32 = arith.constant 0 : i32
    %c0_i32_0 = arith.constant 0 : i32
    %c0_i32_1 = arith.constant 0 : i32
    return %c0_i32, %c0_i32_0 : i32, i32
  }
  func.func @transform_6(%arg0: i32) -> (i32, i32) {
    %c0_i32 = arith.constant 0 : i32
    %c0_i32_0 = arith.constant 0 : i32
    %c0_i32_1 = arith.constant 0 : i32
    return %c0_i32, %c0_i32_0 : i32, i32
  }
  func.func @transform_7(%arg0: i32) -> (i32, i32) {
    %c0_i32 = arith.constant 0 : i32
    %c0_i32_0 = arith.constant 0 : i32
    %c0_i32_1 = arith.constant 0 : i32
    return %c0_i32, %c0_i32_0 : i32, i32
  }
  func.func @transform_8(%arg0: i32) -> (i32, i32) {
    %c0_i32 = arith.constant 0 : i32
    %c0_i32_0 = arith.constant 0 : i32
    %c0_i32_1 = arith.constant 0 : i32
    return %c0_i32, %c0_i32_0 : i32, i32
  }
  func.func @transform_9(%arg0: i32) -> (i32, i32) {
    %c0_i32 = arith.constant 0 : i32
    %c0_i32_0 = arith.constant 0 : i32
    %c0_i32_1 = arith.constant 0 : i32
    return %c0_i32, %c0_i32_0 : i32, i32
  }
  func.func @transform_10(%arg0: i32) -> (i32, i32) {
    %c0_i32 = arith.constant 0 : i32
    %c0_i32_0 = arith.constant 0 : i32
    %c0_i32_1 = arith.constant 0 : i32
    return %c0_i32, %c0_i32_0 : i32, i32
  }
  func.func @transform_11(%arg0: i32) -> (i32, i32) {
    %c0_i32 = arith.constant 0 : i32
    %c0_i32_0 = arith.constant 0 : i32
    %c0_i32_1 = arith.constant 0 : i32
    return %c0_i32, %c0_i32_0 : i32, i32
  }
  func.func @transform_12(%arg0: i32) -> (i32, i32) {
    %c0_i32 = arith.constant 0 : i32
    %c0_i32_0 = arith.constant 0 : i32
    %c0_i32_1 = arith.constant 0 : i32
    return %c0_i32, %c0_i32_0 : i32, i32
  }
  func.func @transform_13(%arg0: i32) -> (i32, i32, i32) {
    %c0_i32 = arith.constant 0 : i32
    %c0_i32_0 = arith.constant 0 : i32
    %c0_i32_1 = arith.constant 0 : i32
    return %arg0, %c0_i32, %c0_i32_0 : i32, i32, i32
  }
}

module attributes {stable_mosaic.version = 11 : i64} {
  func.func @mixer_block_kernel(%arg0: i32, %arg1: memref<1x128x128xbf16, #tpu.memory_space<vmem>>, %arg2: memref<1x128xf32, #tpu.memory_space<vmem>>, %arg3: memref<1x128xf32, #tpu.memory_space<vmem>>, %arg4: memref<128x128xbf16, #tpu.memory_space<vmem>>, %arg5: memref<128x1xf32, #tpu.memory_space<vmem>>, %arg6: memref<128x128xbf16, #tpu.memory_space<vmem>>, %arg7: memref<128x1xf32, #tpu.memory_space<vmem>>, %arg8: memref<1x128xf32, #tpu.memory_space<vmem>>, %arg9: memref<1x128xf32, #tpu.memory_space<vmem>>, %arg10: memref<128x256xbf16, #tpu.memory_space<vmem>>, %arg11: memref<1x256xf32, #tpu.memory_space<vmem>>, %arg12: memref<256x128xbf16, #tpu.memory_space<vmem>>, %arg13: memref<1x128xf32, #tpu.memory_space<vmem>>, %arg14: memref<1x128x128xbf16, #tpu.memory_space<vmem>>, %arg15: memref<128x128xf32, #tpu.memory_space<vmem>>) attributes {dimension_semantics = [#tpu.dimension_semantics<parallel>], iteration_bounds = array<i64: 8>, scalar_prefetch = 0 : i64, scratch_operands = 1 : i64, tpu.core_type = #tpu.core_type<tc>, window_params = [{transform_indices = @transform_0, window_bounds = array<i64: 1, 128, 128>}, {pipeline_mode = #tpu.pipeline_mode<synchronous>, transform_indices = @transform_1, window_bounds = array<i64: 1, 128>}, {pipeline_mode = #tpu.pipeline_mode<synchronous>, transform_indices = @transform_2, window_bounds = array<i64: 1, 128>}, {pipeline_mode = #tpu.pipeline_mode<synchronous>, transform_indices = @transform_3, window_bounds = array<i64: 128, 128>}, {pipeline_mode = #tpu.pipeline_mode<synchronous>, transform_indices = @transform_4, window_bounds = array<i64: 128, 1>}, {pipeline_mode = #tpu.pipeline_mode<synchronous>, transform_indices = @transform_5, window_bounds = array<i64: 128, 128>}, {pipeline_mode = #tpu.pipeline_mode<synchronous>, transform_indices = @transform_6, window_bounds = array<i64: 128, 1>}, {pipeline_mode = #tpu.pipeline_mode<synchronous>, transform_indices = @transform_7, window_bounds = array<i64: 1, 128>}, {pipeline_mode = #tpu.pipeline_mode<synchronous>, transform_indices = @transform_8, window_bounds = array<i64: 1, 128>}, {pipeline_mode = #tpu.pipeline_mode<synchronous>, transform_indices = @transform_9, window_bounds = array<i64: 128, 256>}, {pipeline_mode = #tpu.pipeline_mode<synchronous>, transform_indices = @transform_10, window_bounds = array<i64: 1, 256>}, {pipeline_mode = #tpu.pipeline_mode<synchronous>, transform_indices = @transform_11, window_bounds = array<i64: 256, 128>}, {pipeline_mode = #tpu.pipeline_mode<synchronous>, transform_indices = @transform_12, window_bounds = array<i64: 1, 128>}, {transform_indices = @transform_13, window_bounds = array<i64: 1, 128, 128>}]} {
    %c0 = arith.constant 0 : index
    %c0_0 = arith.constant 0 : index
    %0 = vector.load %arg2[%c0, %c0_0] : memref<1x128xf32, #tpu.memory_space<vmem>>, vector<1x128xf32>
    %c0_1 = arith.constant 0 : index
    %c0_2 = arith.constant 0 : index
    %1 = vector.load %arg3[%c0_1, %c0_2] : memref<1x128xf32, #tpu.memory_space<vmem>>, vector<1x128xf32>
    %c0_3 = arith.constant 0 : index
    %c0_4 = arith.constant 0 : index
    %c0_5 = arith.constant 0 : index
    %2 = vector.load %arg1[%c0_3, %c0_4, %c0_5] : memref<1x128x128xbf16, #tpu.memory_space<vmem>>, vector<1x128x128xbf16>
    %3 = vector.shape_cast %2 : vector<1x128x128xbf16> to vector<128x128xbf16>
    %4 = arith.extf %3 : vector<128x128xbf16> to vector<128x128xf32>
    %cst = arith.constant dense<0.000000e+00> : vector<128xf32>
    %5 = vector.multi_reduction <add>, %4, %cst [1] : vector<128x128xf32> to vector<128xf32>
    %6 = vector.shape_cast %5 : vector<128xf32> to vector<128x1xf32>
    %7 = arith.mulf %4, %4 : vector<128x128xf32>
    %cst_6 = arith.constant dense<0.000000e+00> : vector<128xf32>
    %8 = vector.multi_reduction <add>, %7, %cst_6 [1] : vector<128x128xf32> to vector<128xf32>
    %9 = vector.shape_cast %8 : vector<128xf32> to vector<128x1xf32>
    %cst_7 = arith.constant 7.812500e-03 : f32
    %10 = vector.broadcast %cst_7 : f32 to vector<128x1xf32>
    %11 = arith.mulf %6, %10 : vector<128x1xf32>
    %cst_8 = arith.constant 7.812500e-03 : f32
    %12 = vector.broadcast %cst_8 : f32 to vector<128x1xf32>
    %13 = arith.mulf %9, %12 : vector<128x1xf32>
    %14 = arith.mulf %11, %11 : vector<128x1xf32>
    %15 = arith.subf %13, %14 : vector<128x1xf32>
    %cst_9 = arith.constant 0.000000e+00 : f32
    %16 = vector.broadcast %cst_9 : f32 to vector<128x1xf32>
    %17 = arith.maximumf %15, %16 : vector<128x1xf32>
    %cst_10 = arith.constant 9.99999974E-6 : f32
    %18 = vector.broadcast %cst_10 : f32 to vector<128x1xf32>
    %19 = arith.addf %17, %18 : vector<128x1xf32>
    %20 = math.rsqrt %19 : vector<128x1xf32>
    %21 = vector.broadcast %11 : vector<128x1xf32> to vector<128x128xf32>
    %22 = arith.subf %4, %21 : vector<128x128xf32>
    %23 = vector.broadcast %20 : vector<128x1xf32> to vector<128x128xf32>
    %24 = arith.mulf %22, %23 : vector<128x128xf32>
    %25 = vector.broadcast %0 : vector<1x128xf32> to vector<128x128xf32>
    %26 = arith.mulf %24, %25 : vector<128x128xf32>
    %27 = vector.broadcast %1 : vector<1x128xf32> to vector<128x128xf32>
    %28 = arith.addf %26, %27 : vector<128x128xf32>
    %c0_11 = arith.constant 0 : index
    %c0_12 = arith.constant 0 : index
    %29 = vector.load %arg4[%c0_11, %c0_12] : memref<128x128xbf16, #tpu.memory_space<vmem>>, vector<128x128xbf16>
    %30 = arith.truncf %28 : vector<128x128xf32> to vector<128x128xbf16>
    %cst_13 = arith.constant dense<0.000000e+00> : vector<128x128xf32>
    %31 = tpu.matmul %29, %30, %cst_13 {dimension_numbers = #tpu.dot_dimension_numbers<[1], [0], [0], [1], [0, 0, 1, 1], [], []>} : vector<128x128xbf16>, vector<128x128xbf16>, vector<128x128xf32> -> vector<128x128xf32>
    %c0_14 = arith.constant 0 : index
    %c0_15 = arith.constant 0 : index
    %32 = vector.load %arg5[%c0_14, %c0_15] : memref<128x1xf32, #tpu.memory_space<vmem>>, vector<128x1xf32>
    %33 = vector.broadcast %32 : vector<128x1xf32> to vector<128x128xf32>
    %34 = arith.addf %31, %33 : vector<128x128xf32>
    %cst_16 = arith.constant 5.000000e-01 : f32
    %35 = vector.broadcast %cst_16 : f32 to vector<128x128xf32>
    %36 = arith.mulf %35, %34 : vector<128x128xf32>
    %cst_17 = arith.constant 0.707106769 : f32
    %37 = vector.broadcast %cst_17 : f32 to vector<128x128xf32>
    %38 = arith.mulf %34, %37 : vector<128x128xf32>
    %39 = math.erf %38 : vector<128x128xf32>
    %cst_18 = arith.constant 1.000000e+00 : f32
    %40 = vector.broadcast %cst_18 : f32 to vector<128x128xf32>
    %41 = arith.addf %40, %39 : vector<128x128xf32>
    %42 = arith.mulf %36, %41 : vector<128x128xf32>
    %c0_19 = arith.constant 0 : index
    %c0_20 = arith.constant 0 : index
    %43 = vector.load %arg6[%c0_19, %c0_20] : memref<128x128xbf16, #tpu.memory_space<vmem>>, vector<128x128xbf16>
    %44 = arith.truncf %42 : vector<128x128xf32> to vector<128x128xbf16>
    %cst_21 = arith.constant dense<0.000000e+00> : vector<128x128xf32>
    %45 = tpu.matmul %43, %44, %cst_21 {dimension_numbers = #tpu.dot_dimension_numbers<[1], [0], [0], [1], [0, 0, 1, 1], [], []>} : vector<128x128xbf16>, vector<128x128xbf16>, vector<128x128xf32> -> vector<128x128xf32>
    %46 = arith.addf %4, %45 : vector<128x128xf32>
    %c0_22 = arith.constant 0 : index
    %c0_23 = arith.constant 0 : index
    %47 = vector.load %arg7[%c0_22, %c0_23] : memref<128x1xf32, #tpu.memory_space<vmem>>, vector<128x1xf32>
    %48 = vector.broadcast %47 : vector<128x1xf32> to vector<128x128xf32>
    %49 = arith.addf %46, %48 : vector<128x128xf32>
    %c0_24 = arith.constant 0 : index
    %c0_25 = arith.constant 0 : index
    %50 = vector.load %arg15[%c0_24, %c0_25] : memref<128x128xf32, #tpu.memory_space<vmem>>, vector<128x128xf32>
    tpu.vector_store %arg15[%c0_24, %c0_25], %49 {strides = array<i32>} : memref<128x128xf32, #tpu.memory_space<vmem>>, vector<128x128xf32>,
    %c0_26 = arith.constant 0 : index
    %c0_27 = arith.constant 0 : index
    %51 = vector.load %arg15[%c0_26, %c0_27] : memref<128x128xf32, #tpu.memory_space<vmem>>, vector<128x128xf32>
    %c0_28 = arith.constant 0 : index
    %c0_29 = arith.constant 0 : index
    %52 = vector.load %arg8[%c0_28, %c0_29] : memref<1x128xf32, #tpu.memory_space<vmem>>, vector<1x128xf32>
    %c0_30 = arith.constant 0 : index
    %c0_31 = arith.constant 0 : index
    %53 = vector.load %arg9[%c0_30, %c0_31] : memref<1x128xf32, #tpu.memory_space<vmem>>, vector<1x128xf32>
    %cst_32 = arith.constant dense<0.000000e+00> : vector<128xf32>
    %54 = vector.multi_reduction <add>, %51, %cst_32 [1] : vector<128x128xf32> to vector<128xf32>
    %55 = vector.shape_cast %54 : vector<128xf32> to vector<128x1xf32>
    %56 = arith.mulf %51, %51 : vector<128x128xf32>
    %cst_33 = arith.constant dense<0.000000e+00> : vector<128xf32>
    %57 = vector.multi_reduction <add>, %56, %cst_33 [1] : vector<128x128xf32> to vector<128xf32>
    %58 = vector.shape_cast %57 : vector<128xf32> to vector<128x1xf32>
    %cst_34 = arith.constant 7.812500e-03 : f32
    %59 = vector.broadcast %cst_34 : f32 to vector<128x1xf32>
    %60 = arith.mulf %55, %59 : vector<128x1xf32>
    %cst_35 = arith.constant 7.812500e-03 : f32
    %61 = vector.broadcast %cst_35 : f32 to vector<128x1xf32>
    %62 = arith.mulf %58, %61 : vector<128x1xf32>
    %63 = arith.mulf %60, %60 : vector<128x1xf32>
    %64 = arith.subf %62, %63 : vector<128x1xf32>
    %cst_36 = arith.constant 0.000000e+00 : f32
    %65 = vector.broadcast %cst_36 : f32 to vector<128x1xf32>
    %66 = arith.maximumf %64, %65 : vector<128x1xf32>
    %cst_37 = arith.constant 9.99999974E-6 : f32
    %67 = vector.broadcast %cst_37 : f32 to vector<128x1xf32>
    %68 = arith.addf %66, %67 : vector<128x1xf32>
    %69 = math.rsqrt %68 : vector<128x1xf32>
    %70 = vector.broadcast %60 : vector<128x1xf32> to vector<128x128xf32>
    %71 = arith.subf %51, %70 : vector<128x128xf32>
    %72 = vector.broadcast %69 : vector<128x1xf32> to vector<128x128xf32>
    %73 = arith.mulf %71, %72 : vector<128x128xf32>
    %74 = vector.broadcast %52 : vector<1x128xf32> to vector<128x128xf32>
    %75 = arith.mulf %73, %74 : vector<128x128xf32>
    %76 = vector.broadcast %53 : vector<1x128xf32> to vector<128x128xf32>
    %77 = arith.addf %75, %76 : vector<128x128xf32>
    %78 = arith.truncf %77 : vector<128x128xf32> to vector<128x128xbf16>
    %c0_38 = arith.constant 0 : index
    %c0_39 = arith.constant 0 : index
    %79 = vector.load %arg10[%c0_38, %c0_39] : memref<128x256xbf16, #tpu.memory_space<vmem>>, vector<128x256xbf16>
    %cst_40 = arith.constant dense<0.000000e+00> : vector<128x256xf32>
    %80 = tpu.matmul %78, %79, %cst_40 {dimension_numbers = #tpu.dot_dimension_numbers<[1], [0], [0], [1], [0, 0, 1, 1], [], []>} : vector<128x128xbf16>, vector<128x256xbf16>, vector<128x256xf32> -> vector<128x256xf32>
    %c0_41 = arith.constant 0 : index
    %c0_42 = arith.constant 0 : index
    %81 = vector.load %arg11[%c0_41, %c0_42] : memref<1x256xf32, #tpu.memory_space<vmem>>, vector<1x256xf32>
    %82 = vector.broadcast %81 : vector<1x256xf32> to vector<128x256xf32>
    %83 = arith.addf %80, %82 : vector<128x256xf32>
    %cst_43 = arith.constant 5.000000e-01 : f32
    %84 = vector.broadcast %cst_43 : f32 to vector<128x256xf32>
    %85 = arith.mulf %84, %83 : vector<128x256xf32>
    %cst_44 = arith.constant 0.707106769 : f32
    %86 = vector.broadcast %cst_44 : f32 to vector<128x256xf32>
    %87 = arith.mulf %83, %86 : vector<128x256xf32>
    %88 = math.erf %87 : vector<128x256xf32>
    %cst_45 = arith.constant 1.000000e+00 : f32
    %89 = vector.broadcast %cst_45 : f32 to vector<128x256xf32>
    %90 = arith.addf %89, %88 : vector<128x256xf32>
    %91 = arith.mulf %85, %90 : vector<128x256xf32>
    %92 = arith.truncf %91 : vector<128x256xf32> to vector<128x256xbf16>
    %c0_46 = arith.constant 0 : index
    %c0_47 = arith.constant 0 : index
    %93 = vector.load %arg12[%c0_46, %c0_47] : memref<256x128xbf16, #tpu.memory_space<vmem>>, vector<256x128xbf16>
    %cst_48 = arith.constant dense<0.000000e+00> : vector<128x128xf32>
    %94 = tpu.matmul %92, %93, %cst_48 {dimension_numbers = #tpu.dot_dimension_numbers<[1], [0], [0], [1], [0, 0, 1, 1], [], []>} : vector<128x256xbf16>, vector<256x128xbf16>, vector<128x128xf32> -> vector<128x128xf32>
    %c0_49 = arith.constant 0 : index
    %c0_50 = arith.constant 0 : index
    %95 = vector.load %arg13[%c0_49, %c0_50] : memref<1x128xf32, #tpu.memory_space<vmem>>, vector<1x128xf32>
    %96 = vector.broadcast %95 : vector<1x128xf32> to vector<128x128xf32>
    %97 = arith.addf %94, %96 : vector<128x128xf32>
    %c0_51 = arith.constant 0 : index
    %c0_52 = arith.constant 0 : index
    %98 = vector.load %arg15[%c0_51, %c0_52] : memref<128x128xf32, #tpu.memory_space<vmem>>, vector<128x128xf32>
    %99 = arith.addf %98, %97 : vector<128x128xf32>
    %100 = vector.shape_cast %99 : vector<128x128xf32> to vector<1x128x128xf32>
    %101 = arith.truncf %100 : vector<1x128x128xf32> to vector<1x128x128xbf16>
    %c0_53 = arith.constant 0 : index
    %c0_54 = arith.constant 0 : index
    %c0_55 = arith.constant 0 : index
    %102 = vector.load %arg14[%c0_53, %c0_54, %c0_55] : memref<1x128x128xbf16, #tpu.memory_space<vmem>>, vector<1x128x128xbf16>
    tpu.vector_store %arg14[%c0_53, %c0_54, %c0_55], %101 {strides = array<i32>} : memref<1x128x128xbf16, #tpu.memory_space<vmem>>, vector<1x128x128xbf16>,
    return
  }
  func.func @transform_0(%arg0: i32) -> (i32, i32, i32) {
    %c0_i32 = arith.constant 0 : i32
    %c0_i32_0 = arith.constant 0 : i32
    %c0_i32_1 = arith.constant 0 : i32
    return %arg0, %c0_i32, %c0_i32_0 : i32, i32, i32
  }
  func.func @transform_1(%arg0: i32) -> (i32, i32) {
    %c0_i32 = arith.constant 0 : i32
    %c0_i32_0 = arith.constant 0 : i32
    %c0_i32_1 = arith.constant 0 : i32
    return %c0_i32, %c0_i32_0 : i32, i32
  }
  func.func @transform_2(%arg0: i32) -> (i32, i32) {
    %c0_i32 = arith.constant 0 : i32
    %c0_i32_0 = arith.constant 0 : i32
    %c0_i32_1 = arith.constant 0 : i32
    return %c0_i32, %c0_i32_0 : i32, i32
  }
  func.func @transform_3(%arg0: i32) -> (i32, i32) {
    %c0_i32 = arith.constant 0 : i32
    %c0_i32_0 = arith.constant 0 : i32
    %c0_i32_1 = arith.constant 0 : i32
    return %c0_i32, %c0_i32_0 : i32, i32
  }
  func.func @transform_4(%arg0: i32) -> (i32, i32) {
    %c0_i32 = arith.constant 0 : i32
    %c0_i32_0 = arith.constant 0 : i32
    %c0_i32_1 = arith.constant 0 : i32
    return %c0_i32, %c0_i32_0 : i32, i32
  }
  func.func @transform_5(%arg0: i32) -> (i32, i32) {
    %c0_i32 = arith.constant 0 : i32
    %c0_i32_0 = arith.constant 0 : i32
    %c0_i32_1 = arith.constant 0 : i32
    return %c0_i32, %c0_i32_0 : i32, i32
  }
  func.func @transform_6(%arg0: i32) -> (i32, i32) {
    %c0_i32 = arith.constant 0 : i32
    %c0_i32_0 = arith.constant 0 : i32
    %c0_i32_1 = arith.constant 0 : i32
    return %c0_i32, %c0_i32_0 : i32, i32
  }
  func.func @transform_7(%arg0: i32) -> (i32, i32) {
    %c0_i32 = arith.constant 0 : i32
    %c0_i32_0 = arith.constant 0 : i32
    %c0_i32_1 = arith.constant 0 : i32
    return %c0_i32, %c0_i32_0 : i32, i32
  }
  func.func @transform_8(%arg0: i32) -> (i32, i32) {
    %c0_i32 = arith.constant 0 : i32
    %c0_i32_0 = arith.constant 0 : i32
    %c0_i32_1 = arith.constant 0 : i32
    return %c0_i32, %c0_i32_0 : i32, i32
  }
  func.func @transform_9(%arg0: i32) -> (i32, i32) {
    %c0_i32 = arith.constant 0 : i32
    %c0_i32_0 = arith.constant 0 : i32
    %c0_i32_1 = arith.constant 0 : i32
    return %c0_i32, %c0_i32_0 : i32, i32
  }
  func.func @transform_10(%arg0: i32) -> (i32, i32) {
    %c0_i32 = arith.constant 0 : i32
    %c0_i32_0 = arith.constant 0 : i32
    %c0_i32_1 = arith.constant 0 : i32
    return %c0_i32, %c0_i32_0 : i32, i32
  }
  func.func @transform_11(%arg0: i32) -> (i32, i32) {
    %c0_i32 = arith.constant 0 : i32
    %c0_i32_0 = arith.constant 0 : i32
    %c0_i32_1 = arith.constant 0 : i32
    return %c0_i32, %c0_i32_0 : i32, i32
  }
  func.func @transform_12(%arg0: i32) -> (i32, i32) {
    %c0_i32 = arith.constant 0 : i32
    %c0_i32_0 = arith.constant 0 : i32
    %c0_i32_1 = arith.constant 0 : i32
    return %c0_i32, %c0_i32_0 : i32, i32
  }
  func.func @transform_13(%arg0: i32) -> (i32, i32, i32) {
    %c0_i32 = arith.constant 0 : i32
    %c0_i32_0 = arith.constant 0 : i32
    %c0_i32_1 = arith.constant 0 : i32
    return %arg0, %c0_i32, %c0_i32_0 : i32, i32, i32
  }
}

</mosaic_0001>

<llo_original>
// kernel: tpu_custom_call.1
$region0: #{tpu_custom_call.1}
  #allocation0 [shape = 'u32[]', space=smem, size = 0x4, offset = 0x4, fixed_abs, tag = 'smem constant byte address 0x4 - core index']
  #allocation1 [shape = 'u32[144,128]{1,0:T(1,128)}', space=vmem, size = 0x12000, scoped, tag = 'internal scratch']
  #allocation2 [shape = 'f32[128,128]{1,0:T(8,128)}', space=vmem, size = 0x10000, scoped, tag = 'scratch operand']
  %s0 = inlined_call_operand.hbm [shape: bf16[8,128,128], index: 0, kind: input, shape index: {}]
  %s1 = inlined_call_operand.vmem [shape: f32[1,128], index: 1, kind: input, shape index: {}]
  %s2 = inlined_call_operand.vmem [shape: f32[1,128], index: 2, kind: input, shape index: {}]
  %s3 = inlined_call_operand.hbm [shape: bf16[128,128], index: 3, kind: input, shape index: {}]
  %s4 = inlined_call_operand.vmem [shape: f32[128,1], index: 4, kind: input, shape index: {}]
  %s5 = inlined_call_operand.hbm [shape: bf16[128,128], index: 5, kind: input, shape index: {}]
  %s6 = inlined_call_operand.vmem [shape: f32[128,1], index: 6, kind: input, shape index: {}]
  %s7 = inlined_call_operand.vmem [shape: f32[1,128], index: 7, kind: input, shape index: {}]
  %s8 = inlined_call_operand.vmem [shape: f32[1,128], index: 8, kind: input, shape index: {}]
  %s9 = inlined_call_operand.vmem [shape: bf16[128,256], index: 9, kind: input, shape index: {}]
  %s10 = inlined_call_operand.vmem [shape: f32[1,256], index: 10, kind: input, shape index: {}]
  %s11 = inlined_call_operand.vmem [shape: bf16[256,128], index: 11, kind: input, shape index: {}]
  %s12 = inlined_call_operand.vmem [shape: f32[1,128], index: 12, kind: input, shape index: {}]
  %s13 = inlined_call_operand.hbm [shape: bf16[8,128,128], index: 13, kind: output, shape index: {}]
  %s14 = sld [smem:[#allocation0]]
  $region97: #{tpu_custom_call.1} parent=0
    _
  %s16 = ssub.s32 1, %s14
  %s17 = scalar_select 0, %s16, %s14
  $region1: #{tpu_custom_call.1} parent=0
    #allocation3 [shape = 'u8[65536]{0}', space=vmem, size = 0x10000, scoped, tag = 'input window, operand 0']
    #allocation4 [shape = 's32[2]{0}', space=sflag, size = 0x8, scoped, tag = 'scoped memory for tpu_custom_call.1']
    #allocation5 [shape = 's32[2]{0}', space=sflag, size = 0x8, scoped, tag = 'scoped memory for tpu_custom_call.1']
    #allocation6 [shape = 'u8[32768]{0}', space=vmem, size = 0x8000, scoped, tag = 'input window, operand 3, single buffered']
    #allocation7 [shape = 's32[1]{0}', space=sflag, size = 0x4, scoped, tag = 'scoped memory for tpu_custom_call.1']
    #allocation8 [shape = 'u8[32768]{0}', space=vmem, size = 0x8000, scoped, tag = 'input window, operand 5, single buffered']
    #allocation9 [shape = 'u8[65536]{0}', space=vmem, size = 0x10000, scoped, tag = 'output window, operand 0']
    %18 = vsyncpa [#allocation4], 0
    %s19 = scalar_lea.sflag [#allocation4], 1
    %20 = vsyncpa %s19, 0
    %21 = vsyncpa [#allocation7], 0
    %22 = vsyncpa [#allocation5], 0
    %s23 = scalar_lea.sflag [#allocation5], 1
    %24 = vsyncpa %s23, 0
    loop: start=0, step=1, limit=10
    $region2: #{tpu_custom_call.1} parent=1 // loop_pre_header
      _
    $region3: #{tpu_custom_call.1} parent=1 // loop_header
      %s26 = sphi 0, %s30
      %p27 = scmp.ge.s32.totalorder %s26, 10
      %s36 = sphi 0, %s38
      %s39 = sphi 0, %s36
      %s40 = sphi 0, %s39
      %s56 = sphi 0, %s40
      %s60 = sphi 0, %s60
      %s62 = sphi 0, %s60
      %s63 = sphi 0, %s62
      %s77 = sphi 0, %s63
      %s81 = sphi 0, %s81
      %s83 = sphi 0, %s81
      %s84 = sphi 0, %s83
      %s98 = sphi 0, %s84
      %s102 = sphi 0, %s102
      %s104 = sphi 0, %s102
      %s105 = sphi 0, %s104
      %s119 = sphi 0, %s105
      %s123 = sphi 0, %s123
      %s125 = sphi 0, %s123
      %s126 = sphi 0, %s125
      %s140 = sphi 0, %s126
      %s144 = sphi 0, %s144
      %s146 = sphi 0, %s144
      %s147 = sphi 0, %s146
      %s161 = sphi 0, %s147
      %s165 = sphi 0, %s165
      %s167 = sphi 0, %s165
      %s168 = sphi 0, %s167
      %s182 = sphi 0, %s168
      %s186 = sphi 0, %s186
      %s188 = sphi 0, %s186
      %s189 = sphi 0, %s188
      %s203 = sphi 0, %s189
      %s207 = sphi 0, %s207
      %s209 = sphi 0, %s207
      %s210 = sphi 0, %s209
      %s224 = sphi 0, %s210
      %s228 = sphi 0, %s228
      %s230 = sphi 0, %s228
      %s231 = sphi 0, %s230
      %s245 = sphi 0, %s231
      %s249 = sphi 0, %s249
      %s251 = sphi 0, %s249
      %s252 = sphi 0, %s251
      %s266 = sphi 0, %s252
      %s270 = sphi 0, %s270
      %s272 = sphi 0, %s270
      %s273 = sphi 0, %s272
      %s287 = sphi 0, %s273
      %s291 = sphi 0, %s291
      %s293 = sphi 0, %s291
      %s294 = sphi 0, %s293
      %s308 = sphi 0, %s294
      %s314 = sphi 0, %s316
      %s317 = sphi 0, %s314
      %s318 = sphi 0, %s317
      %s334 = sphi 0, %s318
    $region4: #{tpu_custom_call.1} parent=1 // loop_header_branch
      %29 = sbr.rel (%p27) target = $region8
    $region5: #{tpu_custom_call.1} parent=1 // loop_body
      %s31 = ssub.s32 %s26, 1
      %s32 = ssub.s32 %s26, 2
      %s33 = sadd.s32 %s26, 1
      %s34 = ssub.s32 %s26, %s33
      %p35 = scmp.eq.s32.totalorder %s34, 0
      %s37 = sadd.s32 %s36, 1
      %s38 = scalar_select %p35, %s36, %s37
      %p41 = pneg %p35
      %p42 = scmp.eq.s32.totalorder %s26, 7
      %p43 = por %p41, %p42
      %p44 = scmp.ne.s32.totalorder %s36, %s39
      %p45 = scmp.eq.s32.totalorder %s26, 0
      %p46 = por %p44, %p45
      %p47 = scmp.ne.s32.totalorder %s36, %s39
      %p48 = scmp.eq.s32.totalorder %s31, 7
      %p49 = por %p47, %p48
      %p50 = scmp.ne.s32.totalorder %s39, %s40
      %p51 = scmp.eq.s32.totalorder %s31, 0
      %p52 = por %p50, %p51
      %p53 = scmp.ne.s32.totalorder %s39, %s40
      %p54 = scmp.eq.s32.totalorder %s32, 7
      %p55 = por %p53, %p54
      %p57 = scmp.ne.s32.totalorder %s40, %s56
      %p58 = scmp.eq.s32.totalorder %s32, 0
      %p59 = por %p57, %p58
      %s61 = sadd.s32 %s60, 1
      %p64 = scmp.eq.s32.totalorder %s26, 7
      %p65 = scmp.ne.s32.totalorder %s60, %s62
      %p66 = scmp.eq.s32.totalorder %s26, 0
      %p67 = por %p65, %p66
      %p68 = scmp.ne.s32.totalorder %s60, %s62
      %p69 = scmp.eq.s32.totalorder %s31, 7
      %p70 = por %p68, %p69
      %p71 = scmp.ne.s32.totalorder %s62, %s63
      %p72 = scmp.eq.s32.totalorder %s31, 0
      %p73 = por %p71, %p72
      %p74 = scmp.ne.s32.totalorder %s62, %s63
      %p75 = scmp.eq.s32.totalorder %s32, 7
      %p76 = por %p74, %p75
      %p78 = scmp.ne.s32.totalorder %s63, %s77
      %p79 = scmp.eq.s32.totalorder %s32, 0
      %p80 = por %p78, %p79
      %s82 = sadd.s32 %s81, 1
      %p85 = scmp.eq.s32.totalorder %s26, 7
      %p86 = scmp.ne.s32.totalorder %s81, %s83
      %p87 = scmp.eq.s32.totalorder %s26, 0
      %p88 = por %p86, %p87
      %p89 = scmp.ne.s32.totalorder %s81, %s83
      %p90 = scmp.eq.s32.totalorder %s31, 7
      %p91 = por %p89, %p90
      %p92 = scmp.ne.s32.totalorder %s83, %s84
      %p93 = scmp.eq.s32.totalorder %s31, 0
      %p94 = por %p92, %p93
      %p95 = scmp.ne.s32.totalorder %s83, %s84
      %p96 = scmp.eq.s32.totalorder %s32, 7
      %p97 = por %p95, %p96
      %p99 = scmp.ne.s32.totalorder %s84, %s98
      %p100 = scmp.eq.s32.totalorder %s32, 0
      %p101 = por %p99, %p100
      %s103 = sadd.s32 %s102, 1
      %p106 = scmp.eq.s32.totalorder %s26, 7
      %p107 = scmp.ne.s32.totalorder %s102, %s104
      %p108 = scmp.eq.s32.totalorder %s26, 0
      %p109 = por %p107, %p108
      %p110 = scmp.ne.s32.totalorder %s102, %s104
      %p111 = scmp.eq.s32.totalorder %s31, 7
      %p112 = por %p110, %p111
      %p113 = scmp.ne.s32.totalorder %s104, %s105
      %p114 = scmp.eq.s32.totalorder %s31, 0
      %p115 = por %p113, %p114
      %p116 = scmp.ne.s32.totalorder %s104, %s105
      %p117 = scmp.eq.s32.totalorder %s32, 7
      %p118 = por %p116, %p117
      %p120 = scmp.ne.s32.totalorder %s105, %s119
      %p121 = scmp.eq.s32.totalorder %s32, 0
      %p122 = por %p120, %p121
      %s124 = sadd.s32 %s123, 1
      %p127 = scmp.eq.s32.totalorder %s26, 7
      %p128 = scmp.ne.s32.totalorder %s123, %s125
      %p129 = scmp.eq.s32.totalorder %s26, 0
      %p130 = por %p128, %p129
      %p131 = scmp.ne.s32.totalorder %s123, %s125
      %p132 = scmp.eq.s32.totalorder %s31, 7
      %p133 = por %p131, %p132
      %p134 = scmp.ne.s32.totalorder %s125, %s126
      %p135 = scmp.eq.s32.totalorder %s31, 0
      %p136 = por %p134, %p135
      %p137 = scmp.ne.s32.totalorder %s125, %s126
      %p138 = scmp.eq.s32.totalorder %s32, 7
      %p139 = por %p137, %p138
      %p141 = scmp.ne.s32.totalorder %s126, %s140
      %p142 = scmp.eq.s32.totalorder %s32, 0
      %p143 = por %p141, %p142
      %s145 = sadd.s32 %s144, 1
      %p148 = scmp.eq.s32.totalorder %s26, 7
      %p149 = scmp.ne.s32.totalorder %s144, %s146
      %p150 = scmp.eq.s32.totalorder %s26, 0
      %p151 = por %p149, %p150
      %p152 = scmp.ne.s32.totalorder %s144, %s146
      %p153 = scmp.eq.s32.totalorder %s31, 7
      %p154 = por %p152, %p153
      %p155 = scmp.ne.s32.totalorder %s146, %s147
      %p156 = scmp.eq.s32.totalorder %s31, 0
      %p157 = por %p155, %p156
      %p158 = scmp.ne.s32.totalorder %s146, %s147
      %p159 = scmp.eq.s32.totalorder %s32, 7
      %p160 = por %p158, %p159
      %p162 = scmp.ne.s32.totalorder %s147, %s161
      %p163 = scmp.eq.s32.totalorder %s32, 0
      %p164 = por %p162, %p163
      %s166 = sadd.s32 %s165, 1
      %p169 = scmp.eq.s32.totalorder %s26, 7
      %p170 = scmp.ne.s32.totalorder %s165, %s167
      %p171 = scmp.eq.s32.totalorder %s26, 0
      %p172 = por %p170, %p171
      %p173 = scmp.ne.s32.totalorder %s165, %s167
      %p174 = scmp.eq.s32.totalorder %s31, 7
      %p175 = por %p173, %p174
      %p176 = scmp.ne.s32.totalorder %s167, %s168
      %p177 = scmp.eq.s32.totalorder %s31, 0
      %p178 = por %p176, %p177
      %p179 = scmp.ne.s32.totalorder %s167, %s168
      %p180 = scmp.eq.s32.totalorder %s32, 7
      %p181 = por %p179, %p180
      %p183 = scmp.ne.s32.totalorder %s168, %s182
      %p184 = scmp.eq.s32.totalorder %s32, 0
      %p185 = por %p183, %p184
      %s187 = sadd.s32 %s186, 1
      %p190 = scmp.eq.s32.totalorder %s26, 7
      %p191 = scmp.ne.s32.totalorder %s186, %s188
      %p192 = scmp.eq.s32.totalorder %s26, 0
      %p193 = por %p191, %p192
      %p194 = scmp.ne.s32.totalorder %s186, %s188
      %p195 = scmp.eq.s32.totalorder %s31, 7
      %p196 = por %p194, %p195
      %p197 = scmp.ne.s32.totalorder %s188, %s189
      %p198 = scmp.eq.s32.totalorder %s31, 0
      %p199 = por %p197, %p198
      %p200 = scmp.ne.s32.totalorder %s188, %s189
      %p201 = scmp.eq.s32.totalorder %s32, 7
      %p202 = por %p200, %p201
      %p204 = scmp.ne.s32.totalorder %s189, %s203
      %p205 = scmp.eq.s32.totalorder %s32, 0
      %p206 = por %p204, %p205
      %s208 = sadd.s32 %s207, 1
      %p211 = scmp.eq.s32.totalorder %s26, 7
      %p212 = scmp.ne.s32.totalorder %s207, %s209
      %p213 = scmp.eq.s32.totalorder %s26, 0
      %p214 = por %p212, %p213
      %p215 = scmp.ne.s32.totalorder %s207, %s209
      %p216 = scmp.eq.s32.totalorder %s31, 7
      %p217 = por %p215, %p216
      %p218 = scmp.ne.s32.totalorder %s209, %s210
      %p219 = scmp.eq.s32.totalorder %s31, 0
      %p220 = por %p218, %p219
      %p221 = scmp.ne.s32.totalorder %s209, %s210
      %p222 = scmp.eq.s32.totalorder %s32, 7
      %p223 = por %p221, %p222
      %p225 = scmp.ne.s32.totalorder %s210, %s224
      %p226 = scmp.eq.s32.totalorder %s32, 0
      %p227 = por %p225, %p226
      %s229 = sadd.s32 %s228, 1
      %p232 = scmp.eq.s32.totalorder %s26, 7
      %p233 = scmp.ne.s32.totalorder %s228, %s230
      %p234 = scmp.eq.s32.totalorder %s26, 0
      %p235 = por %p233, %p234
      %p236 = scmp.ne.s32.totalorder %s228, %s230
      %p237 = scmp.eq.s32.totalorder %s31, 7
      %p238 = por %p236, %p237
      %p239 = scmp.ne.s32.totalorder %s230, %s231
      %p240 = scmp.eq.s32.totalorder %s31, 0
      %p241 = por %p239, %p240
      %p242 = scmp.ne.s32.totalorder %s230, %s231
      %p243 = scmp.eq.s32.totalorder %s32, 7
      %p244 = por %p242, %p243
      %p246 = scmp.ne.s32.totalorder %s231, %s245
      %p247 = scmp.eq.s32.totalorder %s32, 0
      %p248 = por %p246, %p247
      %s250 = sadd.s32 %s249, 1
      %p253 = scmp.eq.s32.totalorder %s26, 7
      %p254 = scmp.ne.s32.totalorder %s249, %s251
      %p255 = scmp.eq.s32.totalorder %s26, 0
      %p256 = por %p254, %p255
      %p257 = scmp.ne.s32.totalorder %s249, %s251
      %p258 = scmp.eq.s32.totalorder %s31, 7
      %p259 = por %p257, %p258
      %p260 = scmp.ne.s32.totalorder %s251, %s252
      %p261 = scmp.eq.s32.totalorder %s31, 0
      %p262 = por %p260, %p261
      %p263 = scmp.ne.s32.totalorder %s251, %s252
      %p264 = scmp.eq.s32.totalorder %s32, 7
      %p265 = por %p263, %p264
      %p267 = scmp.ne.s32.totalorder %s252, %s266
      %p268 = scmp.eq.s32.totalorder %s32, 0
      %p269 = por %p267, %p268
      %s271 = sadd.s32 %s270, 1
      %p274 = scmp.eq.s32.totalorder %s26, 7
      %p275 = scmp.ne.s32.totalorder %s270, %s272
      %p276 = scmp.eq.s32.totalorder %s26, 0
      %p277 = por %p275, %p276
      %p278 = scmp.ne.s32.totalorder %s270, %s272
      %p279 = scmp.eq.s32.totalorder %s31, 7
      %p280 = por %p278, %p279
      %p281 = scmp.ne.s32.totalorder %s272, %s273
      %p282 = scmp.eq.s32.totalorder %s31, 0
      %p283 = por %p281, %p282
      %p284 = scmp.ne.s32.totalorder %s272, %s273
      %p285 = scmp.eq.s32.totalorder %s32, 7
      %p286 = por %p284, %p285
      %p288 = scmp.ne.s32.totalorder %s273, %s287
      %p289 = scmp.eq.s32.totalorder %s32, 0
      %p290 = por %p288, %p289
      %s292 = sadd.s32 %s291, 1
      %p295 = scmp.eq.s32.totalorder %s26, 7
      %p296 = scmp.ne.s32.totalorder %s291, %s293
      %p297 = scmp.eq.s32.totalorder %s26, 0
      %p298 = por %p296, %p297
      %p299 = scmp.ne.s32.totalorder %s291, %s293
      %p300 = scmp.eq.s32.totalorder %s31, 7
      %p301 = por %p299, %p300
      %p302 = scmp.ne.s32.totalorder %s293, %s294
      %p303 = scmp.eq.s32.totalorder %s31, 0
      %p304 = por %p302, %p303
      %p305 = scmp.ne.s32.totalorder %s293, %s294
      %p306 = scmp.eq.s32.totalorder %s32, 7
      %p307 = por %p305, %p306
      %p309 = scmp.ne.s32.totalorder %s294, %s308
      %p310 = scmp.eq.s32.totalorder %s32, 0
      %p311 = por %p309, %p310
      %s312 = ssub.s32 %s26, %s33
      %p313 = scmp.eq.s32.totalorder %s312, 0
      %s315 = sadd.s32 %s314, 1
      %s316 = scalar_select %p313, %s314, %s315
      %p319 = pneg %p313
      %p320 = scmp.eq.s32.totalorder %s26, 7
      %p321 = por %p319, %p320
      %p322 = scmp.ne.s32.totalorder %s314, %s317
      %p323 = scmp.eq.s32.totalorder %s26, 0
      %p324 = por %p322, %p323
      %p325 = scmp.ne.s32.totalorder %s314, %s317
      %p326 = scmp.eq.s32.totalorder %s31, 7
      %p327 = por %p325, %p326
      %p328 = scmp.ne.s32.totalorder %s317, %s318
      %p329 = scmp.eq.s32.totalorder %s31, 0
      %p330 = por %p328, %p329
      %p331 = scmp.ne.s32.totalorder %s317, %s318
      %p332 = scmp.eq.s32.totalorder %s32, 7
      %p333 = por %p331, %p332
      %p335 = scmp.ne.s32.totalorder %s318, %s334
      %p336 = scmp.eq.s32.totalorder %s32, 0
      %p337 = por %p335, %p336
      %p338 = scmp.le.s32.totalorder 1, %s26
      %p339 = scmp.lt.s32.totalorder %s26, 9
      %p340 = pnand %p338, %p339
      %p341 = pneg %p340
      // Predicated region
      $region9: #{tpu_custom_call.1} parent=5 // pred_check
        _
      $region10: #{tpu_custom_call.1} parent=5 // pred_check_branch
        %343 = sbr.rel (%p340) target = $region12
      $region11: #{tpu_custom_call.1} parent=5 // pred_region
        %s344 = ssub.s32 %s26, 1
        // Predicated region
        $region13: #{tpu_custom_call.1} parent=11 // pred_check
          %p345 = pneg %p73
        $region14: #{tpu_custom_call.1} parent=11 // pred_check_branch
          %347 = sbr.rel (%p345) target = $region16
        $region15: #{tpu_custom_call.1} parent=11 // pred_region
          _
        $region16: #{tpu_custom_call.1} parent=11 // pred_fallthru
          _
        // Predicated region
        $region17: #{tpu_custom_call.1} parent=11 // pred_check
          %p348 = pneg %p94
        $region18: #{tpu_custom_call.1} parent=11 // pred_check_branch
          %350 = sbr.rel (%p348) target = $region20
        $region19: #{tpu_custom_call.1} parent=11 // pred_region
          _
        $region20: #{tpu_custom_call.1} parent=11 // pred_fallthru
          _
        // Predicated region
        $region21: #{tpu_custom_call.1} parent=11 // pred_check
          %p351 = pneg %p115
        $region22: #{tpu_custom_call.1} parent=11 // pred_check_branch
          %353 = sbr.rel (%p351) target = $region24
        $region23: #{tpu_custom_call.1} parent=11 // pred_region
          %s355 = ssub.s32 1024, 1024
          %356 = vsyncadd [#allocation7], %s355
          %s357 = sshll.u32 [#allocation6], 4
          %s358 = int_to_ptr.vmem [resolvable:$true] %s357
          %363 = dma.hbm_to_vmem [thread:$0]  %s3, 1024, %s358, [#allocation7], 64, 64, 4
        $region24: #{tpu_custom_call.1} parent=11 // pred_fallthru
          _
        // Predicated region
        $region25: #{tpu_custom_call.1} parent=11 // pred_check
          %p364 = pneg %p136
        $region26: #{tpu_custom_call.1} parent=11 // pred_check_branch
          %366 = sbr.rel (%p364) target = $region28
        $region27: #{tpu_custom_call.1} parent=11 // pred_region
          _
        $region28: #{tpu_custom_call.1} parent=11 // pred_fallthru
          _
        // Predicated region
        $region29: #{tpu_custom_call.1} parent=11 // pred_check
          %p367 = pneg %p157
        $region30: #{tpu_custom_call.1} parent=11 // pred_check_branch
          %369 = sbr.rel (%p367) target = $region32
        $region31: #{tpu_custom_call.1} parent=11 // pred_region
          %s371 = ssub.s32 1024, 1024
          %372 = vsyncadd [#allocation7], %s371
          %s373 = sshll.u32 [#allocation8], 4
          %s374 = int_to_ptr.vmem [resolvable:$true] %s373
          %379 = dma.hbm_to_vmem [thread:$0]  %s5, 1024, %s374, [#allocation7], 64, 64, 4
        $region32: #{tpu_custom_call.1} parent=11 // pred_fallthru
          _
        // Predicated region
        $region33: #{tpu_custom_call.1} parent=11 // pred_check
          %p380 = pneg %p178
        $region34: #{tpu_custom_call.1} parent=11 // pred_check_branch
          %382 = sbr.rel (%p380) target = $region36
        $region35: #{tpu_custom_call.1} parent=11 // pred_region
          _
        $region36: #{tpu_custom_call.1} parent=11 // pred_fallthru
          _
        // Predicated region
        $region37: #{tpu_custom_call.1} parent=11 // pred_check
          %p383 = pneg %p199
        $region38: #{tpu_custom_call.1} parent=11 // pred_check_branch
          %385 = sbr.rel (%p383) target = $region40
        $region39: #{tpu_custom_call.1} parent=11 // pred_region
          _
        $region40: #{tpu_custom_call.1} parent=11 // pred_fallthru
          _
        // Predicated region
        $region41: #{tpu_custom_call.1} parent=11 // pred_check
          %p386 = pneg %p220
        $region42: #{tpu_custom_call.1} parent=11 // pred_check_branch
          %388 = sbr.rel (%p386) target = $region44
        $region43: #{tpu_custom_call.1} parent=11 // pred_region
          _
        $region44: #{tpu_custom_call.1} parent=11 // pred_fallthru
          _
        // Predicated region
        $region45: #{tpu_custom_call.1} parent=11 // pred_check
          %p389 = pneg %p241
        $region46: #{tpu_custom_call.1} parent=11 // pred_check_branch
          %391 = sbr.rel (%p389) target = $region48
        $region47: #{tpu_custom_call.1} parent=11 // pred_region
          _
        $region48: #{tpu_custom_call.1} parent=11 // pred_fallthru
          _
        // Predicated region
        $region49: #{tpu_custom_call.1} parent=11 // pred_check
          %p392 = pneg %p262
        $region50: #{tpu_custom_call.1} parent=11 // pred_check_branch
          %394 = sbr.rel (%p392) target = $region52
        $region51: #{tpu_custom_call.1} parent=11 // pred_region
          _
        $region52: #{tpu_custom_call.1} parent=11 // pred_fallthru
          _
        // Predicated region
        $region53: #{tpu_custom_call.1} parent=11 // pred_check
          %p395 = pneg %p283
        $region54: #{tpu_custom_call.1} parent=11 // pred_check_branch
          %397 = sbr.rel (%p395) target = $region56
        $region55: #{tpu_custom_call.1} parent=11 // pred_region
          _
        $region56: #{tpu_custom_call.1} parent=11 // pred_fallthru
          _
        // Predicated region
        $region57: #{tpu_custom_call.1} parent=11 // pred_check
          %p398 = pneg %p304
        $region58: #{tpu_custom_call.1} parent=11 // pred_check_branch
          %400 = sbr.rel (%p398) target = $region60
        $region59: #{tpu_custom_call.1} parent=11 // pred_region
          _
        $region60: #{tpu_custom_call.1} parent=11 // pred_fallthru
          _
      $region12: #{tpu_custom_call.1} parent=5 // pred_fallthru
        _
      %p401 = scmp.lt.s32.totalorder %s26, 8
      // Predicated region
      $region61: #{tpu_custom_call.1} parent=5 // pred_check
        %p402 = pneg %p401
      $region62: #{tpu_custom_call.1} parent=5 // pred_check_branch
        %404 = sbr.rel (%p402) target = $region64
      $region63: #{tpu_custom_call.1} parent=5 // pred_region
        // Predicated region
        $region65: #{tpu_custom_call.1} parent=63 // pred_check
          %p405 = pneg %p46
        $region66: #{tpu_custom_call.1} parent=63 // pred_check_branch
          %407 = sbr.rel (%p405) target = $region68
        $region67: #{tpu_custom_call.1} parent=63 // pred_region
          %s408 = sand.u32 %s36, 1
          %s409 = scalar_lea.sflag [#allocation4], %s408
          %s410 = sand.u32 %s36, 1
          %s411 = smul.addr %s410, 64
          %s412 = scalar_lea.vmem [#allocation3], %s411
          %s414 = ssub.s32 1024, 1024
          %415 = vsyncadd %s409, %s414
          %s416 = smul.addr %s26, 16
          %s417 = smul.addr %s416, 64
          %s418 = scalar_lea.hbm %s0, %s417
          %s419 = sshll.u32 %s412, 4
          %s420 = int_to_ptr.vmem [resolvable:$true] %s419
          %425 = dma.hbm_to_vmem [thread:$0]  %s418, 1024, %s420, %s409, 64, 64, 4
        $region68: #{tpu_custom_call.1} parent=63 // pred_fallthru
          _
      $region64: #{tpu_custom_call.1} parent=5 // pred_fallthru
        _
      %p426 = scmp.le.s32.totalorder 1, %s26
      %p427 = scmp.lt.s32.totalorder %s26, 9
      %p428 = pnand %p426, %p427
      %p429 = pneg %p428
      // Predicated region
      $region69: #{tpu_custom_call.1} parent=5 // pred_check
        _
      $region70: #{tpu_custom_call.1} parent=5 // pred_check_branch
        %431 = sbr.rel (%p428) target = $region72
      $region71: #{tpu_custom_call.1} parent=5 // pred_region
        %s432 = ssub.s32 %s26, 1
        %s433 = sand.u32 %s39, 1
        %s434 = scalar_lea.sflag [#allocation4], %s433
        %s435 = sand.u32 %s39, 1
        %s436 = smul.addr %s435, 64
        %s437 = scalar_lea.vmem [#allocation3], %s436
        // Predicated region
        $region73: #{tpu_custom_call.1} parent=71 // pred_check
          %p438 = pneg %p52
        $region74: #{tpu_custom_call.1} parent=71 // pred_check_branch
          %440 = sbr.rel (%p438) target = $region76
        $region75: #{tpu_custom_call.1} parent=71 // pred_region
          %441 = dma.done %s434, 1024
        $region76: #{tpu_custom_call.1} parent=71 // pred_fallthru
          _
        // Predicated region
        $region77: #{tpu_custom_call.1} parent=71 // pred_check
          %p442 = pneg %p115
        $region78: #{tpu_custom_call.1} parent=71 // pred_check_branch
          %444 = sbr.rel (%p442) target = $region80
        $region79: #{tpu_custom_call.1} parent=71 // pred_region
          %445 = dma.done [#allocation7], 1024
        $region80: #{tpu_custom_call.1} parent=71 // pred_fallthru
          _
        // Predicated region
        $region81: #{tpu_custom_call.1} parent=71 // pred_check
          %p446 = pneg %p157
        $region82: #{tpu_custom_call.1} parent=71 // pred_check_branch
          %448 = sbr.rel (%p446) target = $region84
        $region83: #{tpu_custom_call.1} parent=71 // pred_region
          %449 = dma.done [#allocation7], 1024
        $region84: #{tpu_custom_call.1} parent=71 // pred_fallthru
          _
        %s450 = sand.u32 %s39, 1
        %s451 = scalar_lea.sflag [#allocation4], %s450
        %s452 = sand.u32 %s39, 1
        %s453 = smul.addr %s452, 64
        %s454 = scalar_lea.vmem [#allocation3], %s453
        %p455 = pneg %p52
        %p456 = pneg %p49
        %p457 = pneg %p73
        %p458 = pneg %p70
        %p459 = pneg %p94
        %p460 = pneg %p91
        %p461 = pneg %p115
        %p462 = pneg %p112
        %p463 = pneg %p136
        %p464 = pneg %p133
        %p465 = pneg %p157
        %p466 = pneg %p154
        %p467 = pneg %p178
        %p468 = pneg %p175
        %p469 = pneg %p199
        %p470 = pneg %p196
        %p471 = pneg %p220
        %p472 = pneg %p217
        %p473 = pneg %p241
        %p474 = pneg %p238
        %p475 = pneg %p262
        %p476 = pneg %p259
        %p477 = pneg %p283
        %p478 = pneg %p280
        %p479 = pneg %p304
        %p480 = pneg %p301
        %p481 = pneg %p330
        %p482 = pneg %p327
        %s483 = sand.u32 %s317, 1
        %s484 = scalar_lea.sflag [#allocation5], %s483
        %s485 = sand.u32 %s317, 1
        %s486 = smul.addr %s485, 64
        %s487 = scalar_lea.vmem [#allocation9], %s486
        %v489 = vld [vmem:[%s1] sm:$0x1]
        %v490 = vld [vmem:[%s2] sm:$0x1]
        %v491 = vld [vmem:[%s437] sm:$0xf]
        %v492 = vld [vmem:[%s437 + $0x4] sm:$0xf]
        %v493 = vld [vmem:[%s437 + $0x8] sm:$0xf]
        %v494 = vld [vmem:[%s437 + $0xc] sm:$0xf]
        %v495 = vld [vmem:[%s437 + $0x10] sm:$0xf]
        %v496 = vld [vmem:[%s437 + $0x14] sm:$0xf]
        %v497 = vld [vmem:[%s437 + $0x18] sm:$0xf]
        %v498 = vld [vmem:[%s437 + $0x1c] sm:$0xf]
        %v499 = vld [vmem:[%s437 + $0x20] sm:$0xf]
        %v500 = vld [vmem:[%s437 + $0x24] sm:$0xf]
        %v501 = vld [vmem:[%s437 + $0x28] sm:$0xf]
        %v502 = vld [vmem:[%s437 + $0x2c] sm:$0xf]
        %v503 = vld [vmem:[%s437 + $0x30] sm:$0xf]
        %v504 = vld [vmem:[%s437 + $0x34] sm:$0xf]
        %v505 = vld [vmem:[%s437 + $0x38] sm:$0xf]
        %v506 = vld [vmem:[%s437 + $0x3c] sm:$0xf]
        %v507 = vunpack.c.l.bf16 %v491
        %v508 = vunpack.c.l.bf16 %v492
        %v509 = vunpack.c.l.bf16 %v493
        %v510 = vunpack.c.l.bf16 %v494
        %v511 = vunpack.c.l.bf16 %v495
        %v512 = vunpack.c.l.bf16 %v496
        %v513 = vunpack.c.l.bf16 %v497
        %v514 = vunpack.c.l.bf16 %v498
        %v515 = vunpack.c.l.bf16 %v499
        %v516 = vunpack.c.l.bf16 %v500
        %v517 = vunpack.c.l.bf16 %v501
        %v518 = vunpack.c.l.bf16 %v502
        %v519 = vunpack.c.l.bf16 %v503
        %v520 = vunpack.c.l.bf16 %v504
        %v521 = vunpack.c.l.bf16 %v505
        %v522 = vunpack.c.l.bf16 %v506
        %523 = vadd.xlane.f32.xlu0 %v507
        %v524 = vpop.xlane.xlu0 %523
        %525 = vadd.xlane.f32.xlu0 %v508
        %v526 = vpop.xlane.xlu0 %525
        %527 = vadd.xlane.f32.xlu0 %v509
        %v528 = vpop.xlane.xlu0 %527
        %529 = vadd.xlane.f32.xlu0 %v510
        %v530 = vpop.xlane.xlu0 %529
        %531 = vadd.xlane.f32.xlu0 %v511
        %v532 = vpop.xlane.xlu0 %531
        %533 = vadd.xlane.f32.xlu0 %v512
        %v534 = vpop.xlane.xlu0 %533
        %535 = vadd.xlane.f32.xlu0 %v513
        %v536 = vpop.xlane.xlu0 %535
        %537 = vadd.xlane.f32.xlu0 %v514
        %v538 = vpop.xlane.xlu0 %537
        %539 = vadd.xlane.f32.xlu0 %v515
        %v540 = vpop.xlane.xlu0 %539
        %541 = vadd.xlane.f32.xlu0 %v516
        %v542 = vpop.xlane.xlu0 %541
        %543 = vadd.xlane.f32.xlu0 %v517
        %v544 = vpop.xlane.xlu0 %543
        %545 = vadd.xlane.f32.xlu0 %v518
        %v546 = vpop.xlane.xlu0 %545
        %547 = vadd.xlane.f32.xlu0 %v519
        %v548 = vpop.xlane.xlu0 %547
        %549 = vadd.xlane.f32.xlu0 %v520
        %v550 = vpop.xlane.xlu0 %549
        %551 = vadd.xlane.f32.xlu0 %v521
        %v552 = vpop.xlane.xlu0 %551
        %553 = vadd.xlane.f32.xlu0 %v522
        %v554 = vpop.xlane.xlu0 %553
        %v555 = vmul.f32 %v507, %v507
        %v556 = vmul.f32 %v508, %v508
        %v557 = vmul.f32 %v509, %v509
        %v558 = vmul.f32 %v510, %v510
        %v559 = vmul.f32 %v511, %v511
        %v560 = vmul.f32 %v512, %v512
        %v561 = vmul.f32 %v513, %v513
        %v562 = vmul.f32 %v514, %v514
        %v563 = vmul.f32 %v515, %v515
        %v564 = vmul.f32 %v516, %v516
        %v565 = vmul.f32 %v517, %v517
        %v566 = vmul.f32 %v518, %v518
        %v567 = vmul.f32 %v519, %v519
        %v568 = vmul.f32 %v520, %v520
        %v569 = vmul.f32 %v521, %v521
        %v570 = vmul.f32 %v522, %v522
        %571 = vadd.xlane.f32.xlu0 %v555
        %v572 = vpop.xlane.xlu0 %571
        %573 = vadd.xlane.f32.xlu0 %v556
        %v574 = vpop.xlane.xlu0 %573
        %575 = vadd.xlane.f32.xlu0 %v557
        %v576 = vpop.xlane.xlu0 %575
        %577 = vadd.xlane.f32.xlu0 %v558
        %v578 = vpop.xlane.xlu0 %577
        %579 = vadd.xlane.f32.xlu0 %v559
        %v580 = vpop.xlane.xlu0 %579
        %581 = vadd.xlane.f32.xlu0 %v560
        %v582 = vpop.xlane.xlu0 %581
        %583 = vadd.xlane.f32.xlu0 %v561
        %v584 = vpop.xlane.xlu0 %583
        %585 = vadd.xlane.f32.xlu0 %v562
        %v586 = vpop.xlane.xlu0 %585
        %587 = vadd.xlane.f32.xlu0 %v563
        %v588 = vpop.xlane.xlu0 %587
        %589 = vadd.xlane.f32.xlu0 %v564
        %v590 = vpop.xlane.xlu0 %589
        %591 = vadd.xlane.f32.xlu0 %v565
        %v592 = vpop.xlane.xlu0 %591
        %593 = vadd.xlane.f32.xlu0 %v566
        %v594 = vpop.xlane.xlu0 %593
        %595 = vadd.xlane.f32.xlu0 %v567
        %v596 = vpop.xlane.xlu0 %595
        %597 = vadd.xlane.f32.xlu0 %v568
        %v598 = vpop.xlane.xlu0 %597
        %599 = vadd.xlane.f32.xlu0 %v569
        %v600 = vpop.xlane.xlu0 %599
        %601 = vadd.xlane.f32.xlu0 %v570
        %v602 = vpop.xlane.xlu0 %601
        %v603 = vmul.f32 %v524, 0.0078125
        %v604 = vmul.f32 %v526, 0.0078125
        %v605 = vmul.f32 %v528, 0.0078125
        %v606 = vmul.f32 %v530, 0.0078125
        %v607 = vmul.f32 %v532, 0.0078125
        %v608 = vmul.f32 %v534, 0.0078125
        %v609 = vmul.f32 %v536, 0.0078125
        %v610 = vmul.f32 %v538, 0.0078125
        %v611 = vmul.f32 %v540, 0.0078125
        %v612 = vmul.f32 %v542, 0.0078125
        %v613 = vmul.f32 %v544, 0.0078125
        %v614 = vmul.f32 %v546, 0.0078125
        %v615 = vmul.f32 %v548, 0.0078125
        %v616 = vmul.f32 %v550, 0.0078125
        %v617 = vmul.f32 %v552, 0.0078125
        %v618 = vmul.f32 %v554, 0.0078125
        %v619 = vmul.f32 %v572, 0.0078125
        %v620 = vmul.f32 %v574, 0.0078125
        %v621 = vmul.f32 %v576, 0.0078125
        %v622 = vmul.f32 %v578, 0.0078125
        %v623 = vmul.f32 %v580, 0.0078125
        %v624 = vmul.f32 %v582, 0.0078125
        %v625 = vmul.f32 %v584, 0.0078125
        %v626 = vmul.f32 %v586, 0.0078125
        %v627 = vmul.f32 %v588, 0.0078125
        %v628 = vmul.f32 %v590, 0.0078125
        %v629 = vmul.f32 %v592, 0.0078125
        %v630 = vmul.f32 %v594, 0.0078125
        %v631 = vmul.f32 %v596, 0.0078125
        %v632 = vmul.f32 %v598, 0.0078125
        %v633 = vmul.f32 %v600, 0.0078125
        %v634 = vmul.f32 %v602, 0.0078125
        %v635 = vmul.f32 %v603, %v603
        %v636 = vmul.f32 %v604, %v604
        %v637 = vmul.f32 %v605, %v605
        %v638 = vmul.f32 %v606, %v606
        %v639 = vmul.f32 %v607, %v607
        %v640 = vmul.f32 %v608, %v608
        %v641 = vmul.f32 %v609, %v609
        %v642 = vmul.f32 %v610, %v610
        %v643 = vmul.f32 %v611, %v611
        %v644 = vmul.f32 %v612, %v612
        %v645 = vmul.f32 %v613, %v613
        %v646 = vmul.f32 %v614, %v614
        %v647 = vmul.f32 %v615, %v615
        %v648 = vmul.f32 %v616, %v616
        %v649 = vmul.f32 %v617, %v617
        %v650 = vmul.f32 %v618, %v618
        %v651 = vsub.f32 %v619, %v635
        %v652 = vsub.f32 %v620, %v636
        %v653 = vsub.f32 %v621, %v637
        %v654 = vsub.f32 %v622, %v638
        %v655 = vsub.f32 %v623, %v639
        %v656 = vsub.f32 %v624, %v640
        %v657 = vsub.f32 %v625, %v641
        %v658 = vsub.f32 %v626, %v642
        %v659 = vsub.f32 %v627, %v643
        %v660 = vsub.f32 %v628, %v644
        %v661 = vsub.f32 %v629, %v645
        %v662 = vsub.f32 %v630, %v646
        %v663 = vsub.f32 %v631, %v647
        %v664 = vsub.f32 %v632, %v648
        %v665 = vsub.f32 %v633, %v649
        %v666 = vsub.f32 %v634, %v650
        %v667 = vmax.f32 %v651, 0.0
        %v668 = vmax.f32 %v652, 0.0
        %v669 = vmax.f32 %v653, 0.0
        %v670 = vmax.f32 %v654, 0.0
        %v671 = vmax.f32 %v655, 0.0
        %v672 = vmax.f32 %v656, 0.0
        %v673 = vmax.f32 %v657, 0.0
        %v674 = vmax.f32 %v658, 0.0
        %v675 = vmax.f32 %v659, 0.0
        %v676 = vmax.f32 %v660, 0.0
        %v677 = vmax.f32 %v661, 0.0
        %v678 = vmax.f32 %v662, 0.0
        %v679 = vmax.f32 %v663, 0.0
        %v680 = vmax.f32 %v664, 0.0
        %v681 = vmax.f32 %v665, 0.0
        %v682 = vmax.f32 %v666, 0.0
        %v683 = vadd.f32 %v667, 1e-05
        %v684 = vadd.f32 %v668, 1e-05
        %v685 = vadd.f32 %v669, 1e-05
        %v686 = vadd.f32 %v670, 1e-05
        %v687 = vadd.f32 %v671, 1e-05
        %v688 = vadd.f32 %v672, 1e-05
        %v689 = vadd.f32 %v673, 1e-05
        %v690 = vadd.f32 %v674, 1e-05
        %v691 = vadd.f32 %v675, 1e-05
        %v692 = vadd.f32 %v676, 1e-05
        %v693 = vadd.f32 %v677, 1e-05
        %v694 = vadd.f32 %v678, 1e-05
        %v695 = vadd.f32 %v679, 1e-05
        %v696 = vadd.f32 %v680, 1e-05
        %v697 = vadd.f32 %v681, 1e-05
        %v698 = vadd.f32 %v682, 1e-05
        %v699 = vrsqrt.pop %v683
        %v700 = vrsqrt.pop %v684
        %v701 = vrsqrt.pop %v685
        %v702 = vrsqrt.pop %v686
        %v703 = vrsqrt.pop %v687
        %v704 = vrsqrt.pop %v688
        %v705 = vrsqrt.pop %v689
        %v706 = vrsqrt.pop %v690
        %v707 = vrsqrt.pop %v691
        %v708 = vrsqrt.pop %v692
        %v709 = vrsqrt.pop %v693
        %v710 = vrsqrt.pop %v694
        %v711 = vrsqrt.pop %v695
        %v712 = vrsqrt.pop %v696
        %v713 = vrsqrt.pop %v697
        %v714 = vrsqrt.pop %v698
        %v715 = vsub.f32 %v507, %v603
        %v716 = vsub.f32 %v508, %v604
        %v717 = vsub.f32 %v509, %v605
        %v718 = vsub.f32 %v510, %v606
        %v719 = vsub.f32 %v511, %v607
        %v720 = vsub.f32 %v512, %v608
        %v721 = vsub.f32 %v513, %v609
        %v722 = vsub.f32 %v514, %v610
        %v723 = vsub.f32 %v515, %v611
        %v724 = vsub.f32 %v516, %v612
        %v725 = vsub.f32 %v517, %v613
        %v726 = vsub.f32 %v518, %v614
        %v727 = vsub.f32 %v519, %v615
        %v728 = vsub.f32 %v520, %v616
        %v729 = vsub.f32 %v521, %v617
        %v730 = vsub.f32 %v522, %v618
        %v731 = vmul.f32 %v715, %v699
        %v732 = vmul.f32 %v716, %v700
        %v733 = vmul.f32 %v717, %v701
        %v734 = vmul.f32 %v718, %v702
        %v735 = vmul.f32 %v719, %v703
        %v736 = vmul.f32 %v720, %v704
        %v737 = vmul.f32 %v721, %v705
        %v738 = vmul.f32 %v722, %v706
        %v739 = vmul.f32 %v723, %v707
        %v740 = vmul.f32 %v724, %v708
        %v741 = vmul.f32 %v725, %v709
        %v742 = vmul.f32 %v726, %v710
        %v743 = vmul.f32 %v727, %v711
        %v744 = vmul.f32 %v728, %v712
        %v745 = vmul.f32 %v729, %v713
        %v746 = vmul.f32 %v730, %v714
        %v748 = vlaneseq
        %v749 = vshrl.u32 %v748, 7
        %v750 = vsub.s32 0, %v749
        %v751 = vrot.slane %v489, %v750
        %v753 = vmul.f32 %v731, %v751
        %v754 = vmul.f32 %v732, %v751
        %v755 = vmul.f32 %v733, %v751
        %v756 = vmul.f32 %v734, %v751
        %v757 = vmul.f32 %v735, %v751
        %v758 = vmul.f32 %v736, %v751
        %v759 = vmul.f32 %v737, %v751
        %v760 = vmul.f32 %v738, %v751
        %v761 = vmul.f32 %v739, %v751
        %v762 = vmul.f32 %v740, %v751
        %v763 = vmul.f32 %v741, %v751
        %v764 = vmul.f32 %v742, %v751
        %v765 = vmul.f32 %v743, %v751
        %v766 = vmul.f32 %v744, %v751
        %v767 = vmul.f32 %v745, %v751
        %v768 = vmul.f32 %v746, %v751
        %v770 = vlaneseq
        %v771 = vshrl.u32 %v770, 7
        %v772 = vsub.s32 0, %v771
        %v773 = vrot.slane %v490, %v772
        %v775 = vadd.f32 %v753, %v773
        %v776 = vadd.f32 %v754, %v773
        %v777 = vadd.f32 %v755, %v773
        %v778 = vadd.f32 %v756, %v773
        %v779 = vadd.f32 %v757, %v773
        %v780 = vadd.f32 %v758, %v773
        %v781 = vadd.f32 %v759, %v773
        %v782 = vadd.f32 %v760, %v773
        %v783 = vadd.f32 %v761, %v773
        %v784 = vadd.f32 %v762, %v773
        %v785 = vadd.f32 %v763, %v773
        %v786 = vadd.f32 %v764, %v773
        %v787 = vadd.f32 %v765, %v773
        %v788 = vadd.f32 %v766, %v773
        %v789 = vadd.f32 %v767, %v773
        %v790 = vadd.f32 %v768, %v773
        %v791 = vld [vmem:[#allocation6] sm:$0xf]
        %v792 = vld [vmem:[#allocation6 + $0x4] sm:$0xf]
        %v793 = vld [vmem:[#allocation6 + $0x8] sm:$0xf]
        %v794 = vld [vmem:[#allocation6 + $0xc] sm:$0xf]
        %v795 = vld [vmem:[#allocation6 + $0x10] sm:$0xf]
        %v796 = vld [vmem:[#allocation6 + $0x14] sm:$0xf]
        %v797 = vld [vmem:[#allocation6 + $0x18] sm:$0xf]
        %v798 = vld [vmem:[#allocation6 + $0x1c] sm:$0xf]
        %v799 = vld [vmem:[#allocation6 + $0x20] sm:$0xf]
        %v800 = vld [vmem:[#allocation6 + $0x24] sm:$0xf]
        %v801 = vld [vmem:[#allocation6 + $0x28] sm:$0xf]
        %v802 = vld [vmem:[#allocation6 + $0x2c] sm:$0xf]
        %v803 = vld [vmem:[#allocation6 + $0x30] sm:$0xf]
        %v804 = vld [vmem:[#allocation6 + $0x34] sm:$0xf]
        %v805 = vld [vmem:[#allocation6 + $0x38] sm:$0xf]
        %v806 = vld [vmem:[#allocation6 + $0x3c] sm:$0xf]
        %v807 = vpack.c.bf16 %v776, %v775
        %v808 = vpack.c.bf16 %v778, %v777
        %v809 = vpack.c.bf16 %v780, %v779
        %v810 = vpack.c.bf16 %v782, %v781
        %v811 = vpack.c.bf16 %v784, %v783
        %v812 = vpack.c.bf16 %v786, %v785
        %v813 = vpack.c.bf16 %v788, %v787
        %v814 = vpack.c.bf16 %v790, %v789
        %v815 = vld [vmem:[%s4] sm:$0xff]
        %v816 = vld [vmem:[%s4 + $0x8] sm:$0xff]
        %v817 = vld [vmem:[%s4 + $0x10] sm:$0xff]
        %v818 = vld [vmem:[%s4 + $0x18] sm:$0xff]
        %v819 = vld [vmem:[%s4 + $0x20] sm:$0xff]
        %v820 = vld [vmem:[%s4 + $0x28] sm:$0xff]
        %v821 = vld [vmem:[%s4 + $0x30] sm:$0xff]
        %v822 = vld [vmem:[%s4 + $0x38] sm:$0xff]
        %v823 = vld [vmem:[%s4 + $0x40] sm:$0xff]
        %v824 = vld [vmem:[%s4 + $0x48] sm:$0xff]
        %v825 = vld [vmem:[%s4 + $0x50] sm:$0xff]
        %v826 = vld [vmem:[%s4 + $0x58] sm:$0xff]
        %v827 = vld [vmem:[%s4 + $0x60] sm:$0xff]
        %v828 = vld [vmem:[%s4 + $0x68] sm:$0xff]
        %v829 = vld [vmem:[%s4 + $0x70] sm:$0xff]
        %v830 = vld [vmem:[%s4 + $0x78] sm:$0xff]
        %832 = vset.pattern.permute.xlu0 0
        %833 = vperm.xlu0 %832, %v815
        %v834 = vpop.permute.xlu0 %833
        %837 = vset.pattern.permute.xlu0 0
        %838 = vperm.xlu0 %837, %v816
        %v839 = vpop.permute.xlu0 %838
        %842 = vset.pattern.permute.xlu0 0
        %843 = vperm.xlu0 %842, %v817
        %v844 = vpop.permute.xlu0 %843
        %847 = vset.pattern.permute.xlu0 0
        %848 = vperm.xlu0 %847, %v818
        %v849 = vpop.permute.xlu0 %848
        %852 = vset.pattern.permute.xlu0 0
        %853 = vperm.xlu0 %852, %v819
        %v854 = vpop.permute.xlu0 %853
        %857 = vset.pattern.permute.xlu0 0
        %858 = vperm.xlu0 %857, %v820
        %v859 = vpop.permute.xlu0 %858
        %862 = vset.pattern.permute.xlu0 0
        %863 = vperm.xlu0 %862, %v821
        %v864 = vpop.permute.xlu0 %863
        %867 = vset.pattern.permute.xlu0 0
        %868 = vperm.xlu0 %867, %v822
        %v869 = vpop.permute.xlu0 %868
        %872 = vset.pattern.permute.xlu0 0
        %873 = vperm.xlu0 %872, %v823
        %v874 = vpop.permute.xlu0 %873
        %877 = vset.pattern.permute.xlu0 0
        %878 = vperm.xlu0 %877, %v824
        %v879 = vpop.permute.xlu0 %878
        %882 = vset.pattern.permute.xlu0 0
        %883 = vperm.xlu0 %882, %v825
        %v884 = vpop.permute.xlu0 %883
        %887 = vset.pattern.permute.xlu0 0
        %888 = vperm.xlu0 %887, %v826
        %v889 = vpop.permute.xlu0 %888
        %892 = vset.pattern.permute.xlu0 0
        %893 = vperm.xlu0 %892, %v827
        %v894 = vpop.permute.xlu0 %893
        %897 = vset.pattern.permute.xlu0 0
        %898 = vperm.xlu0 %897, %v828
        %v899 = vpop.permute.xlu0 %898
        %902 = vset.pattern.permute.xlu0 0
        %903 = vperm.xlu0 %902, %v829
        %v904 = vpop.permute.xlu0 %903
        %907 = vset.pattern.permute.xlu0 0
        %908 = vperm.xlu0 %907, %v830
        %v909 = vpop.permute.xlu0 %908
        %v927 = vunpack.c.l.b16 %v791
        %v928 = vunpack.c.l.b16 %v792
        %v929 = vunpack.c.l.b16 %v793
        %v930 = vunpack.c.l.b16 %v794
        %v931 = vunpack.c.l.b16 %v795
        %v932 = vunpack.c.l.b16 %v796
        %v933 = vunpack.c.l.b16 %v797
        %v934 = vunpack.c.l.b16 %v798
        %v935 = vunpack.c.l.b16 %v799
        %v936 = vunpack.c.l.b16 %v800
        %v937 = vunpack.c.l.b16 %v801
        %v938 = vunpack.c.l.b16 %v802
        %v939 = vunpack.c.l.b16 %v803
        %v940 = vunpack.c.l.b16 %v804
        %v941 = vunpack.c.l.b16 %v805
        %v942 = vunpack.c.l.b16 %v806
        %v943 = vpack.c.b16 %v928, %v927
        %v944 = vpack.c.b16 %v930, %v929
        %v945 = vpack.c.b16 %v932, %v931
        %v946 = vpack.c.b16 %v934, %v933
        %v947 = vpack.c.b16 %v936, %v935
        %v948 = vpack.c.b16 %v938, %v937
        %v949 = vpack.c.b16 %v940, %v939
        %v950 = vpack.c.b16 %v942, %v941
        %959 = vmatprep.subr.bf16.mxu0 0
        %960 = vmatpush1.bf16.msra.mxu0 %v814
        %961 = vmatprep.subr.bf16.mxu0 0
        %962 = vmatpush1.bf16.msra.mxu0 %v813
        %963 = vmatprep.subr.bf16.mxu0 0
        %964 = vmatpush1.bf16.msra.mxu0 %v812
        %965 = vmatprep.subr.bf16.mxu0 0
        %966 = vmatpush1.bf16.msra.mxu0 %v811
        %967 = vmatprep.subr.bf16.mxu0 0
        %968 = vmatpush1.bf16.msra.mxu0 %v810
        %969 = vmatprep.subr.bf16.mxu0 0
        %970 = vmatpush1.bf16.msra.mxu0 %v809
        %971 = vmatprep.subr.bf16.mxu0 0
        %972 = vmatpush1.bf16.msra.mxu0 %v808
        %973 = vmatprep.subr.bf16.mxu0 0
        %974 = vmatpush1.bf16.msra.mxu0 %v807
        %975 = vmatprep.subr.bf16.mxu0 0
        %976 = vmatpush2.bf16.msra.mxu0 0
        %977 = vmatprep.subr.bf16.mxu0 0
        %978 = vmatpush2.bf16.msra.mxu0 0
        %979 = vmatprep.subr.bf16.mxu0 0
        %980 = vmatpush2.bf16.msra.mxu0 0
        %981 = vmatprep.subr.bf16.mxu0 0
        %982 = vmatpush2.bf16.msra.mxu0 0
        %983 = vmatprep.subr.bf16.mxu0 0
        %984 = vmatpush2.bf16.msra.mxu0 0
        %985 = vmatprep.subr.bf16.mxu0 0
        %986 = vmatpush2.bf16.msra.mxu0 0
        %987 = vmatprep.subr.bf16.mxu0 0
        %988 = vmatpush2.bf16.msra.mxu0 0
        %989 = vmatprep.subr.bf16.mxu0 0
        %990 = vmatpush2.bf16.msra.mxu0 0
        %991 = vmatprep.mubr.bf16.mxu0 0
        %992 = vmatmul.mubr.bf16.gmra.mxu0 %v943
        %v993 = vpop.f32.mrf.mxu0
        %v994 = vadd.f32 %v834, %v993
        %v995 = vpop.f32.mrf.mxu0
        %v996 = vpop.f32.mrf.mxu0
        %v997 = vadd.f32 %v839, %v996
        %v998 = vpop.f32.mrf.mxu0
        %999 = vmatprep.mubr.bf16.mxu0 0
        %1000 = vmatmul.mubr.bf16.gmra.mxu0 %v944
        %v1001 = vpop.f32.mrf.mxu0
        %v1002 = vadd.f32 %v844, %v1001
        %v1003 = vpop.f32.mrf.mxu0
        %v1004 = vpop.f32.mrf.mxu0
        %v1005 = vadd.f32 %v849, %v1004
        %v1006 = vpop.f32.mrf.mxu0
        %1007 = vmatprep.mubr.bf16.mxu0 0
        %1008 = vmatmul.mubr.bf16.gmra.mxu0 %v945
        %v1009 = vpop.f32.mrf.mxu0
        %v1010 = vadd.f32 %v854, %v1009
        %v1011 = vpop.f32.mrf.mxu0
        %v1012 = vpop.f32.mrf.mxu0
        %v1013 = vadd.f32 %v859, %v1012
        %v1014 = vpop.f32.mrf.mxu0
        %1015 = vmatprep.mubr.bf16.mxu0 0
        %1016 = vmatmul.mubr.bf16.gmra.mxu0 %v946
        %v1017 = vpop.f32.mrf.mxu0
        %v1018 = vadd.f32 %v864, %v1017
        %v1019 = vpop.f32.mrf.mxu0
        %v1020 = vpop.f32.mrf.mxu0
        %v1021 = vadd.f32 %v869, %v1020
        %v1022 = vpop.f32.mrf.mxu0
        %1023 = vmatprep.mubr.bf16.mxu0 0
        %1024 = vmatmul.mubr.bf16.gmra.mxu0 %v947
        %v1025 = vpop.f32.mrf.mxu0
        %v1026 = vadd.f32 %v874, %v1025
        %v1027 = vpop.f32.mrf.mxu0
        %v1028 = vpop.f32.mrf.mxu0
        %v1029 = vadd.f32 %v879, %v1028
        %v1030 = vpop.f32.mrf.mxu0
        %1031 = vmatprep.mubr.bf16.mxu0 0
        %1032 = vmatmul.mubr.bf16.gmra.mxu0 %v948
        %v1033 = vpop.f32.mrf.mxu0
        %v1034 = vadd.f32 %v884, %v1033
        %v1035 = vpop.f32.mrf.mxu0
        %v1036 = vpop.f32.mrf.mxu0
        %v1037 = vadd.f32 %v889, %v1036
        %v1038 = vpop.f32.mrf.mxu0
        %1039 = vmatprep.mubr.bf16.mxu0 0
        %1040 = vmatmul.mubr.bf16.gmra.mxu0 %v949
        %v1041 = vpop.f32.mrf.mxu0
        %v1042 = vadd.f32 %v894, %v1041
        %v1043 = vpop.f32.mrf.mxu0
        %v1044 = vpop.f32.mrf.mxu0
        %v1045 = vadd.f32 %v899, %v1044
        %v1046 = vpop.f32.mrf.mxu0
        %1047 = vmatprep.mubr.bf16.mxu0 0
        %1048 = vmatmul.mubr.bf16.gmra.mxu0 %v950
        %v1049 = vpop.f32.mrf.mxu0
        %v1050 = vadd.f32 %v904, %v1049
        %v1051 = vpop.f32.mrf.mxu0
        %v1052 = vpop.f32.mrf.mxu0
        %v1053 = vadd.f32 %v909, %v1052
        %v1054 = vpop.f32.mrf.mxu0
        %1055 = vdwg.mxu0
        %v1056 = vmul.f32 %v994, 0.5
        %v1057 = vmul.f32 %v997, 0.5
        %v1058 = vmul.f32 %v1002, 0.5
        %v1059 = vmul.f32 %v1005, 0.5
        %v1060 = vmul.f32 %v1010, 0.5
        %v1061 = vmul.f32 %v1013, 0.5
        %v1062 = vmul.f32 %v1018, 0.5
        %v1063 = vmul.f32 %v1021, 0.5
        %v1064 = vmul.f32 %v1026, 0.5
        %v1065 = vmul.f32 %v1029, 0.5
        %v1066 = vmul.f32 %v1034, 0.5
        %v1067 = vmul.f32 %v1037, 0.5
        %v1068 = vmul.f32 %v1042, 0.5
        %v1069 = vmul.f32 %v1045, 0.5
        %v1070 = vmul.f32 %v1050, 0.5
        %v1071 = vmul.f32 %v1053, 0.5
        %v1072 = vmul.f32 %v994, 0.70710677
        %v1073 = vmul.f32 %v997, 0.70710677
        %v1074 = vmul.f32 %v1002, 0.70710677
        %v1075 = vmul.f32 %v1005, 0.70710677
        %v1076 = vmul.f32 %v1010, 0.70710677
        %v1077 = vmul.f32 %v1013, 0.70710677
        %v1078 = vmul.f32 %v1018, 0.70710677
        %v1079 = vmul.f32 %v1021, 0.70710677
        %v1080 = vmul.f32 %v1026, 0.70710677
        %v1081 = vmul.f32 %v1029, 0.70710677
        %v1082 = vmul.f32 %v1034, 0.70710677
        %v1083 = vmul.f32 %v1037, 0.70710677
        %v1084 = vmul.f32 %v1042, 0.70710677
        %v1085 = vmul.f32 %v1045, 0.70710677
        %v1086 = vmul.f32 %v1050, 0.70710677
        %v1087 = vmul.f32 %v1053, 0.70710677
        %v1088 = verf.f32.pop %v1072
        %v1089 = verf.f32.pop %v1073
        %v1090 = verf.f32.pop %v1074
        %v1091 = verf.f32.pop %v1075
        %v1092 = verf.f32.pop %v1076
        %v1093 = verf.f32.pop %v1077
        %v1094 = verf.f32.pop %v1078
        %v1095 = verf.f32.pop %v1079
        %v1096 = verf.f32.pop %v1080
        %v1097 = verf.f32.pop %v1081
        %v1098 = verf.f32.pop %v1082
        %v1099 = verf.f32.pop %v1083
        %v1100 = verf.f32.pop %v1084
        %v1101 = verf.f32.pop %v1085
        %v1102 = verf.f32.pop %v1086
        %v1103 = verf.f32.pop %v1087
        %v1104 = vadd.f32 %v1088, 1.0
        %v1105 = vadd.f32 %v1089, 1.0
        %v1106 = vadd.f32 %v1090, 1.0
        %v1107 = vadd.f32 %v1091, 1.0
        %v1108 = vadd.f32 %v1092, 1.0
        %v1109 = vadd.f32 %v1093, 1.0
        %v1110 = vadd.f32 %v1094, 1.0
        %v1111 = vadd.f32 %v1095, 1.0
        %v1112 = vadd.f32 %v1096, 1.0
        %v1113 = vadd.f32 %v1097, 1.0
        %v1114 = vadd.f32 %v1098, 1.0
        %v1115 = vadd.f32 %v1099, 1.0
        %v1116 = vadd.f32 %v1100, 1.0
        %v1117 = vadd.f32 %v1101, 1.0
        %v1118 = vadd.f32 %v1102, 1.0
        %v1119 = vadd.f32 %v1103, 1.0
        %v1120 = vmul.f32 %v1056, %v1104
        %v1121 = vmul.f32 %v1057, %v1105
        %v1122 = vmul.f32 %v1058, %v1106
        %v1123 = vmul.f32 %v1059, %v1107
        %v1124 = vmul.f32 %v1060, %v1108
        %v1125 = vmul.f32 %v1061, %v1109
        %v1126 = vmul.f32 %v1062, %v1110
        %v1127 = vmul.f32 %v1063, %v1111
        %v1128 = vmul.f32 %v1064, %v1112
        %v1129 = vmul.f32 %v1065, %v1113
        %v1130 = vmul.f32 %v1066, %v1114
        %v1131 = vmul.f32 %v1067, %v1115
        %v1132 = vmul.f32 %v1068, %v1116
        %v1133 = vmul.f32 %v1069, %v1117
        %v1134 = vmul.f32 %v1070, %v1118
        %v1135 = vmul.f32 %v1071, %v1119
        %v1136 = vld [vmem:[#allocation8] sm:$0xf]
        %v1137 = vld [vmem:[#allocation8 + $0x4] sm:$0xf]
        %v1138 = vld [vmem:[#allocation8 + $0x8] sm:$0xf]
        %v1139 = vld [vmem:[#allocation8 + $0xc] sm:$0xf]
        %v1140 = vld [vmem:[#allocation8 + $0x10] sm:$0xf]
        %v1141 = vld [vmem:[#allocation8 + $0x14] sm:$0xf]
        %v1142 = vld [vmem:[#allocation8 + $0x18] sm:$0xf]
        %v1143 = vld [vmem:[#allocation8 + $0x1c] sm:$0xf]
        %v1144 = vld [vmem:[#allocation8 + $0x20] sm:$0xf]
        %v1145 = vld [vmem:[#allocation8 + $0x24] sm:$0xf]
        %v1146 = vld [vmem:[#allocation8 + $0x28] sm:$0xf]
        %v1147 = vld [vmem:[#allocation8 + $0x2c] sm:$0xf]
        %v1148 = vld [vmem:[#allocation8 + $0x30] sm:$0xf]
        %v1149 = vld [vmem:[#allocation8 + $0x34] sm:$0xf]
        %v1150 = vld [vmem:[#allocation8 + $0x38] sm:$0xf]
        %v1151 = vld [vmem:[#allocation8 + $0x3c] sm:$0xf]
        %v1152 = vpack.c.bf16 %v1121, %v1120
        %v1153 = vpack.c.bf16 %v1123, %v1122
        %v1154 = vpack.c.bf16 %v1125, %v1124
        %v1155 = vpack.c.bf16 %v1127, %v1126
        %v1156 = vpack.c.bf16 %v1129, %v1128
        %v1157 = vpack.c.bf16 %v1131, %v1130
        %v1158 = vpack.c.bf16 %v1133, %v1132
        %v1159 = vpack.c.bf16 %v1135, %v1134
        %v1176 = vunpack.c.l.b16 %v1136
        %v1177 = vunpack.c.l.b16 %v1137
        %v1178 = vunpack.c.l.b16 %v1138
        %v1179 = vunpack.c.l.b16 %v1139
        %v1180 = vunpack.c.l.b16 %v1140
        %v1181 = vunpack.c.l.b16 %v1141
        %v1182 = vunpack.c.l.b16 %v1142
        %v1183 = vunpack.c.l.b16 %v1143
        %v1184 = vunpack.c.l.b16 %v1144
        %v1185 = vunpack.c.l.b16 %v1145
        %v1186 = vunpack.c.l.b16 %v1146
        %v1187 = vunpack.c.l.b16 %v1147
        %v1188 = vunpack.c.l.b16 %v1148
        %v1189 = vunpack.c.l.b16 %v1149
        %v1190 = vunpack.c.l.b16 %v1150
        %v1191 = vunpack.c.l.b16 %v1151
        %v1192 = vpack.c.b16 %v1177, %v1176
        %v1193 = vpack.c.b16 %v1179, %v1178
        %v1194 = vpack.c.b16 %v1181, %v1180
        %v1195 = vpack.c.b16 %v1183, %v1182
        %v1196 = vpack.c.b16 %v1185, %v1184
        %v1197 = vpack.c.b16 %v1187, %v1186
        %v1198 = vpack.c.b16 %v1189, %v1188
        %v1199 = vpack.c.b16 %v1191, %v1190
        %1208 = vmatprep.subr.bf16.mxu0 0
        %1209 = vmatpush1.bf16.msra.mxu0 %v1159
        %1210 = vmatprep.subr.bf16.mxu0 0
        %1211 = vmatpush1.bf16.msra.mxu0 %v1158
        %1212 = vmatprep.subr.bf16.mxu0 0
        %1213 = vmatpush1.bf16.msra.mxu0 %v1157
        %1214 = vmatprep.subr.bf16.mxu0 0
        %1215 = vmatpush1.bf16.msra.mxu0 %v1156
        %1216 = vmatprep.subr.bf16.mxu0 0
        %1217 = vmatpush1.bf16.msra.mxu0 %v1155
        %1218 = vmatprep.subr.bf16.mxu0 0
        %1219 = vmatpush1.bf16.msra.mxu0 %v1154
        %1220 = vmatprep.subr.bf16.mxu0 0
        %1221 = vmatpush1.bf16.msra.mxu0 %v1153
        %1222 = vmatprep.subr.bf16.mxu0 0
        %1223 = vmatpush1.bf16.msra.mxu0 %v1152
        %1224 = vmatprep.subr.bf16.mxu0 0
        %1225 = vmatpush2.bf16.msra.mxu0 0
        %1226 = vmatprep.subr.bf16.mxu0 0
        %1227 = vmatpush2.bf16.msra.mxu0 0
        %1228 = vmatprep.subr.bf16.mxu0 0
        %1229 = vmatpush2.bf16.msra.mxu0 0
        %1230 = vmatprep.subr.bf16.mxu0 0
        %1231 = vmatpush2.bf16.msra.mxu0 0
        %1232 = vmatprep.subr.bf16.mxu0 0
        %1233 = vmatpush2.bf16.msra.mxu0 0
        %1234 = vmatprep.subr.bf16.mxu0 0
        %1235 = vmatpush2.bf16.msra.mxu0 0
        %1236 = vmatprep.subr.bf16.mxu0 0
        %1237 = vmatpush2.bf16.msra.mxu0 0
        %1238 = vmatprep.subr.bf16.mxu0 0
        %1239 = vmatpush2.bf16.msra.mxu0 0
        %1240 = vmatprep.mubr.bf16.mxu0 0
        %1241 = vmatmul.mubr.bf16.gmra.mxu0 %v1192
        %v1242 = vpop.f32.mrf.mxu0
        %v1243 = vadd.f32 0.0, %v1242
        %v1244 = vpop.f32.mrf.mxu0
        %v1245 = vpop.f32.mrf.mxu0
        %v1246 = vadd.f32 0.0, %v1245
        %v1247 = vpop.f32.mrf.mxu0
        %1248 = vmatprep.mubr.bf16.mxu0 0
        %1249 = vmatmul.mubr.bf16.gmra.mxu0 %v1193
        %v1250 = vpop.f32.mrf.mxu0
        %v1251 = vadd.f32 0.0, %v1250
        %v1252 = vpop.f32.mrf.mxu0
        %v1253 = vpop.f32.mrf.mxu0
        %v1254 = vadd.f32 0.0, %v1253
        %v1255 = vpop.f32.mrf.mxu0
        %1256 = vmatprep.mubr.bf16.mxu0 0
        %1257 = vmatmul.mubr.bf16.gmra.mxu0 %v1194
        %v1258 = vpop.f32.mrf.mxu0
        %v1259 = vadd.f32 0.0, %v1258
        %v1260 = vpop.f32.mrf.mxu0
        %v1261 = vpop.f32.mrf.mxu0
        %v1262 = vadd.f32 0.0, %v1261
        %v1263 = vpop.f32.mrf.mxu0
        %1264 = vmatprep.mubr.bf16.mxu0 0
        %1265 = vmatmul.mubr.bf16.gmra.mxu0 %v1195
        %v1266 = vpop.f32.mrf.mxu0
        %v1267 = vadd.f32 0.0, %v1266
        %v1268 = vpop.f32.mrf.mxu0
        %v1269 = vpop.f32.mrf.mxu0
        %v1270 = vadd.f32 0.0, %v1269
        %v1271 = vpop.f32.mrf.mxu0
        %1272 = vmatprep.mubr.bf16.mxu0 0
        %1273 = vmatmul.mubr.bf16.gmra.mxu0 %v1196
        %v1274 = vpop.f32.mrf.mxu0
        %v1275 = vadd.f32 0.0, %v1274
        %v1276 = vpop.f32.mrf.mxu0
        %v1277 = vpop.f32.mrf.mxu0
        %v1278 = vadd.f32 0.0, %v1277
        %v1279 = vpop.f32.mrf.mxu0
        %1280 = vmatprep.mubr.bf16.mxu0 0
        %1281 = vmatmul.mubr.bf16.gmra.mxu0 %v1197
        %v1282 = vpop.f32.mrf.mxu0
        %v1283 = vadd.f32 0.0, %v1282
        %v1284 = vpop.f32.mrf.mxu0
        %v1285 = vpop.f32.mrf.mxu0
        %v1286 = vadd.f32 0.0, %v1285
        %v1287 = vpop.f32.mrf.mxu0
        %1288 = vmatprep.mubr.bf16.mxu0 0
        %1289 = vmatmul.mubr.bf16.gmra.mxu0 %v1198
        %v1290 = vpop.f32.mrf.mxu0
        %v1291 = vadd.f32 0.0, %v1290
        %v1292 = vpop.f32.mrf.mxu0
        %v1293 = vpop.f32.mrf.mxu0
        %v1294 = vadd.f32 0.0, %v1293
        %v1295 = vpop.f32.mrf.mxu0
        %1296 = vmatprep.mubr.bf16.mxu0 0
        %1297 = vmatmul.mubr.bf16.gmra.mxu0 %v1199
        %v1298 = vpop.f32.mrf.mxu0
        %v1299 = vadd.f32 0.0, %v1298
        %v1300 = vpop.f32.mrf.mxu0
        %v1301 = vpop.f32.mrf.mxu0
        %v1302 = vadd.f32 0.0, %v1301
        %v1303 = vpop.f32.mrf.mxu0
        %1304 = vdwg.mxu0
        %v1305 = vadd.f32 %v507, %v1243
        %v1306 = vadd.f32 %v508, %v1246
        %v1307 = vadd.f32 %v509, %v1251
        %v1308 = vadd.f32 %v510, %v1254
        %v1309 = vadd.f32 %v511, %v1259
        %v1310 = vadd.f32 %v512, %v1262
        %v1311 = vadd.f32 %v513, %v1267
        %v1312 = vadd.f32 %v514, %v1270
        %v1313 = vadd.f32 %v515, %v1275
        %v1314 = vadd.f32 %v516, %v1278
        %v1315 = vadd.f32 %v517, %v1283
        %v1316 = vadd.f32 %v518, %v1286
        %v1317 = vadd.f32 %v519, %v1291
        %v1318 = vadd.f32 %v520, %v1294
        %v1319 = vadd.f32 %v521, %v1299
        %v1320 = vadd.f32 %v522, %v1302
        %v1321 = vld [vmem:[%s6] sm:$0xff]
        %v1322 = vld [vmem:[%s6 + $0x8] sm:$0xff]
        %v1323 = vld [vmem:[%s6 + $0x10] sm:$0xff]
        %v1324 = vld [vmem:[%s6 + $0x18] sm:$0xff]
        %v1325 = vld [vmem:[%s6 + $0x20] sm:$0xff]
        %v1326 = vld [vmem:[%s6 + $0x28] sm:$0xff]
        %v1327 = vld [vmem:[%s6 + $0x30] sm:$0xff]
        %v1328 = vld [vmem:[%s6 + $0x38] sm:$0xff]
        %v1329 = vld [vmem:[%s6 + $0x40] sm:$0xff]
        %v1330 = vld [vmem:[%s6 + $0x48] sm:$0xff]
        %v1331 = vld [vmem:[%s6 + $0x50] sm:$0xff]
        %v1332 = vld [vmem:[%s6 + $0x58] sm:$0xff]
        %v1333 = vld [vmem:[%s6 + $0x60] sm:$0xff]
        %v1334 = vld [vmem:[%s6 + $0x68] sm:$0xff]
        %v1335 = vld [vmem:[%s6 + $0x70] sm:$0xff]
        %v1336 = vld [vmem:[%s6 + $0x78] sm:$0xff]
        %1338 = vset.pattern.permute.xlu0 0
        %1339 = vperm.xlu0 %1338, %v1321
        %v1340 = vpop.permute.xlu0 %1339
        %1343 = vset.pattern.permute.xlu0 0
        %1344 = vperm.xlu0 %1343, %v1322
        %v1345 = vpop.permute.xlu0 %1344
        %1348 = vset.pattern.permute.xlu0 0
        %1349 = vperm.xlu0 %1348, %v1323
        %v1350 = vpop.permute.xlu0 %1349
        %1353 = vset.pattern.permute.xlu0 0
        %1354 = vperm.xlu0 %1353, %v1324
        %v1355 = vpop.permute.xlu0 %1354
        %1358 = vset.pattern.permute.xlu0 0
        %1359 = vperm.xlu0 %1358, %v1325
        %v1360 = vpop.permute.xlu0 %1359
        %1363 = vset.pattern.permute.xlu0 0
        %1364 = vperm.xlu0 %1363, %v1326
        %v1365 = vpop.permute.xlu0 %1364
        %1368 = vset.pattern.permute.xlu0 0
        %1369 = vperm.xlu0 %1368, %v1327
        %v1370 = vpop.permute.xlu0 %1369
        %1373 = vset.pattern.permute.xlu0 0
        %1374 = vperm.xlu0 %1373, %v1328
        %v1375 = vpop.permute.xlu0 %1374
        %1378 = vset.pattern.permute.xlu0 0
        %1379 = vperm.xlu0 %1378, %v1329
        %v1380 = vpop.permute.xlu0 %1379
        %1383 = vset.pattern.permute.xlu0 0
        %1384 = vperm.xlu0 %1383, %v1330
        %v1385 = vpop.permute.xlu0 %1384
        %1388 = vset.pattern.permute.xlu0 0
        %1389 = vperm.xlu0 %1388, %v1331
        %v1390 = vpop.permute.xlu0 %1389
        %1393 = vset.pattern.permute.xlu0 0
        %1394 = vperm.xlu0 %1393, %v1332
        %v1395 = vpop.permute.xlu0 %1394
        %1398 = vset.pattern.permute.xlu0 0
        %1399 = vperm.xlu0 %1398, %v1333
        %v1400 = vpop.permute.xlu0 %1399
        %1403 = vset.pattern.permute.xlu0 0
        %1404 = vperm.xlu0 %1403, %v1334
        %v1405 = vpop.permute.xlu0 %1404
        %1408 = vset.pattern.permute.xlu0 0
        %1409 = vperm.xlu0 %1408, %v1335
        %v1410 = vpop.permute.xlu0 %1409
        %1413 = vset.pattern.permute.xlu0 0
        %1414 = vperm.xlu0 %1413, %v1336
        %v1415 = vpop.permute.xlu0 %1414
        %v1417 = vadd.f32 %v1305, %v1340
        %v1418 = vadd.f32 %v1306, %v1345
        %v1419 = vadd.f32 %v1307, %v1350
        %v1420 = vadd.f32 %v1308, %v1355
        %v1421 = vadd.f32 %v1309, %v1360
        %v1422 = vadd.f32 %v1310, %v1365
        %v1423 = vadd.f32 %v1311, %v1370
        %v1424 = vadd.f32 %v1312, %v1375
        %v1425 = vadd.f32 %v1313, %v1380
        %v1426 = vadd.f32 %v1314, %v1385
        %v1427 = vadd.f32 %v1315, %v1390
        %v1428 = vadd.f32 %v1316, %v1395
        %v1429 = vadd.f32 %v1317, %v1400
        %v1430 = vadd.f32 %v1318, %v1405
        %v1431 = vadd.f32 %v1319, %v1410
        %v1432 = vadd.f32 %v1320, %v1415
        %1433 = vst [vmem:[#allocation2] sm:$0xff] %v1417
        %1434 = vst [vmem:[#allocation2 + $0x8] sm:$0xff] %v1418
        %1435 = vst [vmem:[#allocation2 + $0x10] sm:$0xff] %v1419
        %1436 = vst [vmem:[#allocation2 + $0x18] sm:$0xff] %v1420
        %1437 = vst [vmem:[#allocation2 + $0x20] sm:$0xff] %v1421
        %1438 = vst [vmem:[#allocation2 + $0x28] sm:$0xff] %v1422
        %1439 = vst [vmem:[#allocation2 + $0x30] sm:$0xff] %v1423
        %1440 = vst [vmem:[#allocation2 + $0x38] sm:$0xff] %v1424
        %1441 = vst [vmem:[#allocation2 + $0x40] sm:$0xff] %v1425
        %1442 = vst [vmem:[#allocation2 + $0x48] sm:$0xff] %v1426
        %1443 = vst [vmem:[#allocation2 + $0x50] sm:$0xff] %v1427
        %1444 = vst [vmem:[#allocation2 + $0x58] sm:$0xff] %v1428
        %1445 = vst [vmem:[#allocation2 + $0x60] sm:$0xff] %v1429
        %1446 = vst [vmem:[#allocation2 + $0x68] sm:$0xff] %v1430
        %1447 = vst [vmem:[#allocation2 + $0x70] sm:$0xff] %v1431
        %1448 = vst [vmem:[#allocation2 + $0x78] sm:$0xff] %v1432
        %v1449 = vld [vmem:[#allocation2] sm:$0xff]
        %v1450 = vld [vmem:[#allocation2 + $0x8] sm:$0xff]
        %v1451 = vld [vmem:[#allocation2 + $0x10] sm:$0xff]
        %v1452 = vld [vmem:[#allocation2 + $0x18] sm:$0xff]
        %v1453 = vld [vmem:[#allocation2 + $0x20] sm:$0xff]
        %v1454 = vld [vmem:[#allocation2 + $0x28] sm:$0xff]
        %v1455 = vld [vmem:[#allocation2 + $0x30] sm:$0xff]
        %v1456 = vld [vmem:[#allocation2 + $0x38] sm:$0xff]
        %v1457 = vld [vmem:[#allocation2 + $0x40] sm:$0xff]
        %v1458 = vld [vmem:[#allocation2 + $0x48] sm:$0xff]
        %v1459 = vld [vmem:[#allocation2 + $0x50] sm:$0xff]
        %v1460 = vld [vmem:[#allocation2 + $0x58] sm:$0xff]
        %v1461 = vld [vmem:[#allocation2 + $0x60] sm:$0xff]
        %v1462 = vld [vmem:[#allocation2 + $0x68] sm:$0xff]
        %v1463 = vld [vmem:[#allocation2 + $0x70] sm:$0xff]
        %v1464 = vld [vmem:[#allocation2 + $0x78] sm:$0xff]
        %v1465 = vld [vmem:[%s7] sm:$0x1]
        %v1466 = vld [vmem:[%s8] sm:$0x1]
        %1467 = vadd.xlane.f32.xlu0 %v1449
        %v1468 = vpop.xlane.xlu0 %1467
        %1469 = vadd.xlane.f32.xlu0 %v1450
        %v1470 = vpop.xlane.xlu0 %1469
        %1471 = vadd.xlane.f32.xlu0 %v1451
        %v1472 = vpop.xlane.xlu0 %1471
        %1473 = vadd.xlane.f32.xlu0 %v1452
        %v1474 = vpop.xlane.xlu0 %1473
        %1475 = vadd.xlane.f32.xlu0 %v1453
        %v1476 = vpop.xlane.xlu0 %1475
        %1477 = vadd.xlane.f32.xlu0 %v1454
        %v1478 = vpop.xlane.xlu0 %1477
        %1479 = vadd.xlane.f32.xlu0 %v1455
        %v1480 = vpop.xlane.xlu0 %1479
        %1481 = vadd.xlane.f32.xlu0 %v1456
        %v1482 = vpop.xlane.xlu0 %1481
        %1483 = vadd.xlane.f32.xlu0 %v1457
        %v1484 = vpop.xlane.xlu0 %1483
        %1485 = vadd.xlane.f32.xlu0 %v1458
        %v1486 = vpop.xlane.xlu0 %1485
        %1487 = vadd.xlane.f32.xlu0 %v1459
        %v1488 = vpop.xlane.xlu0 %1487
        %1489 = vadd.xlane.f32.xlu0 %v1460
        %v1490 = vpop.xlane.xlu0 %1489
        %1491 = vadd.xlane.f32.xlu0 %v1461
        %v1492 = vpop.xlane.xlu0 %1491
        %1493 = vadd.xlane.f32.xlu0 %v1462
        %v1494 = vpop.xlane.xlu0 %1493
        %1495 = vadd.xlane.f32.xlu0 %v1463
        %v1496 = vpop.xlane.xlu0 %1495
        %1497 = vadd.xlane.f32.xlu0 %v1464
        %v1498 = vpop.xlane.xlu0 %1497
        %v1499 = vmul.f32 %v1449, %v1449
        %v1500 = vmul.f32 %v1450, %v1450
        %v1501 = vmul.f32 %v1451, %v1451
        %v1502 = vmul.f32 %v1452, %v1452
        %v1503 = vmul.f32 %v1453, %v1453
        %v1504 = vmul.f32 %v1454, %v1454
        %v1505 = vmul.f32 %v1455, %v1455
        %v1506 = vmul.f32 %v1456, %v1456
        %v1507 = vmul.f32 %v1457, %v1457
        %v1508 = vmul.f32 %v1458, %v1458
        %v1509 = vmul.f32 %v1459, %v1459
        %v1510 = vmul.f32 %v1460, %v1460
        %v1511 = vmul.f32 %v1461, %v1461
        %v1512 = vmul.f32 %v1462, %v1462
        %v1513 = vmul.f32 %v1463, %v1463
        %v1514 = vmul.f32 %v1464, %v1464
        %1515 = vadd.xlane.f32.xlu0 %v1499
        %v1516 = vpop.xlane.xlu0 %1515
        %1517 = vadd.xlane.f32.xlu0 %v1500
        %v1518 = vpop.xlane.xlu0 %1517
        %1519 = vadd.xlane.f32.xlu0 %v1501
        %v1520 = vpop.xlane.xlu0 %1519
        %1521 = vadd.xlane.f32.xlu0 %v1502
        %v1522 = vpop.xlane.xlu0 %1521
        %1523 = vadd.xlane.f32.xlu0 %v1503
        %v1524 = vpop.xlane.xlu0 %1523
        %1525 = vadd.xlane.f32.xlu0 %v1504
        %v1526 = vpop.xlane.xlu0 %1525
        %1527 = vadd.xlane.f32.xlu0 %v1505
        %v1528 = vpop.xlane.xlu0 %1527
        %1529 = vadd.xlane.f32.xlu0 %v1506
        %v1530 = vpop.xlane.xlu0 %1529
        %1531 = vadd.xlane.f32.xlu0 %v1507
        %v1532 = vpop.xlane.xlu0 %1531
        %1533 = vadd.xlane.f32.xlu0 %v1508
        %v1534 = vpop.xlane.xlu0 %1533
        %1535 = vadd.xlane.f32.xlu0 %v1509
        %v1536 = vpop.xlane.xlu0 %1535
        %1537 = vadd.xlane.f32.xlu0 %v1510
        %v1538 = vpop.xlane.xlu0 %1537
        %1539 = vadd.xlane.f32.xlu0 %v1511
        %v1540 = vpop.xlane.xlu0 %1539
        %1541 = vadd.xlane.f32.xlu0 %v1512
        %v1542 = vpop.xlane.xlu0 %1541
        %1543 = vadd.xlane.f32.xlu0 %v1513
        %v1544 = vpop.xlane.xlu0 %1543
        %1545 = vadd.xlane.f32.xlu0 %v1514
        %v1546 = vpop.xlane.xlu0 %1545
        %v1547 = vmul.f32 %v1468, 0.0078125
        %v1548 = vmul.f32 %v1470, 0.0078125
        %v1549 = vmul.f32 %v1472, 0.0078125
        %v1550 = vmul.f32 %v1474, 0.0078125
        %v1551 = vmul.f32 %v1476, 0.0078125
        %v1552 = vmul.f32 %v1478, 0.0078125
        %v1553 = vmul.f32 %v1480, 0.0078125
        %v1554 = vmul.f32 %v1482, 0.0078125
        %v1555 = vmul.f32 %v1484, 0.0078125
        %v1556 = vmul.f32 %v1486, 0.0078125
        %v1557 = vmul.f32 %v1488, 0.0078125
        %v1558 = vmul.f32 %v1490, 0.0078125
        %v1559 = vmul.f32 %v1492, 0.0078125
        %v1560 = vmul.f32 %v1494, 0.0078125
        %v1561 = vmul.f32 %v1496, 0.0078125
        %v1562 = vmul.f32 %v1498, 0.0078125
        %v1563 = vmul.f32 %v1516, 0.0078125
        %v1564 = vmul.f32 %v1518, 0.0078125
        %v1565 = vmul.f32 %v1520, 0.0078125
        %v1566 = vmul.f32 %v1522, 0.0078125
        %v1567 = vmul.f32 %v1524, 0.0078125
        %v1568 = vmul.f32 %v1526, 0.0078125
        %v1569 = vmul.f32 %v1528, 0.0078125
        %v1570 = vmul.f32 %v1530, 0.0078125
        %v1571 = vmul.f32 %v1532, 0.0078125
        %v1572 = vmul.f32 %v1534, 0.0078125
        %v1573 = vmul.f32 %v1536, 0.0078125
        %v1574 = vmul.f32 %v1538, 0.0078125
        %v1575 = vmul.f32 %v1540, 0.0078125
        %v1576 = vmul.f32 %v1542, 0.0078125
        %v1577 = vmul.f32 %v1544, 0.0078125
        %v1578 = vmul.f32 %v1546, 0.0078125
        %v1579 = vmul.f32 %v1547, %v1547
        %v1580 = vmul.f32 %v1548, %v1548
        %v1581 = vmul.f32 %v1549, %v1549
        %v1582 = vmul.f32 %v1550, %v1550
        %v1583 = vmul.f32 %v1551, %v1551
        %v1584 = vmul.f32 %v1552, %v1552
        %v1585 = vmul.f32 %v1553, %v1553
        %v1586 = vmul.f32 %v1554, %v1554
        %v1587 = vmul.f32 %v1555, %v1555
        %v1588 = vmul.f32 %v1556, %v1556
        %v1589 = vmul.f32 %v1557, %v1557
        %v1590 = vmul.f32 %v1558, %v1558
        %v1591 = vmul.f32 %v1559, %v1559
        %v1592 = vmul.f32 %v1560, %v1560
        %v1593 = vmul.f32 %v1561, %v1561
        %v1594 = vmul.f32 %v1562, %v1562
        %v1595 = vsub.f32 %v1563, %v1579
        %v1596 = vsub.f32 %v1564, %v1580
        %v1597 = vsub.f32 %v1565, %v1581
        %v1598 = vsub.f32 %v1566, %v1582
        %v1599 = vsub.f32 %v1567, %v1583
        %v1600 = vsub.f32 %v1568, %v1584
        %v1601 = vsub.f32 %v1569, %v1585
        %v1602 = vsub.f32 %v1570, %v1586
        %v1603 = vsub.f32 %v1571, %v1587
        %v1604 = vsub.f32 %v1572, %v1588
        %v1605 = vsub.f32 %v1573, %v1589
        %v1606 = vsub.f32 %v1574, %v1590
        %v1607 = vsub.f32 %v1575, %v1591
        %v1608 = vsub.f32 %v1576, %v1592
        %v1609 = vsub.f32 %v1577, %v1593
        %v1610 = vsub.f32 %v1578, %v1594
        %v1611 = vmax.f32 %v1595, 0.0
        %v1612 = vmax.f32 %v1596, 0.0
        %v1613 = vmax.f32 %v1597, 0.0
        %v1614 = vmax.f32 %v1598, 0.0
        %v1615 = vmax.f32 %v1599, 0.0
        %v1616 = vmax.f32 %v1600, 0.0
        %v1617 = vmax.f32 %v1601, 0.0
        %v1618 = vmax.f32 %v1602, 0.0
        %v1619 = vmax.f32 %v1603, 0.0
        %v1620 = vmax.f32 %v1604, 0.0
        %v1621 = vmax.f32 %v1605, 0.0
        %v1622 = vmax.f32 %v1606, 0.0
        %v1623 = vmax.f32 %v1607, 0.0
        %v1624 = vmax.f32 %v1608, 0.0
        %v1625 = vmax.f32 %v1609, 0.0
        %v1626 = vmax.f32 %v1610, 0.0
        %v1627 = vadd.f32 %v1611, 1e-05
        %v1628 = vadd.f32 %v1612, 1e-05
        %v1629 = vadd.f32 %v1613, 1e-05
        %v1630 = vadd.f32 %v1614, 1e-05
        %v1631 = vadd.f32 %v1615, 1e-05
        %v1632 = vadd.f32 %v1616, 1e-05
        %v1633 = vadd.f32 %v1617, 1e-05
        %v1634 = vadd.f32 %v1618, 1e-05
        %v1635 = vadd.f32 %v1619, 1e-05
        %v1636 = vadd.f32 %v1620, 1e-05
        %v1637 = vadd.f32 %v1621, 1e-05
        %v1638 = vadd.f32 %v1622, 1e-05
        %v1639 = vadd.f32 %v1623, 1e-05
        %v1640 = vadd.f32 %v1624, 1e-05
        %v1641 = vadd.f32 %v1625, 1e-05
        %v1642 = vadd.f32 %v1626, 1e-05
        %v1643 = vrsqrt.pop %v1627
        %v1644 = vrsqrt.pop %v1628
        %v1645 = vrsqrt.pop %v1629
        %v1646 = vrsqrt.pop %v1630
        %v1647 = vrsqrt.pop %v1631
        %v1648 = vrsqrt.pop %v1632
        %v1649 = vrsqrt.pop %v1633
        %v1650 = vrsqrt.pop %v1634
        %v1651 = vrsqrt.pop %v1635
        %v1652 = vrsqrt.pop %v1636
        %v1653 = vrsqrt.pop %v1637
        %v1654 = vrsqrt.pop %v1638
        %v1655 = vrsqrt.pop %v1639
        %v1656 = vrsqrt.pop %v1640
        %v1657 = vrsqrt.pop %v1641
        %v1658 = vrsqrt.pop %v1642
        %v1659 = vsub.f32 %v1449, %v1547
        %v1660 = vsub.f32 %v1450, %v1548
        %v1661 = vsub.f32 %v1451, %v1549
        %v1662 = vsub.f32 %v1452, %v1550
        %v1663 = vsub.f32 %v1453, %v1551
        %v1664 = vsub.f32 %v1454, %v1552
        %v1665 = vsub.f32 %v1455, %v1553
        %v1666 = vsub.f32 %v1456, %v1554
        %v1667 = vsub.f32 %v1457, %v1555
        %v1668 = vsub.f32 %v1458, %v1556
        %v1669 = vsub.f32 %v1459, %v1557
        %v1670 = vsub.f32 %v1460, %v1558
        %v1671 = vsub.f32 %v1461, %v1559
        %v1672 = vsub.f32 %v1462, %v1560
        %v1673 = vsub.f32 %v1463, %v1561
        %v1674 = vsub.f32 %v1464, %v1562
        %v1675 = vmul.f32 %v1659, %v1643
        %v1676 = vmul.f32 %v1660, %v1644
        %v1677 = vmul.f32 %v1661, %v1645
        %v1678 = vmul.f32 %v1662, %v1646
        %v1679 = vmul.f32 %v1663, %v1647
        %v1680 = vmul.f32 %v1664, %v1648
        %v1681 = vmul.f32 %v1665, %v1649
        %v1682 = vmul.f32 %v1666, %v1650
        %v1683 = vmul.f32 %v1667, %v1651
        %v1684 = vmul.f32 %v1668, %v1652
        %v1685 = vmul.f32 %v1669, %v1653
        %v1686 = vmul.f32 %v1670, %v1654
        %v1687 = vmul.f32 %v1671, %v1655
        %v1688 = vmul.f32 %v1672, %v1656
        %v1689 = vmul.f32 %v1673, %v1657
        %v1690 = vmul.f32 %v1674, %v1658
        %v1692 = vlaneseq
        %v1693 = vshrl.u32 %v1692, 7
        %v1694 = vsub.s32 0, %v1693
        %v1695 = vrot.slane %v1465, %v1694
        %v1697 = vmul.f32 %v1675, %v1695
        %v1698 = vmul.f32 %v1676, %v1695
        %v1699 = vmul.f32 %v1677, %v1695
        %v1700 = vmul.f32 %v1678, %v1695
        %v1701 = vmul.f32 %v1679, %v1695
        %v1702 = vmul.f32 %v1680, %v1695
        %v1703 = vmul.f32 %v1681, %v1695
        %v1704 = vmul.f32 %v1682, %v1695
        %v1705 = vmul.f32 %v1683, %v1695
        %v1706 = vmul.f32 %v1684, %v1695
        %v1707 = vmul.f32 %v1685, %v1695
        %v1708 = vmul.f32 %v1686, %v1695
        %v1709 = vmul.f32 %v1687, %v1695
        %v1710 = vmul.f32 %v1688, %v1695
        %v1711 = vmul.f32 %v1689, %v1695
        %v1712 = vmul.f32 %v1690, %v1695
        %v1714 = vlaneseq
        %v1715 = vshrl.u32 %v1714, 7
        %v1716 = vsub.s32 0, %v1715
        %v1717 = vrot.slane %v1466, %v1716
        %v1719 = vadd.f32 %v1697, %v1717
        %v1720 = vadd.f32 %v1698, %v1717
        %v1721 = vadd.f32 %v1699, %v1717
        %v1722 = vadd.f32 %v1700, %v1717
        %v1723 = vadd.f32 %v1701, %v1717
        %v1724 = vadd.f32 %v1702, %v1717
        %v1725 = vadd.f32 %v1703, %v1717
        %v1726 = vadd.f32 %v1704, %v1717
        %v1727 = vadd.f32 %v1705, %v1717
        %v1728 = vadd.f32 %v1706, %v1717
        %v1729 = vadd.f32 %v1707, %v1717
        %v1730 = vadd.f32 %v1708, %v1717
        %v1731 = vadd.f32 %v1709, %v1717
        %v1732 = vadd.f32 %v1710, %v1717
        %v1733 = vadd.f32 %v1711, %v1717
        %v1734 = vadd.f32 %v1712, %v1717
        %v1735 = vpack.c.bf16 %v1720, %v1719
        %v1736 = vpack.c.bf16 %v1722, %v1721
        %v1737 = vpack.c.bf16 %v1724, %v1723
        %v1738 = vpack.c.bf16 %v1726, %v1725
        %v1739 = vpack.c.bf16 %v1728, %v1727
        %v1740 = vpack.c.bf16 %v1730, %v1729
        %v1741 = vpack.c.bf16 %v1732, %v1731
        %v1742 = vpack.c.bf16 %v1734, %v1733
        %v1743 = vld [vmem:[%s9] sm:$0xff]
        %v1744 = vld [vmem:[%s9 + $0x8] sm:$0xff]
        %v1745 = vld [vmem:[%s9 + $0x10] sm:$0xff]
        %v1746 = vld [vmem:[%s9 + $0x18] sm:$0xff]
        %v1747 = vld [vmem:[%s9 + $0x20] sm:$0xff]
        %v1748 = vld [vmem:[%s9 + $0x28] sm:$0xff]
        %v1749 = vld [vmem:[%s9 + $0x30] sm:$0xff]
        %v1750 = vld [vmem:[%s9 + $0x38] sm:$0xff]
        %v1751 = vld [vmem:[%s9 + $0x40] sm:$0xff]
        %v1752 = vld [vmem:[%s9 + $0x48] sm:$0xff]
        %v1753 = vld [vmem:[%s9 + $0x50] sm:$0xff]
        %v1754 = vld [vmem:[%s9 + $0x58] sm:$0xff]
        %v1755 = vld [vmem:[%s9 + $0x60] sm:$0xff]
        %v1756 = vld [vmem:[%s9 + $0x68] sm:$0xff]
        %v1757 = vld [vmem:[%s9 + $0x70] sm:$0xff]
        %v1758 = vld [vmem:[%s9 + $0x78] sm:$0xff]
        %v1759 = vld [vmem:[%s10] sm:$0x3]
        %v1761 = vlaneseq
        %v1762 = vshrl.u32 %v1761, 7
        %v1763 = vsub.s32 0, %v1762
        %v1764 = vrot.slane %v1759, %v1763
        %v1765 = vlaneseq
        %v1766 = vshrl.u32 %v1765, 7
        %v1767 = vsub.s32 1, %v1766
        %v1768 = vrot.slane %v1759, %v1767
        %v1787 = vunpack.c.l.b16 %v1743
        %v1788 = vunpack.c.h.b16 %v1743
        %v1789 = vunpack.c.l.b16 %v1744
        %v1790 = vunpack.c.h.b16 %v1744
        %v1791 = vunpack.c.l.b16 %v1745
        %v1792 = vunpack.c.h.b16 %v1745
        %v1793 = vunpack.c.l.b16 %v1746
        %v1794 = vunpack.c.h.b16 %v1746
        %v1795 = vunpack.c.l.b16 %v1747
        %v1796 = vunpack.c.h.b16 %v1747
        %v1797 = vunpack.c.l.b16 %v1748
        %v1798 = vunpack.c.h.b16 %v1748
        %v1799 = vunpack.c.l.b16 %v1749
        %v1800 = vunpack.c.h.b16 %v1749
        %v1801 = vunpack.c.l.b16 %v1750
        %v1802 = vunpack.c.h.b16 %v1750
        %v1803 = vunpack.c.l.b16 %v1751
        %v1804 = vunpack.c.h.b16 %v1751
        %v1805 = vunpack.c.l.b16 %v1752
        %v1806 = vunpack.c.h.b16 %v1752
        %v1807 = vunpack.c.l.b16 %v1753
        %v1808 = vunpack.c.h.b16 %v1753
        %v1809 = vunpack.c.l.b16 %v1754
        %v1810 = vunpack.c.h.b16 %v1754
        %v1811 = vunpack.c.l.b16 %v1755
        %v1812 = vunpack.c.h.b16 %v1755
        %v1813 = vunpack.c.l.b16 %v1756
        %v1814 = vunpack.c.h.b16 %v1756
        %v1815 = vunpack.c.l.b16 %v1757
        %v1816 = vunpack.c.h.b16 %v1757
        %v1817 = vunpack.c.l.b16 %v1758
        %v1818 = vunpack.c.h.b16 %v1758
        %v1819 = vpack.c.b16 %v1789, %v1787
        %v1820 = vpack.c.b16 %v1790, %v1788
        %v1821 = vpack.c.b16 %v1793, %v1791
        %v1822 = vpack.c.b16 %v1794, %v1792
        %v1823 = vpack.c.b16 %v1797, %v1795
        %v1824 = vpack.c.b16 %v1798, %v1796
        %v1825 = vpack.c.b16 %v1801, %v1799
        %v1826 = vpack.c.b16 %v1802, %v1800
        %v1827 = vpack.c.b16 %v1805, %v1803
        %v1828 = vpack.c.b16 %v1806, %v1804
        %v1829 = vpack.c.b16 %v1809, %v1807
        %v1830 = vpack.c.b16 %v1810, %v1808
        %v1831 = vpack.c.b16 %v1813, %v1811
        %v1832 = vpack.c.b16 %v1814, %v1812
        %v1833 = vpack.c.b16 %v1817, %v1815
        %v1834 = vpack.c.b16 %v1818, %v1816
        %1851 = vmatprep.subr.bf16.mxu0 %v1834
        %1852 = vmatpush1.bf16.msra.mxu0 %v1833
        %1853 = vmatprep.subr.bf16.mxu0 %v1832
        %1854 = vmatpush1.bf16.msra.mxu0 %v1831
        %1855 = vmatprep.subr.bf16.mxu0 %v1830
        %1856 = vmatpush1.bf16.msra.mxu0 %v1829
        %1857 = vmatprep.subr.bf16.mxu0 %v1828
        %1858 = vmatpush1.bf16.msra.mxu0 %v1827
        %1859 = vmatprep.subr.bf16.mxu0 %v1826
        %1860 = vmatpush1.bf16.msra.mxu0 %v1825
        %1861 = vmatprep.subr.bf16.mxu0 %v1824
        %1862 = vmatpush1.bf16.msra.mxu0 %v1823
        %1863 = vmatprep.subr.bf16.mxu0 %v1822
        %1864 = vmatpush1.bf16.msra.mxu0 %v1821
        %1865 = vmatprep.subr.bf16.mxu0 %v1820
        %1866 = vmatpush1.bf16.msra.mxu0 %v1819
        %1867 = vmatprep.subr.bf16.mxu0 0
        %1868 = vmatpush2.bf16.msra.mxu0 0
        %1869 = vmatprep.subr.bf16.mxu0 0
        %1870 = vmatpush2.bf16.msra.mxu0 0
        %1871 = vmatprep.subr.bf16.mxu0 0
        %1872 = vmatpush2.bf16.msra.mxu0 0
        %1873 = vmatprep.subr.bf16.mxu0 0
        %1874 = vmatpush2.bf16.msra.mxu0 0
        %1875 = vmatprep.subr.bf16.mxu0 0
        %1876 = vmatpush2.bf16.msra.mxu0 0
        %1877 = vmatprep.subr.bf16.mxu0 0
        %1878 = vmatpush2.bf16.msra.mxu0 0
        %1879 = vmatprep.subr.bf16.mxu0 0
        %1880 = vmatpush2.bf16.msra.mxu0 0
        %1881 = vmatprep.subr.bf16.mxu0 0
        %1882 = vmatpush2.bf16.msra.mxu0 0
        %1883 = vmatprep.mubr.bf16.mxu0 0
        %1884 = vmatmul.mubr.bf16.gmra.mxu0 %v1735
        %v1885 = vpop.f32.mrf.mxu0
        %v1886 = vadd.f32 %v1764, %v1885
        %v1887 = vpop.f32.mrf.mxu0
        %v1888 = vadd.f32 %v1768, %v1887
        %v1889 = vpop.f32.mrf.mxu0
        %v1890 = vadd.f32 %v1764, %v1889
        %v1891 = vpop.f32.mrf.mxu0
        %v1892 = vadd.f32 %v1768, %v1891
        %1893 = vmatprep.mubr.bf16.mxu0 0
        %1894 = vmatmul.mubr.bf16.gmra.mxu0 %v1736
        %v1895 = vpop.f32.mrf.mxu0
        %v1896 = vadd.f32 %v1764, %v1895
        %v1897 = vpop.f32.mrf.mxu0
        %v1898 = vadd.f32 %v1768, %v1897
        %v1899 = vpop.f32.mrf.mxu0
        %v1900 = vadd.f32 %v1764, %v1899
        %v1901 = vpop.f32.mrf.mxu0
        %v1902 = vadd.f32 %v1768, %v1901
        %1903 = vmatprep.mubr.bf16.mxu0 0
        %1904 = vmatmul.mubr.bf16.gmra.mxu0 %v1737
        %v1905 = vpop.f32.mrf.mxu0
        %v1906 = vadd.f32 %v1764, %v1905
        %v1907 = vpop.f32.mrf.mxu0
        %v1908 = vadd.f32 %v1768, %v1907
        %v1909 = vpop.f32.mrf.mxu0
        %v1910 = vadd.f32 %v1764, %v1909
        %v1911 = vpop.f32.mrf.mxu0
        %v1912 = vadd.f32 %v1768, %v1911
        %1913 = vmatprep.mubr.bf16.mxu0 0
        %1914 = vmatmul.mubr.bf16.gmra.mxu0 %v1738
        %v1915 = vpop.f32.mrf.mxu0
        %v1916 = vadd.f32 %v1764, %v1915
        %v1917 = vpop.f32.mrf.mxu0
        %v1918 = vadd.f32 %v1768, %v1917
        %v1919 = vpop.f32.mrf.mxu0
        %v1920 = vadd.f32 %v1764, %v1919
        %v1921 = vpop.f32.mrf.mxu0
        %v1922 = vadd.f32 %v1768, %v1921
        %1923 = vmatprep.mubr.bf16.mxu0 0
        %1924 = vmatmul.mubr.bf16.gmra.mxu0 %v1739
        %v1925 = vpop.f32.mrf.mxu0
        %v1926 = vadd.f32 %v1764, %v1925
        %v1927 = vpop.f32.mrf.mxu0
        %v1928 = vadd.f32 %v1768, %v1927
        %v1929 = vpop.f32.mrf.mxu0
        %v1930 = vadd.f32 %v1764, %v1929
        %v1931 = vpop.f32.mrf.mxu0
        %v1932 = vadd.f32 %v1768, %v1931
        %1933 = vmatprep.mubr.bf16.mxu0 0
        %1934 = vmatmul.mubr.bf16.gmra.mxu0 %v1740
        %v1935 = vpop.f32.mrf.mxu0
        %v1936 = vadd.f32 %v1764, %v1935
        %v1937 = vpop.f32.mrf.mxu0
        %v1938 = vadd.f32 %v1768, %v1937
        %v1939 = vpop.f32.mrf.mxu0
        %v1940 = vadd.f32 %v1764, %v1939
        %v1941 = vpop.f32.mrf.mxu0
        %v1942 = vadd.f32 %v1768, %v1941
        %1943 = vmatprep.mubr.bf16.mxu0 0
        %1944 = vmatmul.mubr.bf16.gmra.mxu0 %v1741
        %v1945 = vpop.f32.mrf.mxu0
        %v1946 = vadd.f32 %v1764, %v1945
        %v1947 = vpop.f32.mrf.mxu0
        %v1948 = vadd.f32 %v1768, %v1947
        %v1949 = vpop.f32.mrf.mxu0
        %v1950 = vadd.f32 %v1764, %v1949
        %v1951 = vpop.f32.mrf.mxu0
        %v1952 = vadd.f32 %v1768, %v1951
        %1953 = vmatprep.mubr.bf16.mxu0 0
        %1954 = vmatmul.mubr.bf16.gmra.mxu0 %v1742
        %v1955 = vpop.f32.mrf.mxu0
        %v1956 = vadd.f32 %v1764, %v1955
        %v1957 = vpop.f32.mrf.mxu0
        %v1958 = vadd.f32 %v1768, %v1957
        %v1959 = vpop.f32.mrf.mxu0
        %v1960 = vadd.f32 %v1764, %v1959
        %v1961 = vpop.f32.mrf.mxu0
        %v1962 = vadd.f32 %v1768, %v1961
        %1963 = vdwg.mxu0
        %v1964 = vmul.f32 %v1886, 0.5
        %v1965 = vmul.f32 %v1888, 0.5
        %v1966 = vmul.f32 %v1890, 0.5
        %v1967 = vmul.f32 %v1892, 0.5
        %v1968 = vmul.f32 %v1896, 0.5
        %v1969 = vmul.f32 %v1898, 0.5
        %v1970 = vmul.f32 %v1900, 0.5
        %v1971 = vmul.f32 %v1902, 0.5
        %v1972 = vmul.f32 %v1906, 0.5
        %v1973 = vmul.f32 %v1908, 0.5
        %v1974 = vmul.f32 %v1910, 0.5
        %v1975 = vmul.f32 %v1912, 0.5
        %v1976 = vmul.f32 %v1916, 0.5
        %v1977 = vmul.f32 %v1918, 0.5
        %v1978 = vmul.f32 %v1920, 0.5
        %v1979 = vmul.f32 %v1922, 0.5
        %v1980 = vmul.f32 %v1926, 0.5
        %v1981 = vmul.f32 %v1928, 0.5
        %v1982 = vmul.f32 %v1930, 0.5
        %v1983 = vmul.f32 %v1932, 0.5
        %v1984 = vmul.f32 %v1936, 0.5
        %v1985 = vmul.f32 %v1938, 0.5
        %v1986 = vmul.f32 %v1940, 0.5
        %v1987 = vmul.f32 %v1942, 0.5
        %v1988 = vmul.f32 %v1946, 0.5
        %v1989 = vmul.f32 %v1948, 0.5
        %v1990 = vmul.f32 %v1950, 0.5
        %v1991 = vmul.f32 %v1952, 0.5
        %v1992 = vmul.f32 %v1956, 0.5
        %v1993 = vmul.f32 %v1958, 0.5
        %v1994 = vmul.f32 %v1960, 0.5
        %v1995 = vmul.f32 %v1962, 0.5
        %v1996 = vmul.f32 %v1886, 0.70710677
        %v1997 = vmul.f32 %v1888, 0.70710677
        %v1998 = vmul.f32 %v1890, 0.70710677
        %v1999 = vmul.f32 %v1892, 0.70710677
        %v2000 = vmul.f32 %v1896, 0.70710677
        %v2001 = vmul.f32 %v1898, 0.70710677
        %v2002 = vmul.f32 %v1900, 0.70710677
        %v2003 = vmul.f32 %v1902, 0.70710677
        %v2004 = vmul.f32 %v1906, 0.70710677
        %v2005 = vmul.f32 %v1908, 0.70710677
        %v2006 = vmul.f32 %v1910, 0.70710677
        %v2007 = vmul.f32 %v1912, 0.70710677
        %v2008 = vmul.f32 %v1916, 0.70710677
        %v2009 = vmul.f32 %v1918, 0.70710677
        %v2010 = vmul.f32 %v1920, 0.70710677
        %v2011 = vmul.f32 %v1922, 0.70710677
        %v2012 = vmul.f32 %v1926, 0.70710677
        %v2013 = vmul.f32 %v1928, 0.70710677
        %v2014 = vmul.f32 %v1930, 0.70710677
        %v2015 = vmul.f32 %v1932, 0.70710677
        %v2016 = vmul.f32 %v1936, 0.70710677
        %v2017 = vmul.f32 %v1938, 0.70710677
        %v2018 = vmul.f32 %v1940, 0.70710677
        %v2019 = vmul.f32 %v1942, 0.70710677
        %v2020 = vmul.f32 %v1946, 0.70710677
        %v2021 = vmul.f32 %v1948, 0.70710677
        %v2022 = vmul.f32 %v1950, 0.70710677
        %v2023 = vmul.f32 %v1952, 0.70710677
        %v2024 = vmul.f32 %v1956, 0.70710677
        %v2025 = vmul.f32 %v1958, 0.70710677
        %v2026 = vmul.f32 %v1960, 0.70710677
        %v2027 = vmul.f32 %v1962, 0.70710677
        %v2028 = verf.f32.pop %v1996
        %v2029 = verf.f32.pop %v1997
        %v2030 = verf.f32.pop %v1998
        %v2031 = verf.f32.pop %v1999
        %v2032 = verf.f32.pop %v2000
        %v2033 = verf.f32.pop %v2001
        %v2034 = verf.f32.pop %v2002
        %v2035 = verf.f32.pop %v2003
        %v2036 = verf.f32.pop %v2004
        %v2037 = verf.f32.pop %v2005
        %v2038 = verf.f32.pop %v2006
        %v2039 = verf.f32.pop %v2007
        %v2040 = verf.f32.pop %v2008
        %v2041 = verf.f32.pop %v2009
        %v2042 = verf.f32.pop %v2010
        %v2043 = verf.f32.pop %v2011
        %v2044 = verf.f32.pop %v2012
        %v2045 = verf.f32.pop %v2013
        %v2046 = verf.f32.pop %v2014
        %v2047 = verf.f32.pop %v2015
        %v2048 = verf.f32.pop %v2016
        %v2049 = verf.f32.pop %v2017
        %v2050 = verf.f32.pop %v2018
        %v2051 = verf.f32.pop %v2019
        %v2052 = verf.f32.pop %v2020
        %v2053 = verf.f32.pop %v2021
        %v2054 = verf.f32.pop %v2022
        %v2055 = verf.f32.pop %v2023
        %v2056 = verf.f32.pop %v2024
        %v2057 = verf.f32.pop %v2025
        %v2058 = verf.f32.pop %v2026
        %v2059 = verf.f32.pop %v2027
        %v2060 = vadd.f32 %v2028, 1.0
        %v2061 = vadd.f32 %v2029, 1.0
        %v2062 = vadd.f32 %v2030, 1.0
        %v2063 = vadd.f32 %v2031, 1.0
        %v2064 = vadd.f32 %v2032, 1.0
        %v2065 = vadd.f32 %v2033, 1.0
        %v2066 = vadd.f32 %v2034, 1.0
        %v2067 = vadd.f32 %v2035, 1.0
        %v2068 = vadd.f32 %v2036, 1.0
        %v2069 = vadd.f32 %v2037, 1.0
        %v2070 = vadd.f32 %v2038, 1.0
        %v2071 = vadd.f32 %v2039, 1.0
        %v2072 = vadd.f32 %v2040, 1.0
        %v2073 = vadd.f32 %v2041, 1.0
        %v2074 = vadd.f32 %v2042, 1.0
        %v2075 = vadd.f32 %v2043, 1.0
        %v2076 = vadd.f32 %v2044, 1.0
        %v2077 = vadd.f32 %v2045, 1.0
        %v2078 = vadd.f32 %v2046, 1.0
        %v2079 = vadd.f32 %v2047, 1.0
        %v2080 = vadd.f32 %v2048, 1.0
        %v2081 = vadd.f32 %v2049, 1.0
        %v2082 = vadd.f32 %v2050, 1.0
        %v2083 = vadd.f32 %v2051, 1.0
        %v2084 = vadd.f32 %v2052, 1.0
        %v2085 = vadd.f32 %v2053, 1.0
        %v2086 = vadd.f32 %v2054, 1.0
        %v2087 = vadd.f32 %v2055, 1.0
        %v2088 = vadd.f32 %v2056, 1.0
        %v2089 = vadd.f32 %v2057, 1.0
        %v2090 = vadd.f32 %v2058, 1.0
        %v2091 = vadd.f32 %v2059, 1.0
        %v2092 = vmul.f32 %v1964, %v2060
        %v2093 = vmul.f32 %v1965, %v2061
        %v2094 = vmul.f32 %v1966, %v2062
        %v2095 = vmul.f32 %v1967, %v2063
        %v2096 = vmul.f32 %v1968, %v2064
        %v2097 = vmul.f32 %v1969, %v2065
        %v2098 = vmul.f32 %v1970, %v2066
        %v2099 = vmul.f32 %v1971, %v2067
        %v2100 = vmul.f32 %v1972, %v2068
        %v2101 = vmul.f32 %v1973, %v2069
        %v2102 = vmul.f32 %v1974, %v2070
        %v2103 = vmul.f32 %v1975, %v2071
        %v2104 = vmul.f32 %v1976, %v2072
        %v2105 = vmul.f32 %v1977, %v2073
        %v2106 = vmul.f32 %v1978, %v2074
        %v2107 = vmul.f32 %v1979, %v2075
        %v2108 = vmul.f32 %v1980, %v2076
        %v2109 = vmul.f32 %v1981, %v2077
        %v2110 = vmul.f32 %v1982, %v2078
        %v2111 = vmul.f32 %v1983, %v2079
        %v2112 = vmul.f32 %v1984, %v2080
        %v2113 = vmul.f32 %v1985, %v2081
        %v2114 = vmul.f32 %v1986, %v2082
        %v2115 = vmul.f32 %v1987, %v2083
        %v2116 = vmul.f32 %v1988, %v2084
        %v2117 = vmul.f32 %v1989, %v2085
        %v2118 = vmul.f32 %v1990, %v2086
        %v2119 = vmul.f32 %v1991, %v2087
        %v2120 = vmul.f32 %v1992, %v2088
        %v2121 = vmul.f32 %v1993, %v2089
        %v2122 = vmul.f32 %v1994, %v2090
        %v2123 = vmul.f32 %v1995, %v2091
        %v2124 = vpack.c.bf16 %v2094, %v2092
        %v2125 = vpack.c.bf16 %v2095, %v2093
        %v2126 = vpack.c.bf16 %v2098, %v2096
        %v2127 = vpack.c.bf16 %v2099, %v2097
        %v2128 = vpack.c.bf16 %v2102, %v2100
        %v2129 = vpack.c.bf16 %v2103, %v2101
        %v2130 = vpack.c.bf16 %v2106, %v2104
        %v2131 = vpack.c.bf16 %v2107, %v2105
        %v2132 = vpack.c.bf16 %v2110, %v2108
        %v2133 = vpack.c.bf16 %v2111, %v2109
        %v2134 = vpack.c.bf16 %v2114, %v2112
        %v2135 = vpack.c.bf16 %v2115, %v2113
        %v2136 = vpack.c.bf16 %v2118, %v2116
        %v2137 = vpack.c.bf16 %v2119, %v2117
        %v2138 = vpack.c.bf16 %v2122, %v2120
        %v2139 = vpack.c.bf16 %v2123, %v2121
        %v2140 = vld [vmem:[%s11] sm:$0xf]
        %v2141 = vld [vmem:[%s11 + $0x4] sm:$0xf]
        %v2142 = vld [vmem:[%s11 + $0x8] sm:$0xf]
        %v2143 = vld [vmem:[%s11 + $0xc] sm:$0xf]
        %v2144 = vld [vmem:[%s11 + $0x10] sm:$0xf]
        %v2145 = vld [vmem:[%s11 + $0x14] sm:$0xf]
        %v2146 = vld [vmem:[%s11 + $0x18] sm:$0xf]
        %v2147 = vld [vmem:[%s11 + $0x1c] sm:$0xf]
        %v2148 = vld [vmem:[%s11 + $0x20] sm:$0xf]
        %v2149 = vld [vmem:[%s11 + $0x24] sm:$0xf]
        %v2150 = vld [vmem:[%s11 + $0x28] sm:$0xf]
        %v2151 = vld [vmem:[%s11 + $0x2c] sm:$0xf]
        %v2152 = vld [vmem:[%s11 + $0x30] sm:$0xf]
        %v2153 = vld [vmem:[%s11 + $0x34] sm:$0xf]
        %v2154 = vld [vmem:[%s11 + $0x38] sm:$0xf]
        %v2155 = vld [vmem:[%s11 + $0x3c] sm:$0xf]
        %v2156 = vld [vmem:[%s11 + $0x40] sm:$0xf]
        %v2157 = vld [vmem:[%s11 + $0x44] sm:$0xf]
        %v2158 = vld [vmem:[%s11 + $0x48] sm:$0xf]
        %v2159 = vld [vmem:[%s11 + $0x4c] sm:$0xf]
        %v2160 = vld [vmem:[%s11 + $0x50] sm:$0xf]
        %v2161 = vld [vmem:[%s11 + $0x54] sm:$0xf]
        %v2162 = vld [vmem:[%s11 + $0x58] sm:$0xf]
        %v2163 = vld [vmem:[%s11 + $0x5c] sm:$0xf]
        %v2164 = vld [vmem:[%s11 + $0x60] sm:$0xf]
        %v2165 = vld [vmem:[%s11 + $0x64] sm:$0xf]
        %v2166 = vld [vmem:[%s11 + $0x68] sm:$0xf]
        %v2167 = vld [vmem:[%s11 + $0x6c] sm:$0xf]
        %v2168 = vld [vmem:[%s11 + $0x70] sm:$0xf]
        %v2169 = vld [vmem:[%s11 + $0x74] sm:$0xf]
        %v2170 = vld [vmem:[%s11 + $0x78] sm:$0xf]
        %v2171 = vld [vmem:[%s11 + $0x7c] sm:$0xf]
        %v2172 = vld [vmem:[%s12] sm:$0x1]
        %v2174 = vlaneseq
        %v2175 = vshrl.u32 %v2174, 7
        %v2176 = vsub.s32 0, %v2175
        %v2177 = vrot.slane %v2172, %v2176
        %v2211 = vunpack.c.l.b16 %v2140
        %v2212 = vunpack.c.l.b16 %v2141
        %v2213 = vunpack.c.l.b16 %v2142
        %v2214 = vunpack.c.l.b16 %v2143
        %v2215 = vunpack.c.l.b16 %v2144
        %v2216 = vunpack.c.l.b16 %v2145
        %v2217 = vunpack.c.l.b16 %v2146
        %v2218 = vunpack.c.l.b16 %v2147
        %v2219 = vunpack.c.l.b16 %v2148
        %v2220 = vunpack.c.l.b16 %v2149
        %v2221 = vunpack.c.l.b16 %v2150
        %v2222 = vunpack.c.l.b16 %v2151
        %v2223 = vunpack.c.l.b16 %v2152
        %v2224 = vunpack.c.l.b16 %v2153
        %v2225 = vunpack.c.l.b16 %v2154
        %v2226 = vunpack.c.l.b16 %v2155
        %v2227 = vunpack.c.l.b16 %v2156
        %v2228 = vunpack.c.l.b16 %v2157
        %v2229 = vunpack.c.l.b16 %v2158
        %v2230 = vunpack.c.l.b16 %v2159
        %v2231 = vunpack.c.l.b16 %v2160
        %v2232 = vunpack.c.l.b16 %v2161
        %v2233 = vunpack.c.l.b16 %v2162
        %v2234 = vunpack.c.l.b16 %v2163
        %v2235 = vunpack.c.l.b16 %v2164
        %v2236 = vunpack.c.l.b16 %v2165
        %v2237 = vunpack.c.l.b16 %v2166
        %v2238 = vunpack.c.l.b16 %v2167
        %v2239 = vunpack.c.l.b16 %v2168
        %v2240 = vunpack.c.l.b16 %v2169
        %v2241 = vunpack.c.l.b16 %v2170
        %v2242 = vunpack.c.l.b16 %v2171
        %v2243 = vpack.c.b16 %v2212, %v2211
        %v2244 = vpack.c.b16 %v2214, %v2213
        %v2245 = vpack.c.b16 %v2216, %v2215
        %v2246 = vpack.c.b16 %v2218, %v2217
        %v2247 = vpack.c.b16 %v2220, %v2219
        %v2248 = vpack.c.b16 %v2222, %v2221
        %v2249 = vpack.c.b16 %v2224, %v2223
        %v2250 = vpack.c.b16 %v2226, %v2225
        %v2251 = vpack.c.b16 %v2228, %v2227
        %v2252 = vpack.c.b16 %v2230, %v2229
        %v2253 = vpack.c.b16 %v2232, %v2231
        %v2254 = vpack.c.b16 %v2234, %v2233
        %v2255 = vpack.c.b16 %v2236, %v2235
        %v2256 = vpack.c.b16 %v2238, %v2237
        %v2257 = vpack.c.b16 %v2240, %v2239
        %v2258 = vpack.c.b16 %v2242, %v2241
        %2275 = vmatprep.subr.bf16.mxu0 0
        %2276 = vmatpush1.bf16.msra.mxu0 %v2250
        %2277 = vmatprep.subr.bf16.mxu0 0
        %2278 = vmatpush1.bf16.msra.mxu0 %v2249
        %2279 = vmatprep.subr.bf16.mxu0 0
        %2280 = vmatpush1.bf16.msra.mxu0 %v2248
        %2281 = vmatprep.subr.bf16.mxu0 0
        %2282 = vmatpush1.bf16.msra.mxu0 %v2247
        %2283 = vmatprep.subr.bf16.mxu0 0
        %2284 = vmatpush1.bf16.msra.mxu0 %v2246
        %2285 = vmatprep.subr.bf16.mxu0 0
        %2286 = vmatpush1.bf16.msra.mxu0 %v2245
        %2287 = vmatprep.subr.bf16.mxu0 0
        %2288 = vmatpush1.bf16.msra.mxu0 %v2244
        %2289 = vmatprep.subr.bf16.mxu0 0
        %2290 = vmatpush1.bf16.msra.mxu0 %v2243
        %2291 = vmatprep.subr.bf16.mxu0 0
        %2292 = vmatpush2.bf16.msra.mxu0 %v2258
        %2293 = vmatprep.subr.bf16.mxu0 0
        %2294 = vmatpush2.bf16.msra.mxu0 %v2257
        %2295 = vmatprep.subr.bf16.mxu0 0
        %2296 = vmatpush2.bf16.msra.mxu0 %v2256
        %2297 = vmatprep.subr.bf16.mxu0 0
        %2298 = vmatpush2.bf16.msra.mxu0 %v2255
        %2299 = vmatprep.subr.bf16.mxu0 0
        %2300 = vmatpush2.bf16.msra.mxu0 %v2254
        %2301 = vmatprep.subr.bf16.mxu0 0
        %2302 = vmatpush2.bf16.msra.mxu0 %v2253
        %2303 = vmatprep.subr.bf16.mxu0 0
        %2304 = vmatpush2.bf16.msra.mxu0 %v2252
        %2305 = vmatprep.subr.bf16.mxu0 0
        %2306 = vmatpush2.bf16.msra.mxu0 %v2251
        %2307 = vmatprep.mubr.bf16.mxu0 %v2125
        %2308 = vmatmul.mubr.bf16.gmra.mxu0 %v2124
        %v2309 = vpop.f32.mrf.mxu0
        %v2310 = vadd.f32 %v2177, %v2309
        %v2311 = vpop.f32.mrf.mxu0
        %v2312 = vpop.f32.mrf.mxu0
        %v2313 = vadd.f32 %v2177, %v2312
        %v2314 = vpop.f32.mrf.mxu0
        %2315 = vmatprep.mubr.bf16.mxu0 %v2127
        %2316 = vmatmul.mubr.bf16.gmra.mxu0 %v2126
        %v2317 = vpop.f32.mrf.mxu0
        %v2318 = vadd.f32 %v2177, %v2317
        %v2319 = vpop.f32.mrf.mxu0
        %v2320 = vpop.f32.mrf.mxu0
        %v2321 = vadd.f32 %v2177, %v2320
        %v2322 = vpop.f32.mrf.mxu0
        %2323 = vmatprep.mubr.bf16.mxu0 %v2129
        %2324 = vmatmul.mubr.bf16.gmra.mxu0 %v2128
        %v2325 = vpop.f32.mrf.mxu0
        %v2326 = vadd.f32 %v2177, %v2325
        %v2327 = vpop.f32.mrf.mxu0
        %v2328 = vpop.f32.mrf.mxu0
        %v2329 = vadd.f32 %v2177, %v2328
        %v2330 = vpop.f32.mrf.mxu0
        %2331 = vmatprep.mubr.bf16.mxu0 %v2131
        %2332 = vmatmul.mubr.bf16.gmra.mxu0 %v2130
        %v2333 = vpop.f32.mrf.mxu0
        %v2334 = vadd.f32 %v2177, %v2333
        %v2335 = vpop.f32.mrf.mxu0
        %v2336 = vpop.f32.mrf.mxu0
        %v2337 = vadd.f32 %v2177, %v2336
        %v2338 = vpop.f32.mrf.mxu0
        %2339 = vmatprep.mubr.bf16.mxu0 %v2133
        %2340 = vmatmul.mubr.bf16.gmra.mxu0 %v2132
        %v2341 = vpop.f32.mrf.mxu0
        %v2342 = vadd.f32 %v2177, %v2341
        %v2343 = vpop.f32.mrf.mxu0
        %v2344 = vpop.f32.mrf.mxu0
        %v2345 = vadd.f32 %v2177, %v2344
        %v2346 = vpop.f32.mrf.mxu0
        %2347 = vmatprep.mubr.bf16.mxu0 %v2135
        %2348 = vmatmul.mubr.bf16.gmra.mxu0 %v2134
        %v2349 = vpop.f32.mrf.mxu0
        %v2350 = vadd.f32 %v2177, %v2349
        %v2351 = vpop.f32.mrf.mxu0
        %v2352 = vpop.f32.mrf.mxu0
        %v2353 = vadd.f32 %v2177, %v2352
        %v2354 = vpop.f32.mrf.mxu0
        %2355 = vmatprep.mubr.bf16.mxu0 %v2137
        %2356 = vmatmul.mubr.bf16.gmra.mxu0 %v2136
        %v2357 = vpop.f32.mrf.mxu0
        %v2358 = vadd.f32 %v2177, %v2357
        %v2359 = vpop.f32.mrf.mxu0
        %v2360 = vpop.f32.mrf.mxu0
        %v2361 = vadd.f32 %v2177, %v2360
        %v2362 = vpop.f32.mrf.mxu0
        %2363 = vmatprep.mubr.bf16.mxu0 %v2139
        %2364 = vmatmul.mubr.bf16.gmra.mxu0 %v2138
        %v2365 = vpop.f32.mrf.mxu0
        %v2366 = vadd.f32 %v2177, %v2365
        %v2367 = vpop.f32.mrf.mxu0
        %v2368 = vpop.f32.mrf.mxu0
        %v2369 = vadd.f32 %v2177, %v2368
        %v2370 = vpop.f32.mrf.mxu0
        %2371 = vdwg.mxu0
        %v2372 = vadd.f32 %v1449, %v2310
        %v2373 = vadd.f32 %v1450, %v2313
        %v2374 = vadd.f32 %v1451, %v2318
        %v2375 = vadd.f32 %v1452, %v2321
        %v2376 = vadd.f32 %v1453, %v2326
        %v2377 = vadd.f32 %v1454, %v2329
        %v2378 = vadd.f32 %v1455, %v2334
        %v2379 = vadd.f32 %v1456, %v2337
        %v2380 = vadd.f32 %v1457, %v2342
        %v2381 = vadd.f32 %v1458, %v2345
        %v2382 = vadd.f32 %v1459, %v2350
        %v2383 = vadd.f32 %v1460, %v2353
        %v2384 = vadd.f32 %v1461, %v2358
        %v2385 = vadd.f32 %v1462, %v2361
        %v2386 = vadd.f32 %v1463, %v2366
        %v2387 = vadd.f32 %v1464, %v2369
        %v2388 = vpack.c.bf16 %v2373, %v2372
        %v2389 = vpack.c.bf16 %v2375, %v2374
        %v2390 = vpack.c.bf16 %v2377, %v2376
        %v2391 = vpack.c.bf16 %v2379, %v2378
        %v2392 = vpack.c.bf16 %v2381, %v2380
        %v2393 = vpack.c.bf16 %v2383, %v2382
        %v2394 = vpack.c.bf16 %v2385, %v2384
        %v2395 = vpack.c.bf16 %v2387, %v2386
        %v2404 = vunpack.c.l.b16 %v2388
        %v2405 = vunpack.c.h.b16 %v2388
        %v2406 = vunpack.c.l.b16 %v2389
        %v2407 = vunpack.c.h.b16 %v2389
        %v2408 = vunpack.c.l.b16 %v2390
        %v2409 = vunpack.c.h.b16 %v2390
        %v2410 = vunpack.c.l.b16 %v2391
        %v2411 = vunpack.c.h.b16 %v2391
        %v2412 = vunpack.c.l.b16 %v2392
        %v2413 = vunpack.c.h.b16 %v2392
        %v2414 = vunpack.c.l.b16 %v2393
        %v2415 = vunpack.c.h.b16 %v2393
        %v2416 = vunpack.c.l.b16 %v2394
        %v2417 = vunpack.c.h.b16 %v2394
        %v2418 = vunpack.c.l.b16 %v2395
        %v2419 = vunpack.c.h.b16 %v2395
        %v2420 = vpack.c.b16 %v2404, %v2404
        %v2421 = vpack.c.b16 %v2405, %v2405
        %v2422 = vpack.c.b16 %v2406, %v2406
        %v2423 = vpack.c.b16 %v2407, %v2407
        %v2424 = vpack.c.b16 %v2408, %v2408
        %v2425 = vpack.c.b16 %v2409, %v2409
        %v2426 = vpack.c.b16 %v2410, %v2410
        %v2427 = vpack.c.b16 %v2411, %v2411
        %v2428 = vpack.c.b16 %v2412, %v2412
        %v2429 = vpack.c.b16 %v2413, %v2413
        %v2430 = vpack.c.b16 %v2414, %v2414
        %v2431 = vpack.c.b16 %v2415, %v2415
        %v2432 = vpack.c.b16 %v2416, %v2416
        %v2433 = vpack.c.b16 %v2417, %v2417
        %v2434 = vpack.c.b16 %v2418, %v2418
        %v2435 = vpack.c.b16 %v2419, %v2419
        %2452 = vst [vmem:[%s487] sm:$0xf] %v2420
        %2453 = vst [vmem:[%s487 + $0x4] sm:$0xf] %v2421
        %2454 = vst [vmem:[%s487 + $0x8] sm:$0xf] %v2422
        %2455 = vst [vmem:[%s487 + $0xc] sm:$0xf] %v2423
        %2456 = vst [vmem:[%s487 + $0x10] sm:$0xf] %v2424
        %2457 = vst [vmem:[%s487 + $0x14] sm:$0xf] %v2425
        %2458 = vst [vmem:[%s487 + $0x18] sm:$0xf] %v2426
        %2459 = vst [vmem:[%s487 + $0x1c] sm:$0xf] %v2427
        %2460 = vst [vmem:[%s487 + $0x20] sm:$0xf] %v2428
        %2461 = vst [vmem:[%s487 + $0x24] sm:$0xf] %v2429
        %2462 = vst [vmem:[%s487 + $0x28] sm:$0xf] %v2430
        %2463 = vst [vmem:[%s487 + $0x2c] sm:$0xf] %v2431
        %2464 = vst [vmem:[%s487 + $0x30] sm:$0xf] %v2432
        %2465 = vst [vmem:[%s487 + $0x34] sm:$0xf] %v2433
        %2466 = vst [vmem:[%s487 + $0x38] sm:$0xf] %v2434
        %2467 = vst [vmem:[%s487 + $0x3c] sm:$0xf] %v2435
        %s2468 = sand.u32 %s317, 1
        %s2469 = scalar_lea.sflag [#allocation5], %s2468
        %s2470 = sand.u32 %s317, 1
        %s2471 = smul.addr %s2470, 64
        %s2472 = scalar_lea.vmem [#allocation9], %s2471
        // Predicated region
        $region85: #{tpu_custom_call.1} parent=71 // pred_check
          %p2473 = pneg %p327
        $region86: #{tpu_custom_call.1} parent=71 // pred_check_branch
          %2475 = sbr.rel (%p2473) target = $region88
        $region87: #{tpu_custom_call.1} parent=71 // pred_region
          %s2477 = ssub.s32 1024, 1024
          %2478 = vsyncadd %s2469, %s2477
          %s2479 = smul.addr %s31, 16
          %s2480 = smul.addr %s2479, 64
          %s2481 = scalar_lea.hbm %s13, %s2480
          %s2482 = sshll.u32 %s2472, 4
          %s2483 = int_to_ptr.vmem [resolvable:$true] %s2482
          %2488 = dma.vmem_to_hbm [thread:$0]  %s2483, 1024, %s2481, %s2469, 64, 64, 4
        $region88: #{tpu_custom_call.1} parent=71 // pred_fallthru
          _
      $region72: #{tpu_custom_call.1} parent=5 // pred_fallthru
        _
      %p2489 = scmp.le.s32.totalorder 2, %s26
      // Predicated region
      $region89: #{tpu_custom_call.1} parent=5 // pred_check
        %p2490 = pneg %p2489
      $region90: #{tpu_custom_call.1} parent=5 // pred_check_branch
        %2492 = sbr.rel (%p2490) target = $region92
      $region91: #{tpu_custom_call.1} parent=5 // pred_region
        %s2493 = ssub.s32 %s26, 2
        // Predicated region
        $region93: #{tpu_custom_call.1} parent=91 // pred_check
          %p2494 = pneg %p333
        $region94: #{tpu_custom_call.1} parent=91 // pred_check_branch
          %2496 = sbr.rel (%p2494) target = $region96
        $region95: #{tpu_custom_call.1} parent=91 // pred_region
          %s2497 = sand.u32 %s318, 1
          %s2498 = scalar_lea.sflag [#allocation5], %s2497
          %s2499 = sand.u32 %s318, 1
          %s2500 = smul.addr %s2499, 64
          %s2501 = scalar_lea.vmem [#allocation9], %s2500
          %2502 = dma.done %s2498, 1024
        $region96: #{tpu_custom_call.1} parent=91 // pred_fallthru
          _
      $region92: #{tpu_custom_call.1} parent=5 // pred_fallthru
        _
    $region6: #{tpu_custom_call.1} parent=1 // loop_footer
      %s30 = sadd.s32 1, %s26
    $region7: #{tpu_custom_call.1} parent=1 // loop_footer_branch
      %25 = sbr.rel target = $region3
    $region8: #{tpu_custom_call.1} parent=1 // loop_exit
      _
    %2503 = vsyncpa [#allocation4], 1
    %s2504 = scalar_lea.sflag [#allocation4], 1
    %2505 = vsyncpa %s2504, 1
    %2506 = vsyncpa [#allocation7], 1
    %2507 = vsyncpa [#allocation5], 1
    %s2508 = scalar_lea.sflag [#allocation5], 1
    %2509 = vsyncpa %s2508, 1

// kernel: tpu_custom_call.1
$region0: #{tpu_custom_call.1}
  #allocation0 [shape = 'u32[]', space=smem, size = 0x4, offset = 0x4, fixed_abs, tag = 'smem constant byte address 0x4 - core index']
  #allocation1 [shape = 'u32[144,128]{1,0:T(1,128)}', space=vmem, size = 0x12000, scoped, tag = 'internal scratch']
  #allocation2 [shape = 'f32[128,128]{1,0:T(8,128)}', space=vmem, size = 0x10000, scoped, tag = 'scratch operand']
  %s0 = inlined_call_operand.hbm [shape: bf16[8,128,128], index: 0, kind: input, shape index: {}]
  %s1 = inlined_call_operand.vmem [shape: f32[1,128], index: 1, kind: input, shape index: {}]
  %s2 = inlined_call_operand.vmem [shape: f32[1,128], index: 2, kind: input, shape index: {}]
  %s3 = inlined_call_operand.hbm [shape: bf16[128,128], index: 3, kind: input, shape index: {}]
  %s4 = inlined_call_operand.vmem [shape: f32[128,1], index: 4, kind: input, shape index: {}]
  %s5 = inlined_call_operand.hbm [shape: bf16[128,128], index: 5, kind: input, shape index: {}]
  %s6 = inlined_call_operand.vmem [shape: f32[128,1], index: 6, kind: input, shape index: {}]
  %s7 = inlined_call_operand.vmem [shape: f32[1,128], index: 7, kind: input, shape index: {}]
  %s8 = inlined_call_operand.vmem [shape: f32[1,128], index: 8, kind: input, shape index: {}]
  %s9 = inlined_call_operand.vmem [shape: bf16[128,256], index: 9, kind: input, shape index: {}]
  %s10 = inlined_call_operand.vmem [shape: f32[1,256], index: 10, kind: input, shape index: {}]
  %s11 = inlined_call_operand.vmem [shape: bf16[256,128], index: 11, kind: input, shape index: {}]
  %s12 = inlined_call_operand.vmem [shape: f32[1,128], index: 12, kind: input, shape index: {}]
  %s13 = inlined_call_operand.hbm [shape: bf16[8,128,128], index: 13, kind: output, shape index: {}]
  %s14 = sld [smem:[#allocation0]]
  $region97: #{tpu_custom_call.1} parent=0
    _
  %s16 = ssub.s32 1, %s14
  %s17 = scalar_select 0, %s16, %s14
  $region1: #{tpu_custom_call.1} parent=0
    #allocation3 [shape = 'u8[65536]{0}', space=vmem, size = 0x10000, scoped, tag = 'input window, operand 0']
    #allocation4 [shape = 's32[2]{0}', space=sflag, size = 0x8, scoped, tag = 'scoped memory for tpu_custom_call.1']
    #allocation5 [shape = 's32[2]{0}', space=sflag, size = 0x8, scoped, tag = 'scoped memory for tpu_custom_call.1']
    #allocation6 [shape = 'u8[32768]{0}', space=vmem, size = 0x8000, scoped, tag = 'input window, operand 3, single buffered']
    #allocation7 [shape = 's32[1]{0}', space=sflag, size = 0x4, scoped, tag = 'scoped memory for tpu_custom_call.1']
    #allocation8 [shape = 'u8[32768]{0}', space=vmem, size = 0x8000, scoped, tag = 'input window, operand 5, single buffered']
    #allocation9 [shape = 'u8[65536]{0}', space=vmem, size = 0x10000, scoped, tag = 'output window, operand 0']
    %18 = vsyncpa [#allocation4], 0
    %s19 = scalar_lea.sflag [#allocation4], 1
    %20 = vsyncpa %s19, 0
    %21 = vsyncpa [#allocation7], 0
    %22 = vsyncpa [#allocation5], 0
    %s23 = scalar_lea.sflag [#allocation5], 1
    %24 = vsyncpa %s23, 0
    loop: start=0, step=1, limit=10
    $region2: #{tpu_custom_call.1} parent=1 // loop_pre_header
      _
    $region3: #{tpu_custom_call.1} parent=1 // loop_header
      %s26 = sphi 0, %s30
      %p27 = scmp.ge.s32.totalorder %s26, 10
      %s36 = sphi 0, %s38
      %s39 = sphi 0, %s36
      %s40 = sphi 0, %s39
      %s56 = sphi 0, %s40
      %s60 = sphi 0, %s60
      %s62 = sphi 0, %s60
      %s63 = sphi 0, %s62
      %s77 = sphi 0, %s63
      %s81 = sphi 0, %s81
      %s83 = sphi 0, %s81
      %s84 = sphi 0, %s83
      %s98 = sphi 0, %s84
      %s102 = sphi 0, %s102
      %s104 = sphi 0, %s102
      %s105 = sphi 0, %s104
      %s119 = sphi 0, %s105
      %s123 = sphi 0, %s123
      %s125 = sphi 0, %s123
      %s126 = sphi 0, %s125
      %s140 = sphi 0, %s126
      %s144 = sphi 0, %s144
      %s146 = sphi 0, %s144
      %s147 = sphi 0, %s146
      %s161 = sphi 0, %s147
      %s165 = sphi 0, %s165
      %s167 = sphi 0, %s165
      %s168 = sphi 0, %s167
      %s182 = sphi 0, %s168
      %s186 = sphi 0, %s186
      %s188 = sphi 0, %s186
      %s189 = sphi 0, %s188
      %s203 = sphi 0, %s189
      %s207 = sphi 0, %s207
      %s209 = sphi 0, %s207
      %s210 = sphi 0, %s209
      %s224 = sphi 0, %s210
      %s228 = sphi 0, %s228
      %s230 = sphi 0, %s228
      %s231 = sphi 0, %s230
      %s245 = sphi 0, %s231
      %s249 = sphi 0, %s249
      %s251 = sphi 0, %s249
      %s252 = sphi 0, %s251
      %s266 = sphi 0, %s252
      %s270 = sphi 0, %s270
      %s272 = sphi 0, %s270
      %s273 = sphi 0, %s272
      %s287 = sphi 0, %s273
      %s291 = sphi 0, %s291
      %s293 = sphi 0, %s291
      %s294 = sphi 0, %s293
      %s308 = sphi 0, %s294
      %s314 = sphi 0, %s316
      %s317 = sphi 0, %s314
      %s318 = sphi 0, %s317
      %s334 = sphi 0, %s318
    $region4: #{tpu_custom_call.1} parent=1 // loop_header_branch
      %29 = sbr.rel (%p27) target = $region8
    $region5: #{tpu_custom_call.1} parent=1 // loop_body
      %s31 = ssub.s32 %s26, 1
      %s32 = ssub.s32 %s26, 2
      %s33 = sadd.s32 %s26, 1
      %s34 = ssub.s32 %s26, %s33
      %p35 = scmp.eq.s32.totalorder %s34, 0
      %s37 = sadd.s32 %s36, 1
      %s38 = scalar_select %p35, %s36, %s37
      %p41 = pneg %p35
      %p42 = scmp.eq.s32.totalorder %s26, 7
      %p43 = por %p41, %p42
      %p44 = scmp.ne.s32.totalorder %s36, %s39
      %p45 = scmp.eq.s32.totalorder %s26, 0
      %p46 = por %p44, %p45
      %p47 = scmp.ne.s32.totalorder %s36, %s39
      %p48 = scmp.eq.s32.totalorder %s31, 7
      %p49 = por %p47, %p48
      %p50 = scmp.ne.s32.totalorder %s39, %s40
      %p51 = scmp.eq.s32.totalorder %s31, 0
      %p52 = por %p50, %p51
      %p53 = scmp.ne.s32.totalorder %s39, %s40
      %p54 = scmp.eq.s32.totalorder %s32, 7
      %p55 = por %p53, %p54
      %p57 = scmp.ne.s32.totalorder %s40, %s56
      %p58 = scmp.eq.s32.totalorder %s32, 0
      %p59 = por %p57, %p58
      %s61 = sadd.s32 %s60, 1
      %p64 = scmp.eq.s32.totalorder %s26, 7
      %p65 = scmp.ne.s32.totalorder %s60, %s62
      %p66 = scmp.eq.s32.totalorder %s26, 0
      %p67 = por %p65, %p66
      %p68 = scmp.ne.s32.totalorder %s60, %s62
      %p69 = scmp.eq.s32.totalorder %s31, 7
      %p70 = por %p68, %p69
      %p71 = scmp.ne.s32.totalorder %s62, %s63
      %p72 = scmp.eq.s32.totalorder %s31, 0
      %p73 = por %p71, %p72
      %p74 = scmp.ne.s32.totalorder %s62, %s63
      %p75 = scmp.eq.s32.totalorder %s32, 7
      %p76 = por %p74, %p75
      %p78 = scmp.ne.s32.totalorder %s63, %s77
      %p79 = scmp.eq.s32.totalorder %s32, 0
      %p80 = por %p78, %p79
      %s82 = sadd.s32 %s81, 1
      %p85 = scmp.eq.s32.totalorder %s26, 7
      %p86 = scmp.ne.s32.totalorder %s81, %s83
      %p87 = scmp.eq.s32.totalorder %s26, 0
      %p88 = por %p86, %p87
      %p89 = scmp.ne.s32.totalorder %s81, %s83
      %p90 = scmp.eq.s32.totalorder %s31, 7
      %p91 = por %p89, %p90
      %p92 = scmp.ne.s32.totalorder %s83, %s84
      %p93 = scmp.eq.s32.totalorder %s31, 0
      %p94 = por %p92, %p93
      %p95 = scmp.ne.s32.totalorder %s83, %s84
      %p96 = scmp.eq.s32.totalorder %s32, 7
      %p97 = por %p95, %p96
      %p99 = scmp.ne.s32.totalorder %s84, %s98
      %p100 = scmp.eq.s32.totalorder %s32, 0
      %p101 = por %p99, %p100
      %s103 = sadd.s32 %s102, 1
      %p106 = scmp.eq.s32.totalorder %s26, 7
      %p107 = scmp.ne.s32.totalorder %s102, %s104
      %p108 = scmp.eq.s32.totalorder %s26, 0
      %p109 = por %p107, %p108
      %p110 = scmp.ne.s32.totalorder %s102, %s104
      %p111 = scmp.eq.s32.totalorder %s31, 7
      %p112 = por %p110, %p111
      %p113 = scmp.ne.s32.totalorder %s104, %s105
      %p114 = scmp.eq.s32.totalorder %s31, 0
      %p115 = por %p113, %p114
      %p116 = scmp.ne.s32.totalorder %s104, %s105
      %p117 = scmp.eq.s32.totalorder %s32, 7
      %p118 = por %p116, %p117
      %p120 = scmp.ne.s32.totalorder %s105, %s119
      %p121 = scmp.eq.s32.totalorder %s32, 0
      %p122 = por %p120, %p121
      %s124 = sadd.s32 %s123, 1
      %p127 = scmp.eq.s32.totalorder %s26, 7
      %p128 = scmp.ne.s32.totalorder %s123, %s125
      %p129 = scmp.eq.s32.totalorder %s26, 0
      %p130 = por %p128, %p129
      %p131 = scmp.ne.s32.totalorder %s123, %s125
      %p132 = scmp.eq.s32.totalorder %s31, 7
      %p133 = por %p131, %p132
      %p134 = scmp.ne.s32.totalorder %s125, %s126
      %p135 = scmp.eq.s32.totalorder %s31, 0
      %p136 = por %p134, %p135
      %p137 = scmp.ne.s32.totalorder %s125, %s126
      %p138 = scmp.eq.s32.totalorder %s32, 7
      %p139 = por %p137, %p138
      %p141 = scmp.ne.s32.totalorder %s126, %s140
      %p142 = scmp.eq.s32.totalorder %s32, 0
      %p143 = por %p141, %p142
      %s145 = sadd.s32 %s144, 1
      %p148 = scmp.eq.s32.totalorder %s26, 7
      %p149 = scmp.ne.s32.totalorder %s144, %s146
      %p150 = scmp.eq.s32.totalorder %s26, 0
      %p151 = por %p149, %p150
      %p152 = scmp.ne.s32.totalorder %s144, %s146
      %p153 = scmp.eq.s32.totalorder %s31, 7
      %p154 = por %p152, %p153
      %p155 = scmp.ne.s32.totalorder %s146, %s147
      %p156 = scmp.eq.s32.totalorder %s31, 0
      %p157 = por %p155, %p156
      %p158 = scmp.ne.s32.totalorder %s146, %s147
      %p159 = scmp.eq.s32.totalorder %s32, 7
      %p160 = por %p158, %p159
      %p162 = scmp.ne.s32.totalorder %s147, %s161
      %p163 = scmp.eq.s32.totalorder %s32, 0
      %p164 = por %p162, %p163
      %s166 = sadd.s32 %s165, 1
      %p169 = scmp.eq.s32.totalorder %s26, 7
      %p170 = scmp.ne.s32.totalorder %s165, %s167
      %p171 = scmp.eq.s32.totalorder %s26, 0
      %p172 = por %p170, %p171
      %p173 = scmp.ne.s32.totalorder %s165, %s167
      %p174 = scmp.eq.s32.totalorder %s31, 7
      %p175 = por %p173, %p174
      %p176 = scmp.ne.s32.totalorder %s167, %s168
      %p177 = scmp.eq.s32.totalorder %s31, 0
      %p178 = por %p176, %p177
      %p179 = scmp.ne.s32.totalorder %s167, %s168
      %p180 = scmp.eq.s32.totalorder %s32, 7
      %p181 = por %p179, %p180
      %p183 = scmp.ne.s32.totalorder %s168, %s182
      %p184 = scmp.eq.s32.totalorder %s32, 0
      %p185 = por %p183, %p184
      %s187 = sadd.s32 %s186, 1
      %p190 = scmp.eq.s32.totalorder %s26, 7
      %p191 = scmp.ne.s32.totalorder %s186, %s188
      %p192 = scmp.eq.s32.totalorder %s26, 0
      %p193 = por %p191, %p192
      %p194 = scmp.ne.s32.totalorder %s186, %s188
      %p195 = scmp.eq.s32.totalorder %s31, 7
      %p196 = por %p194, %p195
      %p197 = scmp.ne.s32.totalorder %s188, %s189
      %p198 = scmp.eq.s32.totalorder %s31, 0
      %p199 = por %p197, %p198
      %p200 = scmp.ne.s32.totalorder %s188, %s189
      %p201 = scmp.eq.s32.totalorder %s32, 7
      %p202 = por %p200, %p201
      %p204 = scmp.ne.s32.totalorder %s189, %s203
      %p205 = scmp.eq.s32.totalorder %s32, 0
      %p206 = por %p204, %p205
      %s208 = sadd.s32 %s207, 1
      %p211 = scmp.eq.s32.totalorder %s26, 7
      %p212 = scmp.ne.s32.totalorder %s207, %s209
      %p213 = scmp.eq.s32.totalorder %s26, 0
      %p214 = por %p212, %p213
      %p215 = scmp.ne.s32.totalorder %s207, %s209
      %p216 = scmp.eq.s32.totalorder %s31, 7
      %p217 = por %p215, %p216
      %p218 = scmp.ne.s32.totalorder %s209, %s210
      %p219 = scmp.eq.s32.totalorder %s31, 0
      %p220 = por %p218, %p219
      %p221 = scmp.ne.s32.totalorder %s209, %s210
      %p222 = scmp.eq.s32.totalorder %s32, 7
      %p223 = por %p221, %p222
      %p225 = scmp.ne.s32.totalorder %s210, %s224
      %p226 = scmp.eq.s32.totalorder %s32, 0
      %p227 = por %p225, %p226
      %s229 = sadd.s32 %s228, 1
      %p232 = scmp.eq.s32.totalorder %s26, 7
      %p233 = scmp.ne.s32.totalorder %s228, %s230
      %p234 = scmp.eq.s32.totalorder %s26, 0
      %p235 = por %p233, %p234
      %p236 = scmp.ne.s32.totalorder %s228, %s230
      %p237 = scmp.eq.s32.totalorder %s31, 7
      %p238 = por %p236, %p237
      %p239 = scmp.ne.s32.totalorder %s230, %s231
      %p240 = scmp.eq.s32.totalorder %s31, 0
      %p241 = por %p239, %p240
      %p242 = scmp.ne.s32.totalorder %s230, %s231
      %p243 = scmp.eq.s32.totalorder %s32, 7
      %p244 = por %p242, %p243
      %p246 = scmp.ne.s32.totalorder %s231, %s245
      %p247 = scmp.eq.s32.totalorder %s32, 0
      %p248 = por %p246, %p247
      %s250 = sadd.s32 %s249, 1
      %p253 = scmp.eq.s32.totalorder %s26, 7
      %p254 = scmp.ne.s32.totalorder %s249, %s251
      %p255 = scmp.eq.s32.totalorder %s26, 0
      %p256 = por %p254, %p255
      %p257 = scmp.ne.s32.totalorder %s249, %s251
      %p258 = scmp.eq.s32.totalorder %s31, 7
      %p259 = por %p257, %p258
      %p260 = scmp.ne.s32.totalorder %s251, %s252
      %p261 = scmp.eq.s32.totalorder %s31, 0
      %p262 = por %p260, %p261
      %p263 = scmp.ne.s32.totalorder %s251, %s252
      %p264 = scmp.eq.s32.totalorder %s32, 7
      %p265 = por %p263, %p264
      %p267 = scmp.ne.s32.totalorder %s252, %s266
      %p268 = scmp.eq.s32.totalorder %s32, 0
      %p269 = por %p267, %p268
      %s271 = sadd.s32 %s270, 1
      %p274 = scmp.eq.s32.totalorder %s26, 7
      %p275 = scmp.ne.s32.totalorder %s270, %s272
      %p276 = scmp.eq.s32.totalorder %s26, 0
      %p277 = por %p275, %p276
      %p278 = scmp.ne.s32.totalorder %s270, %s272
      %p279 = scmp.eq.s32.totalorder %s31, 7
      %p280 = por %p278, %p279
      %p281 = scmp.ne.s32.totalorder %s272, %s273
      %p282 = scmp.eq.s32.totalorder %s31, 0
      %p283 = por %p281, %p282
      %p284 = scmp.ne.s32.totalorder %s272, %s273
      %p285 = scmp.eq.s32.totalorder %s32, 7
      %p286 = por %p284, %p285
      %p288 = scmp.ne.s32.totalorder %s273, %s287
      %p289 = scmp.eq.s32.totalorder %s32, 0
      %p290 = por %p288, %p289
      %s292 = sadd.s32 %s291, 1
      %p295 = scmp.eq.s32.totalorder %s26, 7
      %p296 = scmp.ne.s32.totalorder %s291, %s293
      %p297 = scmp.eq.s32.totalorder %s26, 0
      %p298 = por %p296, %p297
      %p299 = scmp.ne.s32.totalorder %s291, %s293
      %p300 = scmp.eq.s32.totalorder %s31, 7
      %p301 = por %p299, %p300
      %p302 = scmp.ne.s32.totalorder %s293, %s294
      %p303 = scmp.eq.s32.totalorder %s31, 0
      %p304 = por %p302, %p303
      %p305 = scmp.ne.s32.totalorder %s293, %s294
      %p306 = scmp.eq.s32.totalorder %s32, 7
      %p307 = por %p305, %p306
      %p309 = scmp.ne.s32.totalorder %s294, %s308
      %p310 = scmp.eq.s32.totalorder %s32, 0
      %p311 = por %p309, %p310
      %s312 = ssub.s32 %s26, %s33
      %p313 = scmp.eq.s32.totalorder %s312, 0
      %s315 = sadd.s32 %s314, 1
      %s316 = scalar_select %p313, %s314, %s315
      %p319 = pneg %p313
      %p320 = scmp.eq.s32.totalorder %s26, 7
      %p321 = por %p319, %p320
      %p322 = scmp.ne.s32.totalorder %s314, %s317
      %p323 = scmp.eq.s32.totalorder %s26, 0
      %p324 = por %p322, %p323
      %p325 = scmp.ne.s32.totalorder %s314, %s317
      %p326 = scmp.eq.s32.totalorder %s31, 7
      %p327 = por %p325, %p326
      %p328 = scmp.ne.s32.totalorder %s317, %s318
      %p329 = scmp.eq.s32.totalorder %s31, 0
      %p330 = por %p328, %p329
      %p331 = scmp.ne.s32.totalorder %s317, %s318
      %p332 = scmp.eq.s32.totalorder %s32, 7
      %p333 = por %p331, %p332
      %p335 = scmp.ne.s32.totalorder %s318, %s334
      %p336 = scmp.eq.s32.totalorder %s32, 0
      %p337 = por %p335, %p336
      %p338 = scmp.le.s32.totalorder 1, %s26
      %p339 = scmp.lt.s32.totalorder %s26, 9
      %p340 = pnand %p338, %p339
      %p341 = pneg %p340
      // Predicated region
      $region9: #{tpu_custom_call.1} parent=5 // pred_check
        _
      $region10: #{tpu_custom_call.1} parent=5 // pred_check_branch
        %343 = sbr.rel (%p340) target = $region12
      $region11: #{tpu_custom_call.1} parent=5 // pred_region
        %s344 = ssub.s32 %s26, 1
        // Predicated region
        $region13: #{tpu_custom_call.1} parent=11 // pred_check
          %p345 = pneg %p73
        $region14: #{tpu_custom_call.1} parent=11 // pred_check_branch
          %347 = sbr.rel (%p345) target = $region16
        $region15: #{tpu_custom_call.1} parent=11 // pred_region
          _
        $region16: #{tpu_custom_call.1} parent=11 // pred_fallthru
          _
        // Predicated region
        $region17: #{tpu_custom_call.1} parent=11 // pred_check
          %p348 = pneg %p94
        $region18: #{tpu_custom_call.1} parent=11 // pred_check_branch
          %350 = sbr.rel (%p348) target = $region20
        $region19: #{tpu_custom_call.1} parent=11 // pred_region
          _
        $region20: #{tpu_custom_call.1} parent=11 // pred_fallthru
          _
        // Predicated region
        $region21: #{tpu_custom_call.1} parent=11 // pred_check
          %p351 = pneg %p115
        $region22: #{tpu_custom_call.1} parent=11 // pred_check_branch
          %353 = sbr.rel (%p351) target = $region24
        $region23: #{tpu_custom_call.1} parent=11 // pred_region
          %s355 = ssub.s32 1024, 1024
          %356 = vsyncadd [#allocation7], %s355
          %s357 = sshll.u32 [#allocation6], 4
          %s358 = int_to_ptr.vmem [resolvable:$true] %s357
          %363 = dma.hbm_to_vmem [thread:$0]  %s3, 1024, %s358, [#allocation7], 64, 64, 4
        $region24: #{tpu_custom_call.1} parent=11 // pred_fallthru
          _
        // Predicated region
        $region25: #{tpu_custom_call.1} parent=11 // pred_check
          %p364 = pneg %p136
        $region26: #{tpu_custom_call.1} parent=11 // pred_check_branch
          %366 = sbr.rel (%p364) target = $region28
        $region27: #{tpu_custom_call.1} parent=11 // pred_region
          _
        $region28: #{tpu_custom_call.1} parent=11 // pred_fallthru
          _
        // Predicated region
        $region29: #{tpu_custom_call.1} parent=11 // pred_check
          %p367 = pneg %p157
        $region30: #{tpu_custom_call.1} parent=11 // pred_check_branch
          %369 = sbr.rel (%p367) target = $region32
        $region31: #{tpu_custom_call.1} parent=11 // pred_region
          %s371 = ssub.s32 1024, 1024
          %372 = vsyncadd [#allocation7], %s371
          %s373 = sshll.u32 [#allocation8], 4
          %s374 = int_to_ptr.vmem [resolvable:$true] %s373
          %379 = dma.hbm_to_vmem [thread:$0]  %s5, 1024, %s374, [#allocation7], 64, 64, 4
        $region32: #{tpu_custom_call.1} parent=11 // pred_fallthru
          _
        // Predicated region
        $region33: #{tpu_custom_call.1} parent=11 // pred_check
          %p380 = pneg %p178
        $region34: #{tpu_custom_call.1} parent=11 // pred_check_branch
          %382 = sbr.rel (%p380) target = $region36
        $region35: #{tpu_custom_call.1} parent=11 // pred_region
          _
        $region36: #{tpu_custom_call.1} parent=11 // pred_fallthru
          _
        // Predicated region
        $region37: #{tpu_custom_call.1} parent=11 // pred_check
          %p383 = pneg %p199
        $region38: #{tpu_custom_call.1} parent=11 // pred_check_branch
          %385 = sbr.rel (%p383) target = $region40
        $region39: #{tpu_custom_call.1} parent=11 // pred_region
          _
        $region40: #{tpu_custom_call.1} parent=11 // pred_fallthru
          _
        // Predicated region
        $region41: #{tpu_custom_call.1} parent=11 // pred_check
          %p386 = pneg %p220
        $region42: #{tpu_custom_call.1} parent=11 // pred_check_branch
          %388 = sbr.rel (%p386) target = $region44
        $region43: #{tpu_custom_call.1} parent=11 // pred_region
          _
        $region44: #{tpu_custom_call.1} parent=11 // pred_fallthru
          _
        // Predicated region
        $region45: #{tpu_custom_call.1} parent=11 // pred_check
          %p389 = pneg %p241
        $region46: #{tpu_custom_call.1} parent=11 // pred_check_branch
          %391 = sbr.rel (%p389) target = $region48
        $region47: #{tpu_custom_call.1} parent=11 // pred_region
          _
        $region48: #{tpu_custom_call.1} parent=11 // pred_fallthru
          _
        // Predicated region
        $region49: #{tpu_custom_call.1} parent=11 // pred_check
          %p392 = pneg %p262
        $region50: #{tpu_custom_call.1} parent=11 // pred_check_branch
          %394 = sbr.rel (%p392) target = $region52
        $region51: #{tpu_custom_call.1} parent=11 // pred_region
          _
        $region52: #{tpu_custom_call.1} parent=11 // pred_fallthru
          _
        // Predicated region
        $region53: #{tpu_custom_call.1} parent=11 // pred_check
          %p395 = pneg %p283
        $region54: #{tpu_custom_call.1} parent=11 // pred_check_branch
          %397 = sbr.rel (%p395) target = $region56
        $region55: #{tpu_custom_call.1} parent=11 // pred_region
          _
        $region56: #{tpu_custom_call.1} parent=11 // pred_fallthru
          _
        // Predicated region
        $region57: #{tpu_custom_call.1} parent=11 // pred_check
          %p398 = pneg %p304
        $region58: #{tpu_custom_call.1} parent=11 // pred_check_branch
          %400 = sbr.rel (%p398) target = $region60
        $region59: #{tpu_custom_call.1} parent=11 // pred_region
          _
        $region60: #{tpu_custom_call.1} parent=11 // pred_fallthru
          _
      $region12: #{tpu_custom_call.1} parent=5 // pred_fallthru
        _
      %p401 = scmp.lt.s32.totalorder %s26, 8
      // Predicated region
      $region61: #{tpu_custom_call.1} parent=5 // pred_check
        %p402 = pneg %p401
      $region62: #{tpu_custom_call.1} parent=5 // pred_check_branch
        %404 = sbr.rel (%p402) target = $region64
      $region63: #{tpu_custom_call.1} parent=5 // pred_region
        // Predicated region
        $region65: #{tpu_custom_call.1} parent=63 // pred_check
          %p405 = pneg %p46
        $region66: #{tpu_custom_call.1} parent=63 // pred_check_branch
          %407 = sbr.rel (%p405) target = $region68
        $region67: #{tpu_custom_call.1} parent=63 // pred_region
          %s408 = sand.u32 %s36, 1
          %s409 = scalar_lea.sflag [#allocation4], %s408
          %s410 = sand.u32 %s36, 1
          %s411 = smul.addr %s410, 64
          %s412 = scalar_lea.vmem [#allocation3], %s411
          %s414 = ssub.s32 1024, 1024
          %415 = vsyncadd %s409, %s414
          %s416 = smul.addr %s26, 16
          %s417 = smul.addr %s416, 64
          %s418 = scalar_lea.hbm %s0, %s417
          %s419 = sshll.u32 %s412, 4
          %s420 = int_to_ptr.vmem [resolvable:$true] %s419
          %425 = dma.hbm_to_vmem [thread:$0]  %s418, 1024, %s420, %s409, 64, 64, 4
        $region68: #{tpu_custom_call.1} parent=63 // pred_fallthru
          _
      $region64: #{tpu_custom_call.1} parent=5 // pred_fallthru
        _
      %p426 = scmp.le.s32.totalorder 1, %s26
      %p427 = scmp.lt.s32.totalorder %s26, 9
      %p428 = pnand %p426, %p427
      %p429 = pneg %p428
      // Predicated region
      $region69: #{tpu_custom_call.1} parent=5 // pred_check
        _
      $region70: #{tpu_custom_call.1} parent=5 // pred_check_branch
        %431 = sbr.rel (%p428) target = $region72
      $region71: #{tpu_custom_call.1} parent=5 // pred_region
        %s432 = ssub.s32 %s26, 1
        %s433 = sand.u32 %s39, 1
        %s434 = scalar_lea.sflag [#allocation4], %s433
        %s435 = sand.u32 %s39, 1
        %s436 = smul.addr %s435, 64
        %s437 = scalar_lea.vmem [#allocation3], %s436
        // Predicated region
        $region73: #{tpu_custom_call.1} parent=71 // pred_check
          %p438 = pneg %p52
        $region74: #{tpu_custom_call.1} parent=71 // pred_check_branch
          %440 = sbr.rel (%p438) target = $region76
        $region75: #{tpu_custom_call.1} parent=71 // pred_region
          %441 = dma.done %s434, 1024
        $region76: #{tpu_custom_call.1} parent=71 // pred_fallthru
          _
        // Predicated region
        $region77: #{tpu_custom_call.1} parent=71 // pred_check
          %p442 = pneg %p115
        $region78: #{tpu_custom_call.1} parent=71 // pred_check_branch
          %444 = sbr.rel (%p442) target = $region80
        $region79: #{tpu_custom_call.1} parent=71 // pred_region
          %445 = dma.done [#allocation7], 1024
        $region80: #{tpu_custom_call.1} parent=71 // pred_fallthru
          _
        // Predicated region
        $region81: #{tpu_custom_call.1} parent=71 // pred_check
          %p446 = pneg %p157
        $region82: #{tpu_custom_call.1} parent=71 // pred_check_branch
          %448 = sbr.rel (%p446) target = $region84
        $region83: #{tpu_custom_call.1} parent=71 // pred_region
          %449 = dma.done [#allocation7], 1024
        $region84: #{tpu_custom_call.1} parent=71 // pred_fallthru
          _
        %s450 = sand.u32 %s39, 1
        %s451 = scalar_lea.sflag [#allocation4], %s450
        %s452 = sand.u32 %s39, 1
        %s453 = smul.addr %s452, 64
        %s454 = scalar_lea.vmem [#allocation3], %s453
        %p455 = pneg %p52
        %p456 = pneg %p49
        %p457 = pneg %p73
        %p458 = pneg %p70
        %p459 = pneg %p94
        %p460 = pneg %p91
        %p461 = pneg %p115
        %p462 = pneg %p112
        %p463 = pneg %p136
        %p464 = pneg %p133
        %p465 = pneg %p157
        %p466 = pneg %p154
        %p467 = pneg %p178
        %p468 = pneg %p175
        %p469 = pneg %p199
        %p470 = pneg %p196
        %p471 = pneg %p220
        %p472 = pneg %p217
        %p473 = pneg %p241
        %p474 = pneg %p238
        %p475 = pneg %p262
        %p476 = pneg %p259
        %p477 = pneg %p283
        %p478 = pneg %p280
        %p479 = pneg %p304
        %p480 = pneg %p301
        %p481 = pneg %p330
        %p482 = pneg %p327
        %s483 = sand.u32 %s317, 1
        %s484 = scalar_lea.sflag [#allocation5], %s483
        %s485 = sand.u32 %s317, 1
        %s486 = smul.addr %s485, 64
        %s487 = scalar_lea.vmem [#allocation9], %s486
        %v489 = vld [vmem:[%s1] sm:$0x1]
        %v490 = vld [vmem:[%s2] sm:$0x1]
        %v491 = vld [vmem:[%s437] sm:$0xf]
        %v492 = vld [vmem:[%s437 + $0x4] sm:$0xf]
        %v493 = vld [vmem:[%s437 + $0x8] sm:$0xf]
        %v494 = vld [vmem:[%s437 + $0xc] sm:$0xf]
        %v495 = vld [vmem:[%s437 + $0x10] sm:$0xf]
        %v496 = vld [vmem:[%s437 + $0x14] sm:$0xf]
        %v497 = vld [vmem:[%s437 + $0x18] sm:$0xf]
        %v498 = vld [vmem:[%s437 + $0x1c] sm:$0xf]
        %v499 = vld [vmem:[%s437 + $0x20] sm:$0xf]
        %v500 = vld [vmem:[%s437 + $0x24] sm:$0xf]
        %v501 = vld [vmem:[%s437 + $0x28] sm:$0xf]
        %v502 = vld [vmem:[%s437 + $0x2c] sm:$0xf]
        %v503 = vld [vmem:[%s437 + $0x30] sm:$0xf]
        %v504 = vld [vmem:[%s437 + $0x34] sm:$0xf]
        %v505 = vld [vmem:[%s437 + $0x38] sm:$0xf]
        %v506 = vld [vmem:[%s437 + $0x3c] sm:$0xf]
        %v507 = vunpack.c.l.bf16 %v491
        %v508 = vunpack.c.l.bf16 %v492
        %v509 = vunpack.c.l.bf16 %v493
        %v510 = vunpack.c.l.bf16 %v494
        %v511 = vunpack.c.l.bf16 %v495
        %v512 = vunpack.c.l.bf16 %v496
        %v513 = vunpack.c.l.bf16 %v497
        %v514 = vunpack.c.l.bf16 %v498
        %v515 = vunpack.c.l.bf16 %v499
        %v516 = vunpack.c.l.bf16 %v500
        %v517 = vunpack.c.l.bf16 %v501
        %v518 = vunpack.c.l.bf16 %v502
        %v519 = vunpack.c.l.bf16 %v503
        %v520 = vunpack.c.l.bf16 %v504
        %v521 = vunpack.c.l.bf16 %v505
        %v522 = vunpack.c.l.bf16 %v506
        %523 = vadd.xlane.f32.xlu0 %v507
        %v524 = vpop.xlane.xlu0 %523
        %525 = vadd.xlane.f32.xlu0 %v508
        %v526 = vpop.xlane.xlu0 %525
        %527 = vadd.xlane.f32.xlu0 %v509
        %v528 = vpop.xlane.xlu0 %527
        %529 = vadd.xlane.f32.xlu0 %v510
        %v530 = vpop.xlane.xlu0 %529
        %531 = vadd.xlane.f32.xlu0 %v511
        %v532 = vpop.xlane.xlu0 %531
        %533 = vadd.xlane.f32.xlu0 %v512
        %v534 = vpop.xlane.xlu0 %533
        %535 = vadd.xlane.f32.xlu0 %v513
        %v536 = vpop.xlane.xlu0 %535
        %537 = vadd.xlane.f32.xlu0 %v514
        %v538 = vpop.xlane.xlu0 %537
        %539 = vadd.xlane.f32.xlu0 %v515
        %v540 = vpop.xlane.xlu0 %539
        %541 = vadd.xlane.f32.xlu0 %v516
        %v542 = vpop.xlane.xlu0 %541
        %543 = vadd.xlane.f32.xlu0 %v517
        %v544 = vpop.xlane.xlu0 %543
        %545 = vadd.xlane.f32.xlu0 %v518
        %v546 = vpop.xlane.xlu0 %545
        %547 = vadd.xlane.f32.xlu0 %v519
        %v548 = vpop.xlane.xlu0 %547
        %549 = vadd.xlane.f32.xlu0 %v520
        %v550 = vpop.xlane.xlu0 %549
        %551 = vadd.xlane.f32.xlu0 %v521
        %v552 = vpop.xlane.xlu0 %551
        %553 = vadd.xlane.f32.xlu0 %v522
        %v554 = vpop.xlane.xlu0 %553
        %v555 = vmul.f32 %v507, %v507
        %v556 = vmul.f32 %v508, %v508
        %v557 = vmul.f32 %v509, %v509
        %v558 = vmul.f32 %v510, %v510
        %v559 = vmul.f32 %v511, %v511
        %v560 = vmul.f32 %v512, %v512
        %v561 = vmul.f32 %v513, %v513
        %v562 = vmul.f32 %v514, %v514
        %v563 = vmul.f32 %v515, %v515
        %v564 = vmul.f32 %v516, %v516
        %v565 = vmul.f32 %v517, %v517
        %v566 = vmul.f32 %v518, %v518
        %v567 = vmul.f32 %v519, %v519
        %v568 = vmul.f32 %v520, %v520
        %v569 = vmul.f32 %v521, %v521
        %v570 = vmul.f32 %v522, %v522
        %571 = vadd.xlane.f32.xlu0 %v555
        %v572 = vpop.xlane.xlu0 %571
        %573 = vadd.xlane.f32.xlu0 %v556
        %v574 = vpop.xlane.xlu0 %573
        %575 = vadd.xlane.f32.xlu0 %v557
        %v576 = vpop.xlane.xlu0 %575
        %577 = vadd.xlane.f32.xlu0 %v558
        %v578 = vpop.xlane.xlu0 %577
        %579 = vadd.xlane.f32.xlu0 %v559
        %v580 = vpop.xlane.xlu0 %579
        %581 = vadd.xlane.f32.xlu0 %v560
        %v582 = vpop.xlane.xlu0 %581
        %583 = vadd.xlane.f32.xlu0 %v561
        %v584 = vpop.xlane.xlu0 %583
        %585 = vadd.xlane.f32.xlu0 %v562
        %v586 = vpop.xlane.xlu0 %585
        %587 = vadd.xlane.f32.xlu0 %v563
        %v588 = vpop.xlane.xlu0 %587
        %589 = vadd.xlane.f32.xlu0 %v564
        %v590 = vpop.xlane.xlu0 %589
        %591 = vadd.xlane.f32.xlu0 %v565
        %v592 = vpop.xlane.xlu0 %591
        %593 = vadd.xlane.f32.xlu0 %v566
        %v594 = vpop.xlane.xlu0 %593
        %595 = vadd.xlane.f32.xlu0 %v567
        %v596 = vpop.xlane.xlu0 %595
        %597 = vadd.xlane.f32.xlu0 %v568
        %v598 = vpop.xlane.xlu0 %597
        %599 = vadd.xlane.f32.xlu0 %v569
        %v600 = vpop.xlane.xlu0 %599
        %601 = vadd.xlane.f32.xlu0 %v570
        %v602 = vpop.xlane.xlu0 %601
        %v603 = vmul.f32 %v524, 0.0078125
        %v604 = vmul.f32 %v526, 0.0078125
        %v605 = vmul.f32 %v528, 0.0078125
        %v606 = vmul.f32 %v530, 0.0078125
        %v607 = vmul.f32 %v532, 0.0078125
        %v608 = vmul.f32 %v534, 0.0078125
        %v609 = vmul.f32 %v536, 0.0078125
        %v610 = vmul.f32 %v538, 0.0078125
        %v611 = vmul.f32 %v540, 0.0078125
        %v612 = vmul.f32 %v542, 0.0078125
        %v613 = vmul.f32 %v544, 0.0078125
        %v614 = vmul.f32 %v546, 0.0078125
        %v615 = vmul.f32 %v548, 0.0078125
        %v616 = vmul.f32 %v550, 0.0078125
        %v617 = vmul.f32 %v552, 0.0078125
        %v618 = vmul.f32 %v554, 0.0078125
        %v619 = vmul.f32 %v572, 0.0078125
        %v620 = vmul.f32 %v574, 0.0078125
        %v621 = vmul.f32 %v576, 0.0078125
        %v622 = vmul.f32 %v578, 0.0078125
        %v623 = vmul.f32 %v580, 0.0078125
        %v624 = vmul.f32 %v582, 0.0078125
        %v625 = vmul.f32 %v584, 0.0078125
        %v626 = vmul.f32 %v586, 0.0078125
        %v627 = vmul.f32 %v588, 0.0078125
        %v628 = vmul.f32 %v590, 0.0078125
        %v629 = vmul.f32 %v592, 0.0078125
        %v630 = vmul.f32 %v594, 0.0078125
        %v631 = vmul.f32 %v596, 0.0078125
        %v632 = vmul.f32 %v598, 0.0078125
        %v633 = vmul.f32 %v600, 0.0078125
        %v634 = vmul.f32 %v602, 0.0078125
        %v635 = vmul.f32 %v603, %v603
        %v636 = vmul.f32 %v604, %v604
        %v637 = vmul.f32 %v605, %v605
        %v638 = vmul.f32 %v606, %v606
        %v639 = vmul.f32 %v607, %v607
        %v640 = vmul.f32 %v608, %v608
        %v641 = vmul.f32 %v609, %v609
        %v642 = vmul.f32 %v610, %v610
        %v643 = vmul.f32 %v611, %v611
        %v644 = vmul.f32 %v612, %v612
        %v645 = vmul.f32 %v613, %v613
        %v646 = vmul.f32 %v614, %v614
        %v647 = vmul.f32 %v615, %v615
        %v648 = vmul.f32 %v616, %v616
        %v649 = vmul.f32 %v617, %v617
        %v650 = vmul.f32 %v618, %v618
        %v651 = vsub.f32 %v619, %v635
        %v652 = vsub.f32 %v620, %v636
        %v653 = vsub.f32 %v621, %v637
        %v654 = vsub.f32 %v622, %v638
        %v655 = vsub.f32 %v623, %v639
        %v656 = vsub.f32 %v624, %v640
        %v657 = vsub.f32 %v625, %v641
        %v658 = vsub.f32 %v626, %v642
        %v659 = vsub.f32 %v627, %v643
        %v660 = vsub.f32 %v628, %v644
        %v661 = vsub.f32 %v629, %v645
        %v662 = vsub.f32 %v630, %v646
        %v663 = vsub.f32 %v631, %v647
        %v664 = vsub.f32 %v632, %v648
        %v665 = vsub.f32 %v633, %v649
        %v666 = vsub.f32 %v634, %v650
        %v667 = vmax.f32 %v651, 0.0
        %v668 = vmax.f32 %v652, 0.0
        %v669 = vmax.f32 %v653, 0.0
        %v670 = vmax.f32 %v654, 0.0
        %v671 = vmax.f32 %v655, 0.0
        %v672 = vmax.f32 %v656, 0.0
        %v673 = vmax.f32 %v657, 0.0
        %v674 = vmax.f32 %v658, 0.0
        %v675 = vmax.f32 %v659, 0.0
        %v676 = vmax.f32 %v660, 0.0
        %v677 = vmax.f32 %v661, 0.0
        %v678 = vmax.f32 %v662, 0.0
        %v679 = vmax.f32 %v663, 0.0
        %v680 = vmax.f32 %v664, 0.0
        %v681 = vmax.f32 %v665, 0.0
        %v682 = vmax.f32 %v666, 0.0
        %v683 = vadd.f32 %v667, 1e-05
        %v684 = vadd.f32 %v668, 1e-05
        %v685 = vadd.f32 %v669, 1e-05
        %v686 = vadd.f32 %v670, 1e-05
        %v687 = vadd.f32 %v671, 1e-05
        %v688 = vadd.f32 %v672, 1e-05
        %v689 = vadd.f32 %v673, 1e-05
        %v690 = vadd.f32 %v674, 1e-05
        %v691 = vadd.f32 %v675, 1e-05
        %v692 = vadd.f32 %v676, 1e-05
        %v693 = vadd.f32 %v677, 1e-05
        %v694 = vadd.f32 %v678, 1e-05
        %v695 = vadd.f32 %v679, 1e-05
        %v696 = vadd.f32 %v680, 1e-05
        %v697 = vadd.f32 %v681, 1e-05
        %v698 = vadd.f32 %v682, 1e-05
        %v699 = vrsqrt.pop %v683
        %v700 = vrsqrt.pop %v684
        %v701 = vrsqrt.pop %v685
        %v702 = vrsqrt.pop %v686
        %v703 = vrsqrt.pop %v687
        %v704 = vrsqrt.pop %v688
        %v705 = vrsqrt.pop %v689
        %v706 = vrsqrt.pop %v690
        %v707 = vrsqrt.pop %v691
        %v708 = vrsqrt.pop %v692
        %v709 = vrsqrt.pop %v693
        %v710 = vrsqrt.pop %v694
        %v711 = vrsqrt.pop %v695
        %v712 = vrsqrt.pop %v696
        %v713 = vrsqrt.pop %v697
        %v714 = vrsqrt.pop %v698
        %v715 = vsub.f32 %v507, %v603
        %v716 = vsub.f32 %v508, %v604
        %v717 = vsub.f32 %v509, %v605
        %v718 = vsub.f32 %v510, %v606
        %v719 = vsub.f32 %v511, %v607
        %v720 = vsub.f32 %v512, %v608
        %v721 = vsub.f32 %v513, %v609
        %v722 = vsub.f32 %v514, %v610
        %v723 = vsub.f32 %v515, %v611
        %v724 = vsub.f32 %v516, %v612
        %v725 = vsub.f32 %v517, %v613
        %v726 = vsub.f32 %v518, %v614
        %v727 = vsub.f32 %v519, %v615
        %v728 = vsub.f32 %v520, %v616
        %v729 = vsub.f32 %v521, %v617
        %v730 = vsub.f32 %v522, %v618
        %v731 = vmul.f32 %v715, %v699
        %v732 = vmul.f32 %v716, %v700
        %v733 = vmul.f32 %v717, %v701
        %v734 = vmul.f32 %v718, %v702
        %v735 = vmul.f32 %v719, %v703
        %v736 = vmul.f32 %v720, %v704
        %v737 = vmul.f32 %v721, %v705
        %v738 = vmul.f32 %v722, %v706
        %v739 = vmul.f32 %v723, %v707
        %v740 = vmul.f32 %v724, %v708
        %v741 = vmul.f32 %v725, %v709
        %v742 = vmul.f32 %v726, %v710
        %v743 = vmul.f32 %v727, %v711
        %v744 = vmul.f32 %v728, %v712
        %v745 = vmul.f32 %v729, %v713
        %v746 = vmul.f32 %v730, %v714
        %v748 = vlaneseq
        %v749 = vshrl.u32 %v748, 7
        %v750 = vsub.s32 0, %v749
        %v751 = vrot.slane %v489, %v750
        %v753 = vmul.f32 %v731, %v751
        %v754 = vmul.f32 %v732, %v751
        %v755 = vmul.f32 %v733, %v751
        %v756 = vmul.f32 %v734, %v751
        %v757 = vmul.f32 %v735, %v751
        %v758 = vmul.f32 %v736, %v751
        %v759 = vmul.f32 %v737, %v751
        %v760 = vmul.f32 %v738, %v751
        %v761 = vmul.f32 %v739, %v751
        %v762 = vmul.f32 %v740, %v751
        %v763 = vmul.f32 %v741, %v751
        %v764 = vmul.f32 %v742, %v751
        %v765 = vmul.f32 %v743, %v751
        %v766 = vmul.f32 %v744, %v751
        %v767 = vmul.f32 %v745, %v751
        %v768 = vmul.f32 %v746, %v751
        %v770 = vlaneseq
        %v771 = vshrl.u32 %v770, 7
        %v772 = vsub.s32 0, %v771
        %v773 = vrot.slane %v490, %v772
        %v775 = vadd.f32 %v753, %v773
        %v776 = vadd.f32 %v754, %v773
        %v777 = vadd.f32 %v755, %v773
        %v778 = vadd.f32 %v756, %v773
        %v779 = vadd.f32 %v757, %v773
        %v780 = vadd.f32 %v758, %v773
        %v781 = vadd.f32 %v759, %v773
        %v782 = vadd.f32 %v760, %v773
        %v783 = vadd.f32 %v761, %v773
        %v784 = vadd.f32 %v762, %v773
        %v785 = vadd.f32 %v763, %v773
        %v786 = vadd.f32 %v764, %v773
        %v787 = vadd.f32 %v765, %v773
        %v788 = vadd.f32 %v766, %v773
        %v789 = vadd.f32 %v767, %v773
        %v790 = vadd.f32 %v768, %v773
        %v791 = vld [vmem:[#allocation6] sm:$0xf]
        %v792 = vld [vmem:[#allocation6 + $0x4] sm:$0xf]
        %v793 = vld [vmem:[#allocation6 + $0x8] sm:$0xf]
        %v794 = vld [vmem:[#allocation6 + $0xc] sm:$0xf]
        %v795 = vld [vmem:[#allocation6 + $0x10] sm:$0xf]
        %v796 = vld [vmem:[#allocation6 + $0x14] sm:$0xf]
        %v797 = vld [vmem:[#allocation6 + $0x18] sm:$0xf]
        %v798 = vld [vmem:[#allocation6 + $0x1c] sm:$0xf]
        %v799 = vld [vmem:[#allocation6 + $0x20] sm:$0xf]
        %v800 = vld [vmem:[#allocation6 + $0x24] sm:$0xf]
        %v801 = vld [vmem:[#allocation6 + $0x28] sm:$0xf]
        %v802 = vld [vmem:[#allocation6 + $0x2c] sm:$0xf]
        %v803 = vld [vmem:[#allocation6 + $0x30] sm:$0xf]
        %v804 = vld [vmem:[#allocation6 + $0x34] sm:$0xf]
        %v805 = vld [vmem:[#allocation6 + $0x38] sm:$0xf]
        %v806 = vld [vmem:[#allocation6 + $0x3c] sm:$0xf]
        %v807 = vpack.c.bf16 %v776, %v775
        %v808 = vpack.c.bf16 %v778, %v777
        %v809 = vpack.c.bf16 %v780, %v779
        %v810 = vpack.c.bf16 %v782, %v781
        %v811 = vpack.c.bf16 %v784, %v783
        %v812 = vpack.c.bf16 %v786, %v785
        %v813 = vpack.c.bf16 %v788, %v787
        %v814 = vpack.c.bf16 %v790, %v789
        %v815 = vld [vmem:[%s4] sm:$0xff]
        %v816 = vld [vmem:[%s4 + $0x8] sm:$0xff]
        %v817 = vld [vmem:[%s4 + $0x10] sm:$0xff]
        %v818 = vld [vmem:[%s4 + $0x18] sm:$0xff]
        %v819 = vld [vmem:[%s4 + $0x20] sm:$0xff]
        %v820 = vld [vmem:[%s4 + $0x28] sm:$0xff]
        %v821 = vld [vmem:[%s4 + $0x30] sm:$0xff]
        %v822 = vld [vmem:[%s4 + $0x38] sm:$0xff]
        %v823 = vld [vmem:[%s4 + $0x40] sm:$0xff]
        %v824 = vld [vmem:[%s4 + $0x48] sm:$0xff]
        %v825 = vld [vmem:[%s4 + $0x50] sm:$0xff]
        %v826 = vld [vmem:[%s4 + $0x58] sm:$0xff]
        %v827 = vld [vmem:[%s4 + $0x60] sm:$0xff]
        %v828 = vld [vmem:[%s4 + $0x68] sm:$0xff]
        %v829 = vld [vmem:[%s4 + $0x70] sm:$0xff]
        %v830 = vld [vmem:[%s4 + $0x78] sm:$0xff]
        %832 = vset.pattern.permute.xlu0 0
        %833 = vperm.xlu0 %832, %v815
        %v834 = vpop.permute.xlu0 %833
        %837 = vset.pattern.permute.xlu0 0
        %838 = vperm.xlu0 %837, %v816
        %v839 = vpop.permute.xlu0 %838
        %842 = vset.pattern.permute.xlu0 0
        %843 = vperm.xlu0 %842, %v817
        %v844 = vpop.permute.xlu0 %843
        %847 = vset.pattern.permute.xlu0 0
        %848 = vperm.xlu0 %847, %v818
        %v849 = vpop.permute.xlu0 %848
        %852 = vset.pattern.permute.xlu0 0
        %853 = vperm.xlu0 %852, %v819
        %v854 = vpop.permute.xlu0 %853
        %857 = vset.pattern.permute.xlu0 0
        %858 = vperm.xlu0 %857, %v820
        %v859 = vpop.permute.xlu0 %858
        %862 = vset.pattern.permute.xlu0 0
        %863 = vperm.xlu0 %862, %v821
        %v864 = vpop.permute.xlu0 %863
        %867 = vset.pattern.permute.xlu0 0
        %868 = vperm.xlu0 %867, %v822
        %v869 = vpop.permute.xlu0 %868
        %872 = vset.pattern.permute.xlu0 0
        %873 = vperm.xlu0 %872, %v823
        %v874 = vpop.permute.xlu0 %873
        %877 = vset.pattern.permute.xlu0 0
        %878 = vperm.xlu0 %877, %v824
        %v879 = vpop.permute.xlu0 %878
        %882 = vset.pattern.permute.xlu0 0
        %883 = vperm.xlu0 %882, %v825
        %v884 = vpop.permute.xlu0 %883
        %887 = vset.pattern.permute.xlu0 0
        %888 = vperm.xlu0 %887, %v826
        %v889 = vpop.permute.xlu0 %888
        %892 = vset.pattern.permute.xlu0 0
        %893 = vperm.xlu0 %892, %v827
        %v894 = vpop.permute.xlu0 %893
        %897 = vset.pattern.permute.xlu0 0
        %898 = vperm.xlu0 %897, %v828
        %v899 = vpop.permute.xlu0 %898
        %902 = vset.pattern.permute.xlu0 0
        %903 = vperm.xlu0 %902, %v829
        %v904 = vpop.permute.xlu0 %903
        %907 = vset.pattern.permute.xlu0 0
        %908 = vperm.xlu0 %907, %v830
        %v909 = vpop.permute.xlu0 %908
        %v927 = vunpack.c.l.b16 %v791
        %v928 = vunpack.c.l.b16 %v792
        %v929 = vunpack.c.l.b16 %v793
        %v930 = vunpack.c.l.b16 %v794
        %v931 = vunpack.c.l.b16 %v795
        %v932 = vunpack.c.l.b16 %v796
        %v933 = vunpack.c.l.b16 %v797
        %v934 = vunpack.c.l.b16 %v798
        %v935 = vunpack.c.l.b16 %v799
        %v936 = vunpack.c.l.b16 %v800
        %v937 = vunpack.c.l.b16 %v801
        %v938 = vunpack.c.l.b16 %v802
        %v939 = vunpack.c.l.b16 %v803
        %v940 = vunpack.c.l.b16 %v804
        %v941 = vunpack.c.l.b16 %v805
        %v942 = vunpack.c.l.b16 %v806
        %v943 = vpack.c.b16 %v928, %v927
        %v944 = vpack.c.b16 %v930, %v929
        %v945 = vpack.c.b16 %v932, %v931
        %v946 = vpack.c.b16 %v934, %v933
        %v947 = vpack.c.b16 %v936, %v935
        %v948 = vpack.c.b16 %v938, %v937
        %v949 = vpack.c.b16 %v940, %v939
        %v950 = vpack.c.b16 %v942, %v941
        %959 = vmatprep.subr.bf16.mxu0 0
        %960 = vmatpush1.bf16.msra.mxu0 %v814
        %961 = vmatprep.subr.bf16.mxu0 0
        %962 = vmatpush1.bf16.msra.mxu0 %v813
        %963 = vmatprep.subr.bf16.mxu0 0
        %964 = vmatpush1.bf16.msra.mxu0 %v812
        %965 = vmatprep.subr.bf16.mxu0 0
        %966 = vmatpush1.bf16.msra.mxu0 %v811
        %967 = vmatprep.subr.bf16.mxu0 0
        %968 = vmatpush1.bf16.msra.mxu0 %v810
        %969 = vmatprep.subr.bf16.mxu0 0
        %970 = vmatpush1.bf16.msra.mxu0 %v809
        %971 = vmatprep.subr.bf16.mxu0 0
        %972 = vmatpush1.bf16.msra.mxu0 %v808
        %973 = vmatprep.subr.bf16.mxu0 0
        %974 = vmatpush1.bf16.msra.mxu0 %v807
        %975 = vmatprep.subr.bf16.mxu0 0
        %976 = vmatpush2.bf16.msra.mxu0 0
        %977 = vmatprep.subr.bf16.mxu0 0
        %978 = vmatpush2.bf16.msra.mxu0 0
        %979 = vmatprep.subr.bf16.mxu0 0
        %980 = vmatpush2.bf16.msra.mxu0 0
        %981 = vmatprep.subr.bf16.mxu0 0
        %982 = vmatpush2.bf16.msra.mxu0 0
        %983 = vmatprep.subr.bf16.mxu0 0
        %984 = vmatpush2.bf16.msra.mxu0 0
        %985 = vmatprep.subr.bf16.mxu0 0
        %986 = vmatpush2.bf16.msra.mxu0 0
        %987 = vmatprep.subr.bf16.mxu0 0
        %988 = vmatpush2.bf16.msra.mxu0 0
        %989 = vmatprep.subr.bf16.mxu0 0
        %990 = vmatpush2.bf16.msra.mxu0 0
        %991 = vmatprep.mubr.bf16.mxu0 0
        %992 = vmatmul.mubr.bf16.gmra.mxu0 %v943
        %v993 = vpop.f32.mrf.mxu0
        %v994 = vadd.f32 %v834, %v993
        %v995 = vpop.f32.mrf.mxu0
        %v996 = vpop.f32.mrf.mxu0
        %v997 = vadd.f32 %v839, %v996
        %v998 = vpop.f32.mrf.mxu0
        %999 = vmatprep.mubr.bf16.mxu0 0
        %1000 = vmatmul.mubr.bf16.gmra.mxu0 %v944
        %v1001 = vpop.f32.mrf.mxu0
        %v1002 = vadd.f32 %v844, %v1001
        %v1003 = vpop.f32.mrf.mxu0
        %v1004 = vpop.f32.mrf.mxu0
        %v1005 = vadd.f32 %v849, %v1004
        %v1006 = vpop.f32.mrf.mxu0
        %1007 = vmatprep.mubr.bf16.mxu0 0
        %1008 = vmatmul.mubr.bf16.gmra.mxu0 %v945
        %v1009 = vpop.f32.mrf.mxu0
        %v1010 = vadd.f32 %v854, %v1009
        %v1011 = vpop.f32.mrf.mxu0
        %v1012 = vpop.f32.mrf.mxu0
        %v1013 = vadd.f32 %v859, %v1012
        %v1014 = vpop.f32.mrf.mxu0
        %1015 = vmatprep.mubr.bf16.mxu0 0
        %1016 = vmatmul.mubr.bf16.gmra.mxu0 %v946
        %v1017 = vpop.f32.mrf.mxu0
        %v1018 = vadd.f32 %v864, %v1017
        %v1019 = vpop.f32.mrf.mxu0
        %v1020 = vpop.f32.mrf.mxu0
        %v1021 = vadd.f32 %v869, %v1020
        %v1022 = vpop.f32.mrf.mxu0
        %1023 = vmatprep.mubr.bf16.mxu0 0
        %1024 = vmatmul.mubr.bf16.gmra.mxu0 %v947
        %v1025 = vpop.f32.mrf.mxu0
        %v1026 = vadd.f32 %v874, %v1025
        %v1027 = vpop.f32.mrf.mxu0
        %v1028 = vpop.f32.mrf.mxu0
        %v1029 = vadd.f32 %v879, %v1028
        %v1030 = vpop.f32.mrf.mxu0
        %1031 = vmatprep.mubr.bf16.mxu0 0
        %1032 = vmatmul.mubr.bf16.gmra.mxu0 %v948
        %v1033 = vpop.f32.mrf.mxu0
        %v1034 = vadd.f32 %v884, %v1033
        %v1035 = vpop.f32.mrf.mxu0
        %v1036 = vpop.f32.mrf.mxu0
        %v1037 = vadd.f32 %v889, %v1036
        %v1038 = vpop.f32.mrf.mxu0
        %1039 = vmatprep.mubr.bf16.mxu0 0
        %1040 = vmatmul.mubr.bf16.gmra.mxu0 %v949
        %v1041 = vpop.f32.mrf.mxu0
        %v1042 = vadd.f32 %v894, %v1041
        %v1043 = vpop.f32.mrf.mxu0
        %v1044 = vpop.f32.mrf.mxu0
        %v1045 = vadd.f32 %v899, %v1044
        %v1046 = vpop.f32.mrf.mxu0
        %1047 = vmatprep.mubr.bf16.mxu0 0
        %1048 = vmatmul.mubr.bf16.gmra.mxu0 %v950
        %v1049 = vpop.f32.mrf.mxu0
        %v1050 = vadd.f32 %v904, %v1049
        %v1051 = vpop.f32.mrf.mxu0
        %v1052 = vpop.f32.mrf.mxu0
        %v1053 = vadd.f32 %v909, %v1052
        %v1054 = vpop.f32.mrf.mxu0
        %1055 = vdwg.mxu0
        %v1056 = vmul.f32 %v994, 0.5
        %v1057 = vmul.f32 %v997, 0.5
        %v1058 = vmul.f32 %v1002, 0.5
        %v1059 = vmul.f32 %v1005, 0.5
        %v1060 = vmul.f32 %v1010, 0.5
        %v1061 = vmul.f32 %v1013, 0.5
        %v1062 = vmul.f32 %v1018, 0.5
        %v1063 = vmul.f32 %v1021, 0.5
        %v1064 = vmul.f32 %v1026, 0.5
        %v1065 = vmul.f32 %v1029, 0.5
        %v1066 = vmul.f32 %v1034, 0.5
        %v1067 = vmul.f32 %v1037, 0.5
        %v1068 = vmul.f32 %v1042, 0.5
        %v1069 = vmul.f32 %v1045, 0.5
        %v1070 = vmul.f32 %v1050, 0.5
        %v1071 = vmul.f32 %v1053, 0.5
        %v1072 = vmul.f32 %v994, 0.70710677
        %v1073 = vmul.f32 %v997, 0.70710677
        %v1074 = vmul.f32 %v1002, 0.70710677
        %v1075 = vmul.f32 %v1005, 0.70710677
        %v1076 = vmul.f32 %v1010, 0.70710677
        %v1077 = vmul.f32 %v1013, 0.70710677
        %v1078 = vmul.f32 %v1018, 0.70710677
        %v1079 = vmul.f32 %v1021, 0.70710677
        %v1080 = vmul.f32 %v1026, 0.70710677
        %v1081 = vmul.f32 %v1029, 0.70710677
        %v1082 = vmul.f32 %v1034, 0.70710677
        %v1083 = vmul.f32 %v1037, 0.70710677
        %v1084 = vmul.f32 %v1042, 0.70710677
        %v1085 = vmul.f32 %v1045, 0.70710677
        %v1086 = vmul.f32 %v1050, 0.70710677
        %v1087 = vmul.f32 %v1053, 0.70710677
        %v1088 = verf.f32.pop %v1072
        %v1089 = verf.f32.pop %v1073
        %v1090 = verf.f32.pop %v1074
        %v1091 = verf.f32.pop %v1075
        %v1092 = verf.f32.pop %v1076
        %v1093 = verf.f32.pop %v1077
        %v1094 = verf.f32.pop %v1078
        %v1095 = verf.f32.pop %v1079
        %v1096 = verf.f32.pop %v1080
        %v1097 = verf.f32.pop %v1081
        %v1098 = verf.f32.pop %v1082
        %v1099 = verf.f32.pop %v1083
        %v1100 = verf.f32.pop %v1084
        %v1101 = verf.f32.pop %v1085
        %v1102 = verf.f32.pop %v1086
        %v1103 = verf.f32.pop %v1087
        %v1104 = vadd.f32 %v1088, 1.0
        %v1105 = vadd.f32 %v1089, 1.0
        %v1106 = vadd.f32 %v1090, 1.0
        %v1107 = vadd.f32 %v1091, 1.0
        %v1108 = vadd.f32 %v1092, 1.0
        %v1109 = vadd.f32 %v1093, 1.0
        %v1110 = vadd.f32 %v1094, 1.0
        %v1111 = vadd.f32 %v1095, 1.0
        %v1112 = vadd.f32 %v1096, 1.0
        %v1113 = vadd.f32 %v1097, 1.0
        %v1114 = vadd.f32 %v1098, 1.0
        %v1115 = vadd.f32 %v1099, 1.0
        %v1116 = vadd.f32 %v1100, 1.0
        %v1117 = vadd.f32 %v1101, 1.0
        %v1118 = vadd.f32 %v1102, 1.0
        %v1119 = vadd.f32 %v1103, 1.0
        %v1120 = vmul.f32 %v1056, %v1104
        %v1121 = vmul.f32 %v1057, %v1105
        %v1122 = vmul.f32 %v1058, %v1106
        %v1123 = vmul.f32 %v1059, %v1107
        %v1124 = vmul.f32 %v1060, %v1108
        %v1125 = vmul.f32 %v1061, %v1109
        %v1126 = vmul.f32 %v1062, %v1110
        %v1127 = vmul.f32 %v1063, %v1111
        %v1128 = vmul.f32 %v1064, %v1112
        %v1129 = vmul.f32 %v1065, %v1113
        %v1130 = vmul.f32 %v1066, %v1114
        %v1131 = vmul.f32 %v1067, %v1115
        %v1132 = vmul.f32 %v1068, %v1116
        %v1133 = vmul.f32 %v1069, %v1117
        %v1134 = vmul.f32 %v1070, %v1118
        %v1135 = vmul.f32 %v1071, %v1119
        %v1136 = vld [vmem:[#allocation8] sm:$0xf]
        %v1137 = vld [vmem:[#allocation8 + $0x4] sm:$0xf]
        %v1138 = vld [vmem:[#allocation8 + $0x8] sm:$0xf]
        %v1139 = vld [vmem:[#allocation8 + $0xc] sm:$0xf]
        %v1140 = vld [vmem:[#allocation8 + $0x10] sm:$0xf]
        %v1141 = vld [vmem:[#allocation8 + $0x14] sm:$0xf]
        %v1142 = vld [vmem:[#allocation8 + $0x18] sm:$0xf]
        %v1143 = vld [vmem:[#allocation8 + $0x1c] sm:$0xf]
        %v1144 = vld [vmem:[#allocation8 + $0x20] sm:$0xf]
        %v1145 = vld [vmem:[#allocation8 + $0x24] sm:$0xf]
        %v1146 = vld [vmem:[#allocation8 + $0x28] sm:$0xf]
        %v1147 = vld [vmem:[#allocation8 + $0x2c] sm:$0xf]
        %v1148 = vld [vmem:[#allocation8 + $0x30] sm:$0xf]
        %v1149 = vld [vmem:[#allocation8 + $0x34] sm:$0xf]
        %v1150 = vld [vmem:[#allocation8 + $0x38] sm:$0xf]
        %v1151 = vld [vmem:[#allocation8 + $0x3c] sm:$0xf]
        %v1152 = vpack.c.bf16 %v1121, %v1120
        %v1153 = vpack.c.bf16 %v1123, %v1122
        %v1154 = vpack.c.bf16 %v1125, %v1124
        %v1155 = vpack.c.bf16 %v1127, %v1126
        %v1156 = vpack.c.bf16 %v1129, %v1128
        %v1157 = vpack.c.bf16 %v1131, %v1130
        %v1158 = vpack.c.bf16 %v1133, %v1132
        %v1159 = vpack.c.bf16 %v1135, %v1134
        %v1176 = vunpack.c.l.b16 %v1136
        %v1177 = vunpack.c.l.b16 %v1137
        %v1178 = vunpack.c.l.b16 %v1138
        %v1179 = vunpack.c.l.b16 %v1139
        %v1180 = vunpack.c.l.b16 %v1140
        %v1181 = vunpack.c.l.b16 %v1141
        %v1182 = vunpack.c.l.b16 %v1142
        %v1183 = vunpack.c.l.b16 %v1143
        %v1184 = vunpack.c.l.b16 %v1144
        %v1185 = vunpack.c.l.b16 %v1145
        %v1186 = vunpack.c.l.b16 %v1146
        %v1187 = vunpack.c.l.b16 %v1147
        %v1188 = vunpack.c.l.b16 %v1148
        %v1189 = vunpack.c.l.b16 %v1149
        %v1190 = vunpack.c.l.b16 %v1150
        %v1191 = vunpack.c.l.b16 %v1151
        %v1192 = vpack.c.b16 %v1177, %v1176
        %v1193 = vpack.c.b16 %v1179, %v1178
        %v1194 = vpack.c.b16 %v1181, %v1180
        %v1195 = vpack.c.b16 %v1183, %v1182
        %v1196 = vpack.c.b16 %v1185, %v1184
        %v1197 = vpack.c.b16 %v1187, %v1186
        %v1198 = vpack.c.b16 %v1189, %v1188
        %v1199 = vpack.c.b16 %v1191, %v1190
        %1208 = vmatprep.subr.bf16.mxu0 0
        %1209 = vmatpush1.bf16.msra.mxu0 %v1159
        %1210 = vmatprep.subr.bf16.mxu0 0
        %1211 = vmatpush1.bf16.msra.mxu0 %v1158
        %1212 = vmatprep.subr.bf16.mxu0 0
        %1213 = vmatpush1.bf16.msra.mxu0 %v1157
        %1214 = vmatprep.subr.bf16.mxu0 0
        %1215 = vmatpush1.bf16.msra.mxu0 %v1156
        %1216 = vmatprep.subr.bf16.mxu0 0
        %1217 = vmatpush1.bf16.msra.mxu0 %v1155
        %1218 = vmatprep.subr.bf16.mxu0 0
        %1219 = vmatpush1.bf16.msra.mxu0 %v1154
        %1220 = vmatprep.subr.bf16.mxu0 0
        %1221 = vmatpush1.bf16.msra.mxu0 %v1153
        %1222 = vmatprep.subr.bf16.mxu0 0
        %1223 = vmatpush1.bf16.msra.mxu0 %v1152
        %1224 = vmatprep.subr.bf16.mxu0 0
        %1225 = vmatpush2.bf16.msra.mxu0 0
        %1226 = vmatprep.subr.bf16.mxu0 0
        %1227 = vmatpush2.bf16.msra.mxu0 0
        %1228 = vmatprep.subr.bf16.mxu0 0
        %1229 = vmatpush2.bf16.msra.mxu0 0
        %1230 = vmatprep.subr.bf16.mxu0 0
        %1231 = vmatpush2.bf16.msra.mxu0 0
        %1232 = vmatprep.subr.bf16.mxu0 0
        %1233 = vmatpush2.bf16.msra.mxu0 0
        %1234 = vmatprep.subr.bf16.mxu0 0
        %1235 = vmatpush2.bf16.msra.mxu0 0
        %1236 = vmatprep.subr.bf16.mxu0 0
        %1237 = vmatpush2.bf16.msra.mxu0 0
        %1238 = vmatprep.subr.bf16.mxu0 0
        %1239 = vmatpush2.bf16.msra.mxu0 0
        %1240 = vmatprep.mubr.bf16.mxu0 0
        %1241 = vmatmul.mubr.bf16.gmra.mxu0 %v1192
        %v1242 = vpop.f32.mrf.mxu0
        %v1243 = vadd.f32 0.0, %v1242
        %v1244 = vpop.f32.mrf.mxu0
        %v1245 = vpop.f32.mrf.mxu0
        %v1246 = vadd.f32 0.0, %v1245
        %v1247 = vpop.f32.mrf.mxu0
        %1248 = vmatprep.mubr.bf16.mxu0 0
        %1249 = vmatmul.mubr.bf16.gmra.mxu0 %v1193
        %v1250 = vpop.f32.mrf.mxu0
        %v1251 = vadd.f32 0.0, %v1250
        %v1252 = vpop.f32.mrf.mxu0
        %v1253 = vpop.f32.mrf.mxu0
        %v1254 = vadd.f32 0.0, %v1253
        %v1255 = vpop.f32.mrf.mxu0
        %1256 = vmatprep.mubr.bf16.mxu0 0
        %1257 = vmatmul.mubr.bf16.gmra.mxu0 %v1194
        %v1258 = vpop.f32.mrf.mxu0
        %v1259 = vadd.f32 0.0, %v1258
        %v1260 = vpop.f32.mrf.mxu0
        %v1261 = vpop.f32.mrf.mxu0
        %v1262 = vadd.f32 0.0, %v1261
        %v1263 = vpop.f32.mrf.mxu0
        %1264 = vmatprep.mubr.bf16.mxu0 0
        %1265 = vmatmul.mubr.bf16.gmra.mxu0 %v1195
        %v1266 = vpop.f32.mrf.mxu0
        %v1267 = vadd.f32 0.0, %v1266
        %v1268 = vpop.f32.mrf.mxu0
        %v1269 = vpop.f32.mrf.mxu0
        %v1270 = vadd.f32 0.0, %v1269
        %v1271 = vpop.f32.mrf.mxu0
        %1272 = vmatprep.mubr.bf16.mxu0 0
        %1273 = vmatmul.mubr.bf16.gmra.mxu0 %v1196
        %v1274 = vpop.f32.mrf.mxu0
        %v1275 = vadd.f32 0.0, %v1274
        %v1276 = vpop.f32.mrf.mxu0
        %v1277 = vpop.f32.mrf.mxu0
        %v1278 = vadd.f32 0.0, %v1277
        %v1279 = vpop.f32.mrf.mxu0
        %1280 = vmatprep.mubr.bf16.mxu0 0
        %1281 = vmatmul.mubr.bf16.gmra.mxu0 %v1197
        %v1282 = vpop.f32.mrf.mxu0
        %v1283 = vadd.f32 0.0, %v1282
        %v1284 = vpop.f32.mrf.mxu0
        %v1285 = vpop.f32.mrf.mxu0
        %v1286 = vadd.f32 0.0, %v1285
        %v1287 = vpop.f32.mrf.mxu0
        %1288 = vmatprep.mubr.bf16.mxu0 0
        %1289 = vmatmul.mubr.bf16.gmra.mxu0 %v1198
        %v1290 = vpop.f32.mrf.mxu0
        %v1291 = vadd.f32 0.0, %v1290
        %v1292 = vpop.f32.mrf.mxu0
        %v1293 = vpop.f32.mrf.mxu0
        %v1294 = vadd.f32 0.0, %v1293
        %v1295 = vpop.f32.mrf.mxu0
        %1296 = vmatprep.mubr.bf16.mxu0 0
        %1297 = vmatmul.mubr.bf16.gmra.mxu0 %v1199
        %v1298 = vpop.f32.mrf.mxu0
        %v1299 = vadd.f32 0.0, %v1298
        %v1300 = vpop.f32.mrf.mxu0
        %v1301 = vpop.f32.mrf.mxu0
        %v1302 = vadd.f32 0.0, %v1301
        %v1303 = vpop.f32.mrf.mxu0
        %1304 = vdwg.mxu0
        %v1305 = vadd.f32 %v507, %v1243
        %v1306 = vadd.f32 %v508, %v1246
        %v1307 = vadd.f32 %v509, %v1251
        %v1308 = vadd.f32 %v510, %v1254
        %v1309 = vadd.f32 %v511, %v1259
        %v1310 = vadd.f32 %v512, %v1262
        %v1311 = vadd.f32 %v513, %v1267
        %v1312 = vadd.f32 %v514, %v1270
        %v1313 = vadd.f32 %v515, %v1275
        %v1314 = vadd.f32 %v516, %v1278
        %v1315 = vadd.f32 %v517, %v1283
        %v1316 = vadd.f32 %v518, %v1286
        %v1317 = vadd.f32 %v519, %v1291
        %v1318 = vadd.f32 %v520, %v1294
        %v1319 = vadd.f32 %v521, %v1299
        %v1320 = vadd.f32 %v522, %v1302
        %v1321 = vld [vmem:[%s6] sm:$0xff]
        %v1322 = vld [vmem:[%s6 + $0x8] sm:$0xff]
        %v1323 = vld [vmem:[%s6 + $0x10] sm:$0xff]
        %v1324 = vld [vmem:[%s6 + $0x18] sm:$0xff]
        %v1325 = vld [vmem:[%s6 + $0x20] sm:$0xff]
        %v1326 = vld [vmem:[%s6 + $0x28] sm:$0xff]
        %v1327 = vld [vmem:[%s6 + $0x30] sm:$0xff]
        %v1328 = vld [vmem:[%s6 + $0x38] sm:$0xff]
        %v1329 = vld [vmem:[%s6 + $0x40] sm:$0xff]
        %v1330 = vld [vmem:[%s6 + $0x48] sm:$0xff]
        %v1331 = vld [vmem:[%s6 + $0x50] sm:$0xff]
        %v1332 = vld [vmem:[%s6 + $0x58] sm:$0xff]
        %v1333 = vld [vmem:[%s6 + $0x60] sm:$0xff]
        %v1334 = vld [vmem:[%s6 + $0x68] sm:$0xff]
        %v1335 = vld [vmem:[%s6 + $0x70] sm:$0xff]
        %v1336 = vld [vmem:[%s6 + $0x78] sm:$0xff]
        %1338 = vset.pattern.permute.xlu0 0
        %1339 = vperm.xlu0 %1338, %v1321
        %v1340 = vpop.permute.xlu0 %1339
        %1343 = vset.pattern.permute.xlu0 0
        %1344 = vperm.xlu0 %1343, %v1322
        %v1345 = vpop.permute.xlu0 %1344
        %1348 = vset.pattern.permute.xlu0 0
        %1349 = vperm.xlu0 %1348, %v1323
        %v1350 = vpop.permute.xlu0 %1349
        %1353 = vset.pattern.permute.xlu0 0
        %1354 = vperm.xlu0 %1353, %v1324
        %v1355 = vpop.permute.xlu0 %1354
        %1358 = vset.pattern.permute.xlu0 0
        %1359 = vperm.xlu0 %1358, %v1325
        %v1360 = vpop.permute.xlu0 %1359
        %1363 = vset.pattern.permute.xlu0 0
        %1364 = vperm.xlu0 %1363, %v1326
        %v1365 = vpop.permute.xlu0 %1364
        %1368 = vset.pattern.permute.xlu0 0
        %1369 = vperm.xlu0 %1368, %v1327
        %v1370 = vpop.permute.xlu0 %1369
        %1373 = vset.pattern.permute.xlu0 0
        %1374 = vperm.xlu0 %1373, %v1328
        %v1375 = vpop.permute.xlu0 %1374
        %1378 = vset.pattern.permute.xlu0 0
        %1379 = vperm.xlu0 %1378, %v1329
        %v1380 = vpop.permute.xlu0 %1379
        %1383 = vset.pattern.permute.xlu0 0
        %1384 = vperm.xlu0 %1383, %v1330
        %v1385 = vpop.permute.xlu0 %1384
        %1388 = vset.pattern.permute.xlu0 0
        %1389 = vperm.xlu0 %1388, %v1331
        %v1390 = vpop.permute.xlu0 %1389
        %1393 = vset.pattern.permute.xlu0 0
        %1394 = vperm.xlu0 %1393, %v1332
        %v1395 = vpop.permute.xlu0 %1394
        %1398 = vset.pattern.permute.xlu0 0
        %1399 = vperm.xlu0 %1398, %v1333
        %v1400 = vpop.permute.xlu0 %1399
        %1403 = vset.pattern.permute.xlu0 0
        %1404 = vperm.xlu0 %1403, %v1334
        %v1405 = vpop.permute.xlu0 %1404
        %1408 = vset.pattern.permute.xlu0 0
        %1409 = vperm.xlu0 %1408, %v1335
        %v1410 = vpop.permute.xlu0 %1409
        %1413 = vset.pattern.permute.xlu0 0
        %1414 = vperm.xlu0 %1413, %v1336
        %v1415 = vpop.permute.xlu0 %1414
        %v1417 = vadd.f32 %v1305, %v1340
        %v1418 = vadd.f32 %v1306, %v1345
        %v1419 = vadd.f32 %v1307, %v1350
        %v1420 = vadd.f32 %v1308, %v1355
        %v1421 = vadd.f32 %v1309, %v1360
        %v1422 = vadd.f32 %v1310, %v1365
        %v1423 = vadd.f32 %v1311, %v1370
        %v1424 = vadd.f32 %v1312, %v1375
        %v1425 = vadd.f32 %v1313, %v1380
        %v1426 = vadd.f32 %v1314, %v1385
        %v1427 = vadd.f32 %v1315, %v1390
        %v1428 = vadd.f32 %v1316, %v1395
        %v1429 = vadd.f32 %v1317, %v1400
        %v1430 = vadd.f32 %v1318, %v1405
        %v1431 = vadd.f32 %v1319, %v1410
        %v1432 = vadd.f32 %v1320, %v1415
        %1433 = vst [vmem:[#allocation2] sm:$0xff] %v1417
        %1434 = vst [vmem:[#allocation2 + $0x8] sm:$0xff] %v1418
        %1435 = vst [vmem:[#allocation2 + $0x10] sm:$0xff] %v1419
        %1436 = vst [vmem:[#allocation2 + $0x18] sm:$0xff] %v1420
        %1437 = vst [vmem:[#allocation2 + $0x20] sm:$0xff] %v1421
        %1438 = vst [vmem:[#allocation2 + $0x28] sm:$0xff] %v1422
        %1439 = vst [vmem:[#allocation2 + $0x30] sm:$0xff] %v1423
        %1440 = vst [vmem:[#allocation2 + $0x38] sm:$0xff] %v1424
        %1441 = vst [vmem:[#allocation2 + $0x40] sm:$0xff] %v1425
        %1442 = vst [vmem:[#allocation2 + $0x48] sm:$0xff] %v1426
        %1443 = vst [vmem:[#allocation2 + $0x50] sm:$0xff] %v1427
        %1444 = vst [vmem:[#allocation2 + $0x58] sm:$0xff] %v1428
        %1445 = vst [vmem:[#allocation2 + $0x60] sm:$0xff] %v1429
        %1446 = vst [vmem:[#allocation2 + $0x68] sm:$0xff] %v1430
        %1447 = vst [vmem:[#allocation2 + $0x70] sm:$0xff] %v1431
        %1448 = vst [vmem:[#allocation2 + $0x78] sm:$0xff] %v1432
        %v1449 = vld [vmem:[#allocation2] sm:$0xff]
        %v1450 = vld [vmem:[#allocation2 + $0x8] sm:$0xff]
        %v1451 = vld [vmem:[#allocation2 + $0x10] sm:$0xff]
        %v1452 = vld [vmem:[#allocation2 + $0x18] sm:$0xff]
        %v1453 = vld [vmem:[#allocation2 + $0x20] sm:$0xff]
        %v1454 = vld [vmem:[#allocation2 + $0x28] sm:$0xff]
        %v1455 = vld [vmem:[#allocation2 + $0x30] sm:$0xff]
        %v1456 = vld [vmem:[#allocation2 + $0x38] sm:$0xff]
        %v1457 = vld [vmem:[#allocation2 + $0x40] sm:$0xff]
        %v1458 = vld [vmem:[#allocation2 + $0x48] sm:$0xff]
        %v1459 = vld [vmem:[#allocation2 + $0x50] sm:$0xff]
        %v1460 = vld [vmem:[#allocation2 + $0x58] sm:$0xff]
        %v1461 = vld [vmem:[#allocation2 + $0x60] sm:$0xff]
        %v1462 = vld [vmem:[#allocation2 + $0x68] sm:$0xff]
        %v1463 = vld [vmem:[#allocation2 + $0x70] sm:$0xff]
        %v1464 = vld [vmem:[#allocation2 + $0x78] sm:$0xff]
        %v1465 = vld [vmem:[%s7] sm:$0x1]
        %v1466 = vld [vmem:[%s8] sm:$0x1]
        %1467 = vadd.xlane.f32.xlu0 %v1449
        %v1468 = vpop.xlane.xlu0 %1467
        %1469 = vadd.xlane.f32.xlu0 %v1450
        %v1470 = vpop.xlane.xlu0 %1469
        %1471 = vadd.xlane.f32.xlu0 %v1451
        %v1472 = vpop.xlane.xlu0 %1471
        %1473 = vadd.xlane.f32.xlu0 %v1452
        %v1474 = vpop.xlane.xlu0 %1473
        %1475 = vadd.xlane.f32.xlu0 %v1453
        %v1476 = vpop.xlane.xlu0 %1475
        %1477 = vadd.xlane.f32.xlu0 %v1454
        %v1478 = vpop.xlane.xlu0 %1477
        %1479 = vadd.xlane.f32.xlu0 %v1455
        %v1480 = vpop.xlane.xlu0 %1479
        %1481 = vadd.xlane.f32.xlu0 %v1456
        %v1482 = vpop.xlane.xlu0 %1481
        %1483 = vadd.xlane.f32.xlu0 %v1457
        %v1484 = vpop.xlane.xlu0 %1483
        %1485 = vadd.xlane.f32.xlu0 %v1458
        %v1486 = vpop.xlane.xlu0 %1485
        %1487 = vadd.xlane.f32.xlu0 %v1459
        %v1488 = vpop.xlane.xlu0 %1487
        %1489 = vadd.xlane.f32.xlu0 %v1460
        %v1490 = vpop.xlane.xlu0 %1489
        %1491 = vadd.xlane.f32.xlu0 %v1461
        %v1492 = vpop.xlane.xlu0 %1491
        %1493 = vadd.xlane.f32.xlu0 %v1462
        %v1494 = vpop.xlane.xlu0 %1493
        %1495 = vadd.xlane.f32.xlu0 %v1463
        %v1496 = vpop.xlane.xlu0 %1495
        %1497 = vadd.xlane.f32.xlu0 %v1464
        %v1498 = vpop.xlane.xlu0 %1497
        %v1499 = vmul.f32 %v1449, %v1449
        %v1500 = vmul.f32 %v1450, %v1450
        %v1501 = vmul.f32 %v1451, %v1451
        %v1502 = vmul.f32 %v1452, %v1452
        %v1503 = vmul.f32 %v1453, %v1453
        %v1504 = vmul.f32 %v1454, %v1454
        %v1505 = vmul.f32 %v1455, %v1455
        %v1506 = vmul.f32 %v1456, %v1456
        %v1507 = vmul.f32 %v1457, %v1457
        %v1508 = vmul.f32 %v1458, %v1458
        %v1509 = vmul.f32 %v1459, %v1459
        %v1510 = vmul.f32 %v1460, %v1460
        %v1511 = vmul.f32 %v1461, %v1461
        %v1512 = vmul.f32 %v1462, %v1462
        %v1513 = vmul.f32 %v1463, %v1463
        %v1514 = vmul.f32 %v1464, %v1464
        %1515 = vadd.xlane.f32.xlu0 %v1499
        %v1516 = vpop.xlane.xlu0 %1515
        %1517 = vadd.xlane.f32.xlu0 %v1500
        %v1518 = vpop.xlane.xlu0 %1517
        %1519 = vadd.xlane.f32.xlu0 %v1501
        %v1520 = vpop.xlane.xlu0 %1519
        %1521 = vadd.xlane.f32.xlu0 %v1502
        %v1522 = vpop.xlane.xlu0 %1521
        %1523 = vadd.xlane.f32.xlu0 %v1503
        %v1524 = vpop.xlane.xlu0 %1523
        %1525 = vadd.xlane.f32.xlu0 %v1504
        %v1526 = vpop.xlane.xlu0 %1525
        %1527 = vadd.xlane.f32.xlu0 %v1505
        %v1528 = vpop.xlane.xlu0 %1527
        %1529 = vadd.xlane.f32.xlu0 %v1506
        %v1530 = vpop.xlane.xlu0 %1529
        %1531 = vadd.xlane.f32.xlu0 %v1507
        %v1532 = vpop.xlane.xlu0 %1531
        %1533 = vadd.xlane.f32.xlu0 %v1508
        %v1534 = vpop.xlane.xlu0 %1533
        %1535 = vadd.xlane.f32.xlu0 %v1509
        %v1536 = vpop.xlane.xlu0 %1535
        %1537 = vadd.xlane.f32.xlu0 %v1510
        %v1538 = vpop.xlane.xlu0 %1537
        %1539 = vadd.xlane.f32.xlu0 %v1511
        %v1540 = vpop.xlane.xlu0 %1539
        %1541 = vadd.xlane.f32.xlu0 %v1512
        %v1542 = vpop.xlane.xlu0 %1541
        %1543 = vadd.xlane.f32.xlu0 %v1513
        %v1544 = vpop.xlane.xlu0 %1543
        %1545 = vadd.xlane.f32.xlu0 %v1514
        %v1546 = vpop.xlane.xlu0 %1545
        %v1547 = vmul.f32 %v1468, 0.0078125
        %v1548 = vmul.f32 %v1470, 0.0078125
        %v1549 = vmul.f32 %v1472, 0.0078125
        %v1550 = vmul.f32 %v1474, 0.0078125
        %v1551 = vmul.f32 %v1476, 0.0078125
        %v1552 = vmul.f32 %v1478, 0.0078125
        %v1553 = vmul.f32 %v1480, 0.0078125
        %v1554 = vmul.f32 %v1482, 0.0078125
        %v1555 = vmul.f32 %v1484, 0.0078125
        %v1556 = vmul.f32 %v1486, 0.0078125
        %v1557 = vmul.f32 %v1488, 0.0078125
        %v1558 = vmul.f32 %v1490, 0.0078125
        %v1559 = vmul.f32 %v1492, 0.0078125
        %v1560 = vmul.f32 %v1494, 0.0078125
        %v1561 = vmul.f32 %v1496, 0.0078125
        %v1562 = vmul.f32 %v1498, 0.0078125
        %v1563 = vmul.f32 %v1516, 0.0078125
        %v1564 = vmul.f32 %v1518, 0.0078125
        %v1565 = vmul.f32 %v1520, 0.0078125
        %v1566 = vmul.f32 %v1522, 0.0078125
        %v1567 = vmul.f32 %v1524, 0.0078125
        %v1568 = vmul.f32 %v1526, 0.0078125
        %v1569 = vmul.f32 %v1528, 0.0078125
        %v1570 = vmul.f32 %v1530, 0.0078125
        %v1571 = vmul.f32 %v1532, 0.0078125
        %v1572 = vmul.f32 %v1534, 0.0078125
        %v1573 = vmul.f32 %v1536, 0.0078125
        %v1574 = vmul.f32 %v1538, 0.0078125
        %v1575 = vmul.f32 %v1540, 0.0078125
        %v1576 = vmul.f32 %v1542, 0.0078125
        %v1577 = vmul.f32 %v1544, 0.0078125
        %v1578 = vmul.f32 %v1546, 0.0078125
        %v1579 = vmul.f32 %v1547, %v1547
        %v1580 = vmul.f32 %v1548, %v1548
        %v1581 = vmul.f32 %v1549, %v1549
        %v1582 = vmul.f32 %v1550, %v1550
        %v1583 = vmul.f32 %v1551, %v1551
        %v1584 = vmul.f32 %v1552, %v1552
        %v1585 = vmul.f32 %v1553, %v1553
        %v1586 = vmul.f32 %v1554, %v1554
        %v1587 = vmul.f32 %v1555, %v1555
        %v1588 = vmul.f32 %v1556, %v1556
        %v1589 = vmul.f32 %v1557, %v1557
        %v1590 = vmul.f32 %v1558, %v1558
        %v1591 = vmul.f32 %v1559, %v1559
        %v1592 = vmul.f32 %v1560, %v1560
        %v1593 = vmul.f32 %v1561, %v1561
        %v1594 = vmul.f32 %v1562, %v1562
        %v1595 = vsub.f32 %v1563, %v1579
        %v1596 = vsub.f32 %v1564, %v1580
        %v1597 = vsub.f32 %v1565, %v1581
        %v1598 = vsub.f32 %v1566, %v1582
        %v1599 = vsub.f32 %v1567, %v1583
        %v1600 = vsub.f32 %v1568, %v1584
        %v1601 = vsub.f32 %v1569, %v1585
        %v1602 = vsub.f32 %v1570, %v1586
        %v1603 = vsub.f32 %v1571, %v1587
        %v1604 = vsub.f32 %v1572, %v1588
        %v1605 = vsub.f32 %v1573, %v1589
        %v1606 = vsub.f32 %v1574, %v1590
        %v1607 = vsub.f32 %v1575, %v1591
        %v1608 = vsub.f32 %v1576, %v1592
        %v1609 = vsub.f32 %v1577, %v1593
        %v1610 = vsub.f32 %v1578, %v1594
        %v1611 = vmax.f32 %v1595, 0.0
        %v1612 = vmax.f32 %v1596, 0.0
        %v1613 = vmax.f32 %v1597, 0.0
        %v1614 = vmax.f32 %v1598, 0.0
        %v1615 = vmax.f32 %v1599, 0.0
        %v1616 = vmax.f32 %v1600, 0.0
        %v1617 = vmax.f32 %v1601, 0.0
        %v1618 = vmax.f32 %v1602, 0.0
        %v1619 = vmax.f32 %v1603, 0.0
        %v1620 = vmax.f32 %v1604, 0.0
        %v1621 = vmax.f32 %v1605, 0.0
        %v1622 = vmax.f32 %v1606, 0.0
        %v1623 = vmax.f32 %v1607, 0.0
        %v1624 = vmax.f32 %v1608, 0.0
        %v1625 = vmax.f32 %v1609, 0.0
        %v1626 = vmax.f32 %v1610, 0.0
        %v1627 = vadd.f32 %v1611, 1e-05
        %v1628 = vadd.f32 %v1612, 1e-05
        %v1629 = vadd.f32 %v1613, 1e-05
        %v1630 = vadd.f32 %v1614, 1e-05
        %v1631 = vadd.f32 %v1615, 1e-05
        %v1632 = vadd.f32 %v1616, 1e-05
        %v1633 = vadd.f32 %v1617, 1e-05
        %v1634 = vadd.f32 %v1618, 1e-05
        %v1635 = vadd.f32 %v1619, 1e-05
        %v1636 = vadd.f32 %v1620, 1e-05
        %v1637 = vadd.f32 %v1621, 1e-05
        %v1638 = vadd.f32 %v1622, 1e-05
        %v1639 = vadd.f32 %v1623, 1e-05
        %v1640 = vadd.f32 %v1624, 1e-05
        %v1641 = vadd.f32 %v1625, 1e-05
        %v1642 = vadd.f32 %v1626, 1e-05
        %v1643 = vrsqrt.pop %v1627
        %v1644 = vrsqrt.pop %v1628
        %v1645 = vrsqrt.pop %v1629
        %v1646 = vrsqrt.pop %v1630
        %v1647 = vrsqrt.pop %v1631
        %v1648 = vrsqrt.pop %v1632
        %v1649 = vrsqrt.pop %v1633
        %v1650 = vrsqrt.pop %v1634
        %v1651 = vrsqrt.pop %v1635
        %v1652 = vrsqrt.pop %v1636
        %v1653 = vrsqrt.pop %v1637
        %v1654 = vrsqrt.pop %v1638
        %v1655 = vrsqrt.pop %v1639
        %v1656 = vrsqrt.pop %v1640
        %v1657 = vrsqrt.pop %v1641
        %v1658 = vrsqrt.pop %v1642
        %v1659 = vsub.f32 %v1449, %v1547
        %v1660 = vsub.f32 %v1450, %v1548
        %v1661 = vsub.f32 %v1451, %v1549
        %v1662 = vsub.f32 %v1452, %v1550
        %v1663 = vsub.f32 %v1453, %v1551
        %v1664 = vsub.f32 %v1454, %v1552
        %v1665 = vsub.f32 %v1455, %v1553
        %v1666 = vsub.f32 %v1456, %v1554
        %v1667 = vsub.f32 %v1457, %v1555
        %v1668 = vsub.f32 %v1458, %v1556
        %v1669 = vsub.f32 %v1459, %v1557
        %v1670 = vsub.f32 %v1460, %v1558
        %v1671 = vsub.f32 %v1461, %v1559
        %v1672 = vsub.f32 %v1462, %v1560
        %v1673 = vsub.f32 %v1463, %v1561
        %v1674 = vsub.f32 %v1464, %v1562
        %v1675 = vmul.f32 %v1659, %v1643
        %v1676 = vmul.f32 %v1660, %v1644
        %v1677 = vmul.f32 %v1661, %v1645
        %v1678 = vmul.f32 %v1662, %v1646
        %v1679 = vmul.f32 %v1663, %v1647
        %v1680 = vmul.f32 %v1664, %v1648
        %v1681 = vmul.f32 %v1665, %v1649
        %v1682 = vmul.f32 %v1666, %v1650
        %v1683 = vmul.f32 %v1667, %v1651
        %v1684 = vmul.f32 %v1668, %v1652
        %v1685 = vmul.f32 %v1669, %v1653
        %v1686 = vmul.f32 %v1670, %v1654
        %v1687 = vmul.f32 %v1671, %v1655
        %v1688 = vmul.f32 %v1672, %v1656
        %v1689 = vmul.f32 %v1673, %v1657
        %v1690 = vmul.f32 %v1674, %v1658
        %v1692 = vlaneseq
        %v1693 = vshrl.u32 %v1692, 7
        %v1694 = vsub.s32 0, %v1693
        %v1695 = vrot.slane %v1465, %v1694
        %v1697 = vmul.f32 %v1675, %v1695
        %v1698 = vmul.f32 %v1676, %v1695
        %v1699 = vmul.f32 %v1677, %v1695
        %v1700 = vmul.f32 %v1678, %v1695
        %v1701 = vmul.f32 %v1679, %v1695
        %v1702 = vmul.f32 %v1680, %v1695
        %v1703 = vmul.f32 %v1681, %v1695
        %v1704 = vmul.f32 %v1682, %v1695
        %v1705 = vmul.f32 %v1683, %v1695
        %v1706 = vmul.f32 %v1684, %v1695
        %v1707 = vmul.f32 %v1685, %v1695
        %v1708 = vmul.f32 %v1686, %v1695
        %v1709 = vmul.f32 %v1687, %v1695
        %v1710 = vmul.f32 %v1688, %v1695
        %v1711 = vmul.f32 %v1689, %v1695
        %v1712 = vmul.f32 %v1690, %v1695
        %v1714 = vlaneseq
        %v1715 = vshrl.u32 %v1714, 7
        %v1716 = vsub.s32 0, %v1715
        %v1717 = vrot.slane %v1466, %v1716
        %v1719 = vadd.f32 %v1697, %v1717
        %v1720 = vadd.f32 %v1698, %v1717
        %v1721 = vadd.f32 %v1699, %v1717
        %v1722 = vadd.f32 %v1700, %v1717
        %v1723 = vadd.f32 %v1701, %v1717
        %v1724 = vadd.f32 %v1702, %v1717
        %v1725 = vadd.f32 %v1703, %v1717
        %v1726 = vadd.f32 %v1704, %v1717
        %v1727 = vadd.f32 %v1705, %v1717
        %v1728 = vadd.f32 %v1706, %v1717
        %v1729 = vadd.f32 %v1707, %v1717
        %v1730 = vadd.f32 %v1708, %v1717
        %v1731 = vadd.f32 %v1709, %v1717
        %v1732 = vadd.f32 %v1710, %v1717
        %v1733 = vadd.f32 %v1711, %v1717
        %v1734 = vadd.f32 %v1712, %v1717
        %v1735 = vpack.c.bf16 %v1720, %v1719
        %v1736 = vpack.c.bf16 %v1722, %v1721
        %v1737 = vpack.c.bf16 %v1724, %v1723
        %v1738 = vpack.c.bf16 %v1726, %v1725
        %v1739 = vpack.c.bf16 %v1728, %v1727
        %v1740 = vpack.c.bf16 %v1730, %v1729
        %v1741 = vpack.c.bf16 %v1732, %v1731
        %v1742 = vpack.c.bf16 %v1734, %v1733
        %v1743 = vld [vmem:[%s9] sm:$0xff]
        %v1744 = vld [vmem:[%s9 + $0x8] sm:$0xff]
        %v1745 = vld [vmem:[%s9 + $0x10] sm:$0xff]
        %v1746 = vld [vmem:[%s9 + $0x18] sm:$0xff]
        %v1747 = vld [vmem:[%s9 + $0x20] sm:$0xff]
        %v1748 = vld [vmem:[%s9 + $0x28] sm:$0xff]
        %v1749 = vld [vmem:[%s9 + $0x30] sm:$0xff]
        %v1750 = vld [vmem:[%s9 + $0x38] sm:$0xff]
        %v1751 = vld [vmem:[%s9 + $0x40] sm:$0xff]
        %v1752 = vld [vmem:[%s9 + $0x48] sm:$0xff]
        %v1753 = vld [vmem:[%s9 + $0x50] sm:$0xff]
        %v1754 = vld [vmem:[%s9 + $0x58] sm:$0xff]
        %v1755 = vld [vmem:[%s9 + $0x60] sm:$0xff]
        %v1756 = vld [vmem:[%s9 + $0x68] sm:$0xff]
        %v1757 = vld [vmem:[%s9 + $0x70] sm:$0xff]
        %v1758 = vld [vmem:[%s9 + $0x78] sm:$0xff]
        %v1759 = vld [vmem:[%s10] sm:$0x3]
        %v1761 = vlaneseq
        %v1762 = vshrl.u32 %v1761, 7
        %v1763 = vsub.s32 0, %v1762
        %v1764 = vrot.slane %v1759, %v1763
        %v1765 = vlaneseq
        %v1766 = vshrl.u32 %v1765, 7
        %v1767 = vsub.s32 1, %v1766
        %v1768 = vrot.slane %v1759, %v1767
        %v1787 = vunpack.c.l.b16 %v1743
        %v1788 = vunpack.c.h.b16 %v1743
        %v1789 = vunpack.c.l.b16 %v1744
        %v1790 = vunpack.c.h.b16 %v1744
        %v1791 = vunpack.c.l.b16 %v1745
        %v1792 = vunpack.c.h.b16 %v1745
        %v1793 = vunpack.c.l.b16 %v1746
        %v1794 = vunpack.c.h.b16 %v1746
        %v1795 = vunpack.c.l.b16 %v1747
        %v1796 = vunpack.c.h.b16 %v1747
        %v1797 = vunpack.c.l.b16 %v1748
        %v1798 = vunpack.c.h.b16 %v1748
        %v1799 = vunpack.c.l.b16 %v1749
        %v1800 = vunpack.c.h.b16 %v1749
        %v1801 = vunpack.c.l.b16 %v1750
        %v1802 = vunpack.c.h.b16 %v1750
        %v1803 = vunpack.c.l.b16 %v1751
        %v1804 = vunpack.c.h.b16 %v1751
        %v1805 = vunpack.c.l.b16 %v1752
        %v1806 = vunpack.c.h.b16 %v1752
        %v1807 = vunpack.c.l.b16 %v1753
        %v1808 = vunpack.c.h.b16 %v1753
        %v1809 = vunpack.c.l.b16 %v1754
        %v1810 = vunpack.c.h.b16 %v1754
        %v1811 = vunpack.c.l.b16 %v1755
        %v1812 = vunpack.c.h.b16 %v1755
        %v1813 = vunpack.c.l.b16 %v1756
        %v1814 = vunpack.c.h.b16 %v1756
        %v1815 = vunpack.c.l.b16 %v1757
        %v1816 = vunpack.c.h.b16 %v1757
        %v1817 = vunpack.c.l.b16 %v1758
        %v1818 = vunpack.c.h.b16 %v1758
        %v1819 = vpack.c.b16 %v1789, %v1787
        %v1820 = vpack.c.b16 %v1790, %v1788
        %v1821 = vpack.c.b16 %v1793, %v1791
        %v1822 = vpack.c.b16 %v1794, %v1792
        %v1823 = vpack.c.b16 %v1797, %v1795
        %v1824 = vpack.c.b16 %v1798, %v1796
        %v1825 = vpack.c.b16 %v1801, %v1799
        %v1826 = vpack.c.b16 %v1802, %v1800
        %v1827 = vpack.c.b16 %v1805, %v1803
        %v1828 = vpack.c.b16 %v1806, %v1804
        %v1829 = vpack.c.b16 %v1809, %v1807
        %v1830 = vpack.c.b16 %v1810, %v1808
        %v1831 = vpack.c.b16 %v1813, %v1811
        %v1832 = vpack.c.b16 %v1814, %v1812
        %v1833 = vpack.c.b16 %v1817, %v1815
        %v1834 = vpack.c.b16 %v1818, %v1816
        %1851 = vmatprep.subr.bf16.mxu0 %v1834
        %1852 = vmatpush1.bf16.msra.mxu0 %v1833
        %1853 = vmatprep.subr.bf16.mxu0 %v1832
        %1854 = vmatpush1.bf16.msra.mxu0 %v1831
        %1855 = vmatprep.subr.bf16.mxu0 %v1830
        %1856 = vmatpush1.bf16.msra.mxu0 %v1829
        %1857 = vmatprep.subr.bf16.mxu0 %v1828
        %1858 = vmatpush1.bf16.msra.mxu0 %v1827
        %1859 = vmatprep.subr.bf16.mxu0 %v1826
        %1860 = vmatpush1.bf16.msra.mxu0 %v1825
        %1861 = vmatprep.subr.bf16.mxu0 %v1824
        %1862 = vmatpush1.bf16.msra.mxu0 %v1823
        %1863 = vmatprep.subr.bf16.mxu0 %v1822
        %1864 = vmatpush1.bf16.msra.mxu0 %v1821
        %1865 = vmatprep.subr.bf16.mxu0 %v1820
        %1866 = vmatpush1.bf16.msra.mxu0 %v1819
        %1867 = vmatprep.subr.bf16.mxu0 0
        %1868 = vmatpush2.bf16.msra.mxu0 0
        %1869 = vmatprep.subr.bf16.mxu0 0
        %1870 = vmatpush2.bf16.msra.mxu0 0
        %1871 = vmatprep.subr.bf16.mxu0 0
        %1872 = vmatpush2.bf16.msra.mxu0 0
        %1873 = vmatprep.subr.bf16.mxu0 0
        %1874 = vmatpush2.bf16.msra.mxu0 0
        %1875 = vmatprep.subr.bf16.mxu0 0
        %1876 = vmatpush2.bf16.msra.mxu0 0
        %1877 = vmatprep.subr.bf16.mxu0 0
        %1878 = vmatpush2.bf16.msra.mxu0 0
        %1879 = vmatprep.subr.bf16.mxu0 0
        %1880 = vmatpush2.bf16.msra.mxu0 0
        %1881 = vmatprep.subr.bf16.mxu0 0
        %1882 = vmatpush2.bf16.msra.mxu0 0
        %1883 = vmatprep.mubr.bf16.mxu0 0
        %1884 = vmatmul.mubr.bf16.gmra.mxu0 %v1735
        %v1885 = vpop.f32.mrf.mxu0
        %v1886 = vadd.f32 %v1764, %v1885
        %v1887 = vpop.f32.mrf.mxu0
        %v1888 = vadd.f32 %v1768, %v1887
        %v1889 = vpop.f32.mrf.mxu0
        %v1890 = vadd.f32 %v1764, %v1889
        %v1891 = vpop.f32.mrf.mxu0
        %v1892 = vadd.f32 %v1768, %v1891
        %1893 = vmatprep.mubr.bf16.mxu0 0
        %1894 = vmatmul.mubr.bf16.gmra.mxu0 %v1736
        %v1895 = vpop.f32.mrf.mxu0
        %v1896 = vadd.f32 %v1764, %v1895
        %v1897 = vpop.f32.mrf.mxu0
        %v1898 = vadd.f32 %v1768, %v1897
        %v1899 = vpop.f32.mrf.mxu0
        %v1900 = vadd.f32 %v1764, %v1899
        %v1901 = vpop.f32.mrf.mxu0
        %v1902 = vadd.f32 %v1768, %v1901
        %1903 = vmatprep.mubr.bf16.mxu0 0
        %1904 = vmatmul.mubr.bf16.gmra.mxu0 %v1737
        %v1905 = vpop.f32.mrf.mxu0
        %v1906 = vadd.f32 %v1764, %v1905
        %v1907 = vpop.f32.mrf.mxu0
        %v1908 = vadd.f32 %v1768, %v1907
        %v1909 = vpop.f32.mrf.mxu0
        %v1910 = vadd.f32 %v1764, %v1909
        %v1911 = vpop.f32.mrf.mxu0
        %v1912 = vadd.f32 %v1768, %v1911
        %1913 = vmatprep.mubr.bf16.mxu0 0
        %1914 = vmatmul.mubr.bf16.gmra.mxu0 %v1738
        %v1915 = vpop.f32.mrf.mxu0
        %v1916 = vadd.f32 %v1764, %v1915
        %v1917 = vpop.f32.mrf.mxu0
        %v1918 = vadd.f32 %v1768, %v1917
        %v1919 = vpop.f32.mrf.mxu0
        %v1920 = vadd.f32 %v1764, %v1919
        %v1921 = vpop.f32.mrf.mxu0
        %v1922 = vadd.f32 %v1768, %v1921
        %1923 = vmatprep.mubr.bf16.mxu0 0
        %1924 = vmatmul.mubr.bf16.gmra.mxu0 %v1739
        %v1925 = vpop.f32.mrf.mxu0
        %v1926 = vadd.f32 %v1764, %v1925
        %v1927 = vpop.f32.mrf.mxu0
        %v1928 = vadd.f32 %v1768, %v1927
        %v1929 = vpop.f32.mrf.mxu0
        %v1930 = vadd.f32 %v1764, %v1929
        %v1931 = vpop.f32.mrf.mxu0
        %v1932 = vadd.f32 %v1768, %v1931
        %1933 = vmatprep.mubr.bf16.mxu0 0
        %1934 = vmatmul.mubr.bf16.gmra.mxu0 %v1740
        %v1935 = vpop.f32.mrf.mxu0
        %v1936 = vadd.f32 %v1764, %v1935
        %v1937 = vpop.f32.mrf.mxu0
        %v1938 = vadd.f32 %v1768, %v1937
        %v1939 = vpop.f32.mrf.mxu0
        %v1940 = vadd.f32 %v1764, %v1939
        %v1941 = vpop.f32.mrf.mxu0
        %v1942 = vadd.f32 %v1768, %v1941
        %1943 = vmatprep.mubr.bf16.mxu0 0
        %1944 = vmatmul.mubr.bf16.gmra.mxu0 %v1741
        %v1945 = vpop.f32.mrf.mxu0
        %v1946 = vadd.f32 %v1764, %v1945
        %v1947 = vpop.f32.mrf.mxu0
        %v1948 = vadd.f32 %v1768, %v1947
        %v1949 = vpop.f32.mrf.mxu0
        %v1950 = vadd.f32 %v1764, %v1949
        %v1951 = vpop.f32.mrf.mxu0
        %v1952 = vadd.f32 %v1768, %v1951
        %1953 = vmatprep.mubr.bf16.mxu0 0
        %1954 = vmatmul.mubr.bf16.gmra.mxu0 %v1742
        %v1955 = vpop.f32.mrf.mxu0
        %v1956 = vadd.f32 %v1764, %v1955
        %v1957 = vpop.f32.mrf.mxu0
        %v1958 = vadd.f32 %v1768, %v1957
        %v1959 = vpop.f32.mrf.mxu0
        %v1960 = vadd.f32 %v1764, %v1959
        %v1961 = vpop.f32.mrf.mxu0
        %v1962 = vadd.f32 %v1768, %v1961
        %1963 = vdwg.mxu0
        %v1964 = vmul.f32 %v1886, 0.5
        %v1965 = vmul.f32 %v1888, 0.5
        %v1966 = vmul.f32 %v1890, 0.5
        %v1967 = vmul.f32 %v1892, 0.5
        %v1968 = vmul.f32 %v1896, 0.5
        %v1969 = vmul.f32 %v1898, 0.5
        %v1970 = vmul.f32 %v1900, 0.5
        %v1971 = vmul.f32 %v1902, 0.5
        %v1972 = vmul.f32 %v1906, 0.5
        %v1973 = vmul.f32 %v1908, 0.5
        %v1974 = vmul.f32 %v1910, 0.5
        %v1975 = vmul.f32 %v1912, 0.5
        %v1976 = vmul.f32 %v1916, 0.5
        %v1977 = vmul.f32 %v1918, 0.5
        %v1978 = vmul.f32 %v1920, 0.5
        %v1979 = vmul.f32 %v1922, 0.5
        %v1980 = vmul.f32 %v1926, 0.5
        %v1981 = vmul.f32 %v1928, 0.5
        %v1982 = vmul.f32 %v1930, 0.5
        %v1983 = vmul.f32 %v1932, 0.5
        %v1984 = vmul.f32 %v1936, 0.5
        %v1985 = vmul.f32 %v1938, 0.5
        %v1986 = vmul.f32 %v1940, 0.5
        %v1987 = vmul.f32 %v1942, 0.5
        %v1988 = vmul.f32 %v1946, 0.5
        %v1989 = vmul.f32 %v1948, 0.5
        %v1990 = vmul.f32 %v1950, 0.5
        %v1991 = vmul.f32 %v1952, 0.5
        %v1992 = vmul.f32 %v1956, 0.5
        %v1993 = vmul.f32 %v1958, 0.5
        %v1994 = vmul.f32 %v1960, 0.5
        %v1995 = vmul.f32 %v1962, 0.5
        %v1996 = vmul.f32 %v1886, 0.70710677
        %v1997 = vmul.f32 %v1888, 0.70710677
        %v1998 = vmul.f32 %v1890, 0.70710677
        %v1999 = vmul.f32 %v1892, 0.70710677
        %v2000 = vmul.f32 %v1896, 0.70710677
        %v2001 = vmul.f32 %v1898, 0.70710677
        %v2002 = vmul.f32 %v1900, 0.70710677
        %v2003 = vmul.f32 %v1902, 0.70710677
        %v2004 = vmul.f32 %v1906, 0.70710677
        %v2005 = vmul.f32 %v1908, 0.70710677
        %v2006 = vmul.f32 %v1910, 0.70710677
        %v2007 = vmul.f32 %v1912, 0.70710677
        %v2008 = vmul.f32 %v1916, 0.70710677
        %v2009 = vmul.f32 %v1918, 0.70710677
        %v2010 = vmul.f32 %v1920, 0.70710677
        %v2011 = vmul.f32 %v1922, 0.70710677
        %v2012 = vmul.f32 %v1926, 0.70710677
        %v2013 = vmul.f32 %v1928, 0.70710677
        %v2014 = vmul.f32 %v1930, 0.70710677
        %v2015 = vmul.f32 %v1932, 0.70710677
        %v2016 = vmul.f32 %v1936, 0.70710677
        %v2017 = vmul.f32 %v1938, 0.70710677
        %v2018 = vmul.f32 %v1940, 0.70710677
        %v2019 = vmul.f32 %v1942, 0.70710677
        %v2020 = vmul.f32 %v1946, 0.70710677
        %v2021 = vmul.f32 %v1948, 0.70710677
        %v2022 = vmul.f32 %v1950, 0.70710677
        %v2023 = vmul.f32 %v1952, 0.70710677
        %v2024 = vmul.f32 %v1956, 0.70710677
        %v2025 = vmul.f32 %v1958, 0.70710677
        %v2026 = vmul.f32 %v1960, 0.70710677
        %v2027 = vmul.f32 %v1962, 0.70710677
        %v2028 = verf.f32.pop %v1996
        %v2029 = verf.f32.pop %v1997
        %v2030 = verf.f32.pop %v1998
        %v2031 = verf.f32.pop %v1999
        %v2032 = verf.f32.pop %v2000
        %v2033 = verf.f32.pop %v2001
        %v2034 = verf.f32.pop %v2002
        %v2035 = verf.f32.pop %v2003
        %v2036 = verf.f32.pop %v2004
        %v2037 = verf.f32.pop %v2005
        %v2038 = verf.f32.pop %v2006
        %v2039 = verf.f32.pop %v2007
        %v2040 = verf.f32.pop %v2008
        %v2041 = verf.f32.pop %v2009
        %v2042 = verf.f32.pop %v2010
        %v2043 = verf.f32.pop %v2011
        %v2044 = verf.f32.pop %v2012
        %v2045 = verf.f32.pop %v2013
        %v2046 = verf.f32.pop %v2014
        %v2047 = verf.f32.pop %v2015
        %v2048 = verf.f32.pop %v2016
        %v2049 = verf.f32.pop %v2017
        %v2050 = verf.f32.pop %v2018
        %v2051 = verf.f32.pop %v2019
        %v2052 = verf.f32.pop %v2020
        %v2053 = verf.f32.pop %v2021
        %v2054 = verf.f32.pop %v2022
        %v2055 = verf.f32.pop %v2023
        %v2056 = verf.f32.pop %v2024
        %v2057 = verf.f32.pop %v2025
        %v2058 = verf.f32.pop %v2026
        %v2059 = verf.f32.pop %v2027
        %v2060 = vadd.f32 %v2028, 1.0
        %v2061 = vadd.f32 %v2029, 1.0
        %v2062 = vadd.f32 %v2030, 1.0
        %v2063 = vadd.f32 %v2031, 1.0
        %v2064 = vadd.f32 %v2032, 1.0
        %v2065 = vadd.f32 %v2033, 1.0
        %v2066 = vadd.f32 %v2034, 1.0
        %v2067 = vadd.f32 %v2035, 1.0
        %v2068 = vadd.f32 %v2036, 1.0
        %v2069 = vadd.f32 %v2037, 1.0
        %v2070 = vadd.f32 %v2038, 1.0
        %v2071 = vadd.f32 %v2039, 1.0
        %v2072 = vadd.f32 %v2040, 1.0
        %v2073 = vadd.f32 %v2041, 1.0
        %v2074 = vadd.f32 %v2042, 1.0
        %v2075 = vadd.f32 %v2043, 1.0
        %v2076 = vadd.f32 %v2044, 1.0
        %v2077 = vadd.f32 %v2045, 1.0
        %v2078 = vadd.f32 %v2046, 1.0
        %v2079 = vadd.f32 %v2047, 1.0
        %v2080 = vadd.f32 %v2048, 1.0
        %v2081 = vadd.f32 %v2049, 1.0
        %v2082 = vadd.f32 %v2050, 1.0
        %v2083 = vadd.f32 %v2051, 1.0
        %v2084 = vadd.f32 %v2052, 1.0
        %v2085 = vadd.f32 %v2053, 1.0
        %v2086 = vadd.f32 %v2054, 1.0
        %v2087 = vadd.f32 %v2055, 1.0
        %v2088 = vadd.f32 %v2056, 1.0
        %v2089 = vadd.f32 %v2057, 1.0
        %v2090 = vadd.f32 %v2058, 1.0
        %v2091 = vadd.f32 %v2059, 1.0
        %v2092 = vmul.f32 %v1964, %v2060
        %v2093 = vmul.f32 %v1965, %v2061
        %v2094 = vmul.f32 %v1966, %v2062
        %v2095 = vmul.f32 %v1967, %v2063
        %v2096 = vmul.f32 %v1968, %v2064
        %v2097 = vmul.f32 %v1969, %v2065
        %v2098 = vmul.f32 %v1970, %v2066
        %v2099 = vmul.f32 %v1971, %v2067
        %v2100 = vmul.f32 %v1972, %v2068
        %v2101 = vmul.f32 %v1973, %v2069
        %v2102 = vmul.f32 %v1974, %v2070
        %v2103 = vmul.f32 %v1975, %v2071
        %v2104 = vmul.f32 %v1976, %v2072
        %v2105 = vmul.f32 %v1977, %v2073
        %v2106 = vmul.f32 %v1978, %v2074
        %v2107 = vmul.f32 %v1979, %v2075
        %v2108 = vmul.f32 %v1980, %v2076
        %v2109 = vmul.f32 %v1981, %v2077
        %v2110 = vmul.f32 %v1982, %v2078
        %v2111 = vmul.f32 %v1983, %v2079
        %v2112 = vmul.f32 %v1984, %v2080
        %v2113 = vmul.f32 %v1985, %v2081
        %v2114 = vmul.f32 %v1986, %v2082
        %v2115 = vmul.f32 %v1987, %v2083
        %v2116 = vmul.f32 %v1988, %v2084
        %v2117 = vmul.f32 %v1989, %v2085
        %v2118 = vmul.f32 %v1990, %v2086
        %v2119 = vmul.f32 %v1991, %v2087
        %v2120 = vmul.f32 %v1992, %v2088
        %v2121 = vmul.f32 %v1993, %v2089
        %v2122 = vmul.f32 %v1994, %v2090
        %v2123 = vmul.f32 %v1995, %v2091
        %v2124 = vpack.c.bf16 %v2094, %v2092
        %v2125 = vpack.c.bf16 %v2095, %v2093
        %v2126 = vpack.c.bf16 %v2098, %v2096
        %v2127 = vpack.c.bf16 %v2099, %v2097
        %v2128 = vpack.c.bf16 %v2102, %v2100
        %v2129 = vpack.c.bf16 %v2103, %v2101
        %v2130 = vpack.c.bf16 %v2106, %v2104
        %v2131 = vpack.c.bf16 %v2107, %v2105
        %v2132 = vpack.c.bf16 %v2110, %v2108
        %v2133 = vpack.c.bf16 %v2111, %v2109
        %v2134 = vpack.c.bf16 %v2114, %v2112
        %v2135 = vpack.c.bf16 %v2115, %v2113
        %v2136 = vpack.c.bf16 %v2118, %v2116
        %v2137 = vpack.c.bf16 %v2119, %v2117
        %v2138 = vpack.c.bf16 %v2122, %v2120
        %v2139 = vpack.c.bf16 %v2123, %v2121
        %v2140 = vld [vmem:[%s11] sm:$0xf]
        %v2141 = vld [vmem:[%s11 + $0x4] sm:$0xf]
        %v2142 = vld [vmem:[%s11 + $0x8] sm:$0xf]
        %v2143 = vld [vmem:[%s11 + $0xc] sm:$0xf]
        %v2144 = vld [vmem:[%s11 + $0x10] sm:$0xf]
        %v2145 = vld [vmem:[%s11 + $0x14] sm:$0xf]
        %v2146 = vld [vmem:[%s11 + $0x18] sm:$0xf]
        %v2147 = vld [vmem:[%s11 + $0x1c] sm:$0xf]
        %v2148 = vld [vmem:[%s11 + $0x20] sm:$0xf]
        %v2149 = vld [vmem:[%s11 + $0x24] sm:$0xf]
        %v2150 = vld [vmem:[%s11 + $0x28] sm:$0xf]
        %v2151 = vld [vmem:[%s11 + $0x2c] sm:$0xf]
        %v2152 = vld [vmem:[%s11 + $0x30] sm:$0xf]
        %v2153 = vld [vmem:[%s11 + $0x34] sm:$0xf]
        %v2154 = vld [vmem:[%s11 + $0x38] sm:$0xf]
        %v2155 = vld [vmem:[%s11 + $0x3c] sm:$0xf]
        %v2156 = vld [vmem:[%s11 + $0x40] sm:$0xf]
        %v2157 = vld [vmem:[%s11 + $0x44] sm:$0xf]
        %v2158 = vld [vmem:[%s11 + $0x48] sm:$0xf]
        %v2159 = vld [vmem:[%s11 + $0x4c] sm:$0xf]
        %v2160 = vld [vmem:[%s11 + $0x50] sm:$0xf]
        %v2161 = vld [vmem:[%s11 + $0x54] sm:$0xf]
        %v2162 = vld [vmem:[%s11 + $0x58] sm:$0xf]
        %v2163 = vld [vmem:[%s11 + $0x5c] sm:$0xf]
        %v2164 = vld [vmem:[%s11 + $0x60] sm:$0xf]
        %v2165 = vld [vmem:[%s11 + $0x64] sm:$0xf]
        %v2166 = vld [vmem:[%s11 + $0x68] sm:$0xf]
        %v2167 = vld [vmem:[%s11 + $0x6c] sm:$0xf]
        %v2168 = vld [vmem:[%s11 + $0x70] sm:$0xf]
        %v2169 = vld [vmem:[%s11 + $0x74] sm:$0xf]
        %v2170 = vld [vmem:[%s11 + $0x78] sm:$0xf]
        %v2171 = vld [vmem:[%s11 + $0x7c] sm:$0xf]
        %v2172 = vld [vmem:[%s12] sm:$0x1]
        %v2174 = vlaneseq
        %v2175 = vshrl.u32 %v2174, 7
        %v2176 = vsub.s32 0, %v2175
        %v2177 = vrot.slane %v2172, %v2176
        %v2211 = vunpack.c.l.b16 %v2140
        %v2212 = vunpack.c.l.b16 %v2141
        %v2213 = vunpack.c.l.b16 %v2142
        %v2214 = vunpack.c.l.b16 %v2143
        %v2215 = vunpack.c.l.b16 %v2144
        %v2216 = vunpack.c.l.b16 %v2145
        %v2217 = vunpack.c.l.b16 %v2146
        %v2218 = vunpack.c.l.b16 %v2147
        %v2219 = vunpack.c.l.b16 %v2148
        %v2220 = vunpack.c.l.b16 %v2149
        %v2221 = vunpack.c.l.b16 %v2150
        %v2222 = vunpack.c.l.b16 %v2151
        %v2223 = vunpack.c.l.b16 %v2152
        %v2224 = vunpack.c.l.b16 %v2153
        %v2225 = vunpack.c.l.b16 %v2154
        %v2226 = vunpack.c.l.b16 %v2155
        %v2227 = vunpack.c.l.b16 %v2156
        %v2228 = vunpack.c.l.b16 %v2157
        %v2229 = vunpack.c.l.b16 %v2158
        %v2230 = vunpack.c.l.b16 %v2159
        %v2231 = vunpack.c.l.b16 %v2160
        %v2232 = vunpack.c.l.b16 %v2161
        %v2233 = vunpack.c.l.b16 %v2162
        %v2234 = vunpack.c.l.b16 %v2163
        %v2235 = vunpack.c.l.b16 %v2164
        %v2236 = vunpack.c.l.b16 %v2165
        %v2237 = vunpack.c.l.b16 %v2166
        %v2238 = vunpack.c.l.b16 %v2167
        %v2239 = vunpack.c.l.b16 %v2168
        %v2240 = vunpack.c.l.b16 %v2169
        %v2241 = vunpack.c.l.b16 %v2170
        %v2242 = vunpack.c.l.b16 %v2171
        %v2243 = vpack.c.b16 %v2212, %v2211
        %v2244 = vpack.c.b16 %v2214, %v2213
        %v2245 = vpack.c.b16 %v2216, %v2215
        %v2246 = vpack.c.b16 %v2218, %v2217
        %v2247 = vpack.c.b16 %v2220, %v2219
        %v2248 = vpack.c.b16 %v2222, %v2221
        %v2249 = vpack.c.b16 %v2224, %v2223
        %v2250 = vpack.c.b16 %v2226, %v2225
        %v2251 = vpack.c.b16 %v2228, %v2227
        %v2252 = vpack.c.b16 %v2230, %v2229
        %v2253 = vpack.c.b16 %v2232, %v2231
        %v2254 = vpack.c.b16 %v2234, %v2233
        %v2255 = vpack.c.b16 %v2236, %v2235
        %v2256 = vpack.c.b16 %v2238, %v2237
        %v2257 = vpack.c.b16 %v2240, %v2239
        %v2258 = vpack.c.b16 %v2242, %v2241
        %2275 = vmatprep.subr.bf16.mxu0 0
        %2276 = vmatpush1.bf16.msra.mxu0 %v2250
        %2277 = vmatprep.subr.bf16.mxu0 0
        %2278 = vmatpush1.bf16.msra.mxu0 %v2249
        %2279 = vmatprep.subr.bf16.mxu0 0
        %2280 = vmatpush1.bf16.msra.mxu0 %v2248
        %2281 = vmatprep.subr.bf16.mxu0 0
        %2282 = vmatpush1.bf16.msra.mxu0 %v2247
        %2283 = vmatprep.subr.bf16.mxu0 0
        %2284 = vmatpush1.bf16.msra.mxu0 %v2246
        %2285 = vmatprep.subr.bf16.mxu0 0
        %2286 = vmatpush1.bf16.msra.mxu0 %v2245
        %2287 = vmatprep.subr.bf16.mxu0 0
        %2288 = vmatpush1.bf16.msra.mxu0 %v2244
        %2289 = vmatprep.subr.bf16.mxu0 0
        %2290 = vmatpush1.bf16.msra.mxu0 %v2243
        %2291 = vmatprep.subr.bf16.mxu0 0
        %2292 = vmatpush2.bf16.msra.mxu0 %v2258
        %2293 = vmatprep.subr.bf16.mxu0 0
        %2294 = vmatpush2.bf16.msra.mxu0 %v2257
        %2295 = vmatprep.subr.bf16.mxu0 0
        %2296 = vmatpush2.bf16.msra.mxu0 %v2256
        %2297 = vmatprep.subr.bf16.mxu0 0
        %2298 = vmatpush2.bf16.msra.mxu0 %v2255
        %2299 = vmatprep.subr.bf16.mxu0 0
        %2300 = vmatpush2.bf16.msra.mxu0 %v2254
        %2301 = vmatprep.subr.bf16.mxu0 0
        %2302 = vmatpush2.bf16.msra.mxu0 %v2253
        %2303 = vmatprep.subr.bf16.mxu0 0
        %2304 = vmatpush2.bf16.msra.mxu0 %v2252
        %2305 = vmatprep.subr.bf16.mxu0 0
        %2306 = vmatpush2.bf16.msra.mxu0 %v2251
        %2307 = vmatprep.mubr.bf16.mxu0 %v2125
        %2308 = vmatmul.mubr.bf16.gmra.mxu0 %v2124
        %v2309 = vpop.f32.mrf.mxu0
        %v2310 = vadd.f32 %v2177, %v2309
        %v2311 = vpop.f32.mrf.mxu0
        %v2312 = vpop.f32.mrf.mxu0
        %v2313 = vadd.f32 %v2177, %v2312
        %v2314 = vpop.f32.mrf.mxu0
        %2315 = vmatprep.mubr.bf16.mxu0 %v2127
        %2316 = vmatmul.mubr.bf16.gmra.mxu0 %v2126
        %v2317 = vpop.f32.mrf.mxu0
        %v2318 = vadd.f32 %v2177, %v2317
        %v2319 = vpop.f32.mrf.mxu0
        %v2320 = vpop.f32.mrf.mxu0
        %v2321 = vadd.f32 %v2177, %v2320
        %v2322 = vpop.f32.mrf.mxu0
        %2323 = vmatprep.mubr.bf16.mxu0 %v2129
        %2324 = vmatmul.mubr.bf16.gmra.mxu0 %v2128
        %v2325 = vpop.f32.mrf.mxu0
        %v2326 = vadd.f32 %v2177, %v2325
        %v2327 = vpop.f32.mrf.mxu0
        %v2328 = vpop.f32.mrf.mxu0
        %v2329 = vadd.f32 %v2177, %v2328
        %v2330 = vpop.f32.mrf.mxu0
        %2331 = vmatprep.mubr.bf16.mxu0 %v2131
        %2332 = vmatmul.mubr.bf16.gmra.mxu0 %v2130
        %v2333 = vpop.f32.mrf.mxu0
        %v2334 = vadd.f32 %v2177, %v2333
        %v2335 = vpop.f32.mrf.mxu0
        %v2336 = vpop.f32.mrf.mxu0
        %v2337 = vadd.f32 %v2177, %v2336
        %v2338 = vpop.f32.mrf.mxu0
        %2339 = vmatprep.mubr.bf16.mxu0 %v2133
        %2340 = vmatmul.mubr.bf16.gmra.mxu0 %v2132
        %v2341 = vpop.f32.mrf.mxu0
        %v2342 = vadd.f32 %v2177, %v2341
        %v2343 = vpop.f32.mrf.mxu0
        %v2344 = vpop.f32.mrf.mxu0
        %v2345 = vadd.f32 %v2177, %v2344
        %v2346 = vpop.f32.mrf.mxu0
        %2347 = vmatprep.mubr.bf16.mxu0 %v2135
        %2348 = vmatmul.mubr.bf16.gmra.mxu0 %v2134
        %v2349 = vpop.f32.mrf.mxu0
        %v2350 = vadd.f32 %v2177, %v2349
        %v2351 = vpop.f32.mrf.mxu0
        %v2352 = vpop.f32.mrf.mxu0
        %v2353 = vadd.f32 %v2177, %v2352
        %v2354 = vpop.f32.mrf.mxu0
        %2355 = vmatprep.mubr.bf16.mxu0 %v2137
        %2356 = vmatmul.mubr.bf16.gmra.mxu0 %v2136
        %v2357 = vpop.f32.mrf.mxu0
        %v2358 = vadd.f32 %v2177, %v2357
        %v2359 = vpop.f32.mrf.mxu0
        %v2360 = vpop.f32.mrf.mxu0
        %v2361 = vadd.f32 %v2177, %v2360
        %v2362 = vpop.f32.mrf.mxu0
        %2363 = vmatprep.mubr.bf16.mxu0 %v2139
        %2364 = vmatmul.mubr.bf16.gmra.mxu0 %v2138
        %v2365 = vpop.f32.mrf.mxu0
        %v2366 = vadd.f32 %v2177, %v2365
        %v2367 = vpop.f32.mrf.mxu0
        %v2368 = vpop.f32.mrf.mxu0
        %v2369 = vadd.f32 %v2177, %v2368
        %v2370 = vpop.f32.mrf.mxu0
        %2371 = vdwg.mxu0
        %v2372 = vadd.f32 %v1449, %v2310
        %v2373 = vadd.f32 %v1450, %v2313
        %v2374 = vadd.f32 %v1451, %v2318
        %v2375 = vadd.f32 %v1452, %v2321
        %v2376 = vadd.f32 %v1453, %v2326
        %v2377 = vadd.f32 %v1454, %v2329
        %v2378 = vadd.f32 %v1455, %v2334
        %v2379 = vadd.f32 %v1456, %v2337
        %v2380 = vadd.f32 %v1457, %v2342
        %v2381 = vadd.f32 %v1458, %v2345
        %v2382 = vadd.f32 %v1459, %v2350
        %v2383 = vadd.f32 %v1460, %v2353
        %v2384 = vadd.f32 %v1461, %v2358
        %v2385 = vadd.f32 %v1462, %v2361
        %v2386 = vadd.f32 %v1463, %v2366
        %v2387 = vadd.f32 %v1464, %v2369
        %v2388 = vpack.c.bf16 %v2373, %v2372
        %v2389 = vpack.c.bf16 %v2375, %v2374
        %v2390 = vpack.c.bf16 %v2377, %v2376
        %v2391 = vpack.c.bf16 %v2379, %v2378
        %v2392 = vpack.c.bf16 %v2381, %v2380
        %v2393 = vpack.c.bf16 %v2383, %v2382
        %v2394 = vpack.c.bf16 %v2385, %v2384
        %v2395 = vpack.c.bf16 %v2387, %v2386
        %v2404 = vunpack.c.l.b16 %v2388
        %v2405 = vunpack.c.h.b16 %v2388
        %v2406 = vunpack.c.l.b16 %v2389
        %v2407 = vunpack.c.h.b16 %v2389
        %v2408 = vunpack.c.l.b16 %v2390
        %v2409 = vunpack.c.h.b16 %v2390
        %v2410 = vunpack.c.l.b16 %v2391
        %v2411 = vunpack.c.h.b16 %v2391
        %v2412 = vunpack.c.l.b16 %v2392
        %v2413 = vunpack.c.h.b16 %v2392
        %v2414 = vunpack.c.l.b16 %v2393
        %v2415 = vunpack.c.h.b16 %v2393
        %v2416 = vunpack.c.l.b16 %v2394
        %v2417 = vunpack.c.h.b16 %v2394
        %v2418 = vunpack.c.l.b16 %v2395
        %v2419 = vunpack.c.h.b16 %v2395
        %v2420 = vpack.c.b16 %v2404, %v2404
        %v2421 = vpack.c.b16 %v2405, %v2405
        %v2422 = vpack.c.b16 %v2406, %v2406
        %v2423 = vpack.c.b16 %v2407, %v2407
        %v2424 = vpack.c.b16 %v2408, %v2408
        %v2425 = vpack.c.b16 %v2409, %v2409
        %v2426 = vpack.c.b16 %v2410, %v2410
        %v2427 = vpack.c.b16 %v2411, %v2411
        %v2428 = vpack.c.b16 %v2412, %v2412
        %v2429 = vpack.c.b16 %v2413, %v2413
        %v2430 = vpack.c.b16 %v2414, %v2414
        %v2431 = vpack.c.b16 %v2415, %v2415
        %v2432 = vpack.c.b16 %v2416, %v2416
        %v2433 = vpack.c.b16 %v2417, %v2417
        %v2434 = vpack.c.b16 %v2418, %v2418
        %v2435 = vpack.c.b16 %v2419, %v2419
        %2452 = vst [vmem:[%s487] sm:$0xf] %v2420
        %2453 = vst [vmem:[%s487 + $0x4] sm:$0xf] %v2421
        %2454 = vst [vmem:[%s487 + $0x8] sm:$0xf] %v2422
        %2455 = vst [vmem:[%s487 + $0xc] sm:$0xf] %v2423
        %2456 = vst [vmem:[%s487 + $0x10] sm:$0xf] %v2424
        %2457 = vst [vmem:[%s487 + $0x14] sm:$0xf] %v2425
        %2458 = vst [vmem:[%s487 + $0x18] sm:$0xf] %v2426
        %2459 = vst [vmem:[%s487 + $0x1c] sm:$0xf] %v2427
        %2460 = vst [vmem:[%s487 + $0x20] sm:$0xf] %v2428
        %2461 = vst [vmem:[%s487 + $0x24] sm:$0xf] %v2429
        %2462 = vst [vmem:[%s487 + $0x28] sm:$0xf] %v2430
        %2463 = vst [vmem:[%s487 + $0x2c] sm:$0xf] %v2431
        %2464 = vst [vmem:[%s487 + $0x30] sm:$0xf] %v2432
        %2465 = vst [vmem:[%s487 + $0x34] sm:$0xf] %v2433
        %2466 = vst [vmem:[%s487 + $0x38] sm:$0xf] %v2434
        %2467 = vst [vmem:[%s487 + $0x3c] sm:$0xf] %v2435
        %s2468 = sand.u32 %s317, 1
        %s2469 = scalar_lea.sflag [#allocation5], %s2468
        %s2470 = sand.u32 %s317, 1
        %s2471 = smul.addr %s2470, 64
        %s2472 = scalar_lea.vmem [#allocation9], %s2471
        // Predicated region
        $region85: #{tpu_custom_call.1} parent=71 // pred_check
          %p2473 = pneg %p327
        $region86: #{tpu_custom_call.1} parent=71 // pred_check_branch
          %2475 = sbr.rel (%p2473) target = $region88
        $region87: #{tpu_custom_call.1} parent=71 // pred_region
          %s2477 = ssub.s32 1024, 1024
          %2478 = vsyncadd %s2469, %s2477
          %s2479 = smul.addr %s31, 16
          %s2480 = smul.addr %s2479, 64
          %s2481 = scalar_lea.hbm %s13, %s2480
          %s2482 = sshll.u32 %s2472, 4
          %s2483 = int_to_ptr.vmem [resolvable:$true] %s2482
          %2488 = dma.vmem_to_hbm [thread:$0]  %s2483, 1024, %s2481, %s2469, 64, 64, 4
        $region88: #{tpu_custom_call.1} parent=71 // pred_fallthru
          _
      $region72: #{tpu_custom_call.1} parent=5 // pred_fallthru
        _
      %p2489 = scmp.le.s32.totalorder 2, %s26
      // Predicated region
      $region89: #{tpu_custom_call.1} parent=5 // pred_check
        %p2490 = pneg %p2489
      $region90: #{tpu_custom_call.1} parent=5 // pred_check_branch
        %2492 = sbr.rel (%p2490) target = $region92
      $region91: #{tpu_custom_call.1} parent=5 // pred_region
        %s2493 = ssub.s32 %s26, 2
        // Predicated region
        $region93: #{tpu_custom_call.1} parent=91 // pred_check
          %p2494 = pneg %p333
        $region94: #{tpu_custom_call.1} parent=91 // pred_check_branch
          %2496 = sbr.rel (%p2494) target = $region96
        $region95: #{tpu_custom_call.1} parent=91 // pred_region
          %s2497 = sand.u32 %s318, 1
          %s2498 = scalar_lea.sflag [#allocation5], %s2497
          %s2499 = sand.u32 %s318, 1
          %s2500 = smul.addr %s2499, 64
          %s2501 = scalar_lea.vmem [#allocation9], %s2500
          %2502 = dma.done %s2498, 1024
        $region96: #{tpu_custom_call.1} parent=91 // pred_fallthru
          _
      $region92: #{tpu_custom_call.1} parent=5 // pred_fallthru
        _
    $region6: #{tpu_custom_call.1} parent=1 // loop_footer
      %s30 = sadd.s32 1, %s26
    $region7: #{tpu_custom_call.1} parent=1 // loop_footer_branch
      %25 = sbr.rel target = $region3
    $region8: #{tpu_custom_call.1} parent=1 // loop_exit
      _
    %2503 = vsyncpa [#allocation4], 1
    %s2504 = scalar_lea.sflag [#allocation4], 1
    %2505 = vsyncpa %s2504, 1
    %2506 = vsyncpa [#allocation7], 1
    %2507 = vsyncpa [#allocation5], 1
    %s2508 = scalar_lea.sflag [#allocation5], 1
    %2509 = vsyncpa %s2508, 1

</llo_original>
